<compile_context>
chip_gen: v5e
topology: v5e:2x2
jax: 0.10.0
libtpu: 0.0.40
codegen_flags: <defaults>
</compile_context>

<pallas_src>
import jax
import jax.numpy as jnp
from jax.experimental import pallas as pl
from jax.experimental.pallas import tpu as pltpu

S = 40       # number of slices (fixed by fc_att in_features = 40*8)
F = 8        # per-slice feature dim
OUT = 128    # fc_att out_features
NBR = 3      # number of branches (x2 / x3 / x4)


def _fused_kernel(x_ref, w1_ref, b1_ref, watt_ref, batt_ref, o_ref):
    """One grid step == one branch (all 40 slices handled in-body).

    x_ref    : [1, S, B, HW]   branch input, slice-major
    w1_ref   : [1, S, F, HW]   per-slice feature weights (lane-dense, HW last)
    b1_ref   : [1, S, 1, F]    per-slice feature bias
    watt_ref : [1, S, F, OUT]  fc_att weight, row s*F+f of w_att.T -> [s, f, :]
    batt_ref : [1, 1, OUT]     fc_att bias
    o_ref    : [1, B, OUT]     branch output
    """
    x = x_ref[0]      # [S, B, HW]
    w1 = w1_ref[0]    # [S, F, HW]

    # Per-slice "Slice" feature extractor (stand-in): batched linear over HW.
    #   feat[s, b, f] = sum_p x[s, b, p] * w1[s, f, p]
    feat = jax.lax.dot_general(
        x, w1,
        dimension_numbers=(((2,), (2,)), ((0,), (0,))),
        preferred_element_type=jnp.float32)                 # [S, B, F]
    feat = jnp.maximum(feat + b1_ref[0], 0.0)               # bias + ReLU

    # fc_att: batched contraction over the feature dim, then reduce over S.
    #   out[b, o] = sum_{s,f} feat[s, b, f] * w_att.T[s*F+f, o] + b_att[o]
    partial = jax.lax.dot_general(
        feat, watt_ref[0],
        dimension_numbers=(((2,), (1,)), ((0,), (0,))),
        preferred_element_type=jnp.float32)                 # [S, B, OUT]
    out = jnp.sum(partial, axis=0) + batt_ref[0]            # [B, OUT]
    o_ref[0] = out.astype(o_ref.dtype)


def _fused_forward(x_all, w1, b1, watt, batt):
    """x_all: [3, S, B, HW] (+ kernel-layout params) -> [3, B, OUT]."""
    _, _, B, HW = x_all.shape
    return pl.pallas_call(
        _fused_kernel,
        out_shape=jax.ShapeDtypeStruct((NBR, B, OUT), jnp.float32),
        grid_spec=pltpu.PrefetchScalarGridSpec(
            num_scalar_prefetch=0,
            grid=(NBR,),
            in_specs=[
                pl.BlockSpec((1, S, B, HW), lambda b: (b, 0, 0, 0)),
                pl.BlockSpec((1, S, F, HW), lambda b: (b, 0, 0, 0)),
                pl.BlockSpec((1, S, 1, F), lambda b: (b, 0, 0, 0)),
                pl.BlockSpec((1, S, F, OUT), lambda b: (b, 0, 0, 0)),
                pl.BlockSpec((1, 1, OUT), lambda b: (b, 0, 0)),
            ],
            out_specs=pl.BlockSpec((1, B, OUT), lambda b: (b, 0, 0)),
        ),
        # Branch axis is independent work -> shards across the 2 TCs on v7x.
        compiler_params=pltpu.CompilerParams(
            dimension_semantics=("parallel",)),
    )(x_all, w1, b1, watt, batt)


def prepare_params(raw):
    """One-time conversion of PyTorch-layout params into the kernel layout.

    Runs once at model-setup time so no transpose/reshape ops sit on the
    per-forward launch path.
    """
    # Per-slice feature weights: [S, HW, F] -> lane-dense [S, F, HW], stacked.
    w1 = jnp.stack([raw["w1_1"], raw["w1_2"], raw["w1_3"]], axis=0)       # [3,S,HW,F]
    w1 = jnp.transpose(w1, (0, 1, 3, 2))                                   # [3,S,F,HW]
    # Per-slice biases: [S, F] -> [S, 1, F] (broadcast over batch in-kernel).
    b1 = jnp.stack([raw["b1_1"], raw["b1_2"], raw["b1_3"]], axis=0)        # [3,S,F]
    b1 = b1[:, :, None, :]                                                 # [3,S,1,F]
    # fc_att weights: [OUT, S*F] -> [S*F, OUT] -> [S, F, OUT] (row s*F+f).
    watt = jnp.stack([raw["watt1"], raw["watt2"], raw["watt3"]], axis=0)   # [3,OUT,S*F]
    watt = jnp.transpose(watt, (0, 2, 1)).reshape(NBR, S, F, OUT)          # [3,S,F,OUT]
    # fc_att biases.
    batt = jnp.stack([raw["batt1"], raw["batt2"], raw["batt3"]], axis=0)   # [3,OUT]
    batt = batt[:, None, :]                                                # [3,1,OUT]
    return {"w1": w1, "b1": b1, "watt": watt, "batt": batt}


@jax.jit
def my2dmodel_forward(kparams, x2, x3, x4):
    """Mirrors My2DModel.forward: returns (attention_x1, attention_x2, attention_x3).

    The only per-call wrapper work is stacking the three inputs into the fused
    [3, S, B, HW] layout (a single ~240 KB HBM copy that the required branch
    stack would cost anyway).  Note: B=2 pads to 8 sublanes in every vreg; the
    kernel gets cheaper per element for B that is a multiple of 8.
    """
    B = x2.shape[0]

    def prep(x):  # [B, S, H, W] -> [S, B, HW], fused into the stack copy
        return jnp.transpose(x.reshape(B, S, -1), (1, 0, 2))

    x_all = jnp.stack([prep(x2), prep(x3), prep(x4)], axis=0)   # [3, S, B, HW]
    out = _fused_forward(x_all, kparams["w1"], kparams["b1"],
                         kparams["watt"], kparams["batt"])
    # x1 = concat((a1, a2, a3), axis=1) is computed but unused in the torch code.
    return out[0], out[1], out[2]


def _branch_reference(x, w1, b1, w_att, b_att):
    """Pure-JAX reference for one branch (PyTorch-layout params)."""
    B, S_, H, W = x.shape
    feats = jnp.einsum("bsp,spf->bsf", x.reshape(B, S_, H * W), w1) + b1[None]
    feats = jnp.maximum(feats, 0.0).reshape(B, S_ * F)
    return feats @ w_att.T + b_att


if __name__ == "__main__":
    B, H, W = 2, 16, 16
    HW = H * W

    key = jax.random.PRNGKey(0)
    keys = jax.random.split(key, 16)

    def mk(k, shape, scale=0.05):
        return jax.random.normal(k, shape, dtype=jnp.float32) * scale

    # Parameters in PyTorch-like layout.
    params = {
        "w1_1": mk(keys[0], (S, HW, F)), "b1_1": mk(keys[1], (S, F)),
        "w1_2": mk(keys[2], (S, HW, F)), "b1_2": mk(keys[3], (S, F)),
        "w1_3": mk(keys[4], (S, HW, F)), "b1_3": mk(keys[5], (S, F)),
        "watt1": mk(keys[6], (OUT, S * F)), "batt1": mk(keys[7], (OUT,)),
        "watt2": mk(keys[8], (OUT, S * F)), "batt2": mk(keys[9], (OUT,)),
        "watt3": mk(keys[10], (OUT, S * F)), "batt3": mk(keys[11], (OUT,)),
    }
    kparams = prepare_params(params)          # one-time re-layout
    jax.block_until_ready(kparams)

    x2 = jax.random.normal(keys[12], (B, S, H, W), dtype=jnp.float32)
    x3 = jax.random.normal(keys[13], (B, S, H, W), dtype=jnp.float32)
    x4 = jax.random.normal(keys[14], (B, S, H, W), dtype=jnp.float32)

    a1, a2, a3 = my2dmodel_forward(kparams, x2, x3, x4)
    jax.block_until_ready((a1, a2, a3))

    # Correctness check against a pure-JAX reference.
    r1 = _branch_reference(x2, params["w1_1"], params["b1_1"],
                           params["watt1"], params["batt1"])
    r2 = _branch_reference(x3, params["w1_2"], params["b1_2"],
                           params["watt2"], params["batt2"])
    r3 = _branch_reference(x4, params["w1_3"], params["b1_3"],
                           params["watt3"], params["batt3"])
    assert a1.shape == (B, OUT) and a2.shape == (B, OUT) and a3.shape == (B, OUT)
    assert jnp.allclose(a1, r1, atol=1e-4, rtol=1e-4)
    assert jnp.allclose(a2, r2, atol=1e-4, rtol=1e-4)
    assert jnp.allclose(a3, r3, atol=1e-4, rtol=1e-4)

    print("KERNEL_OK")
</pallas_src>

<mosaic_0001>
module attributes {stable_mosaic.version = 11 : i64} {
  func.func @_fused_kernel(%arg0: i32, %arg1: memref<1x40x2x256xf32, #tpu.memory_space<vmem>>, %arg2: memref<1x40x8x256xf32, #tpu.memory_space<vmem>>, %arg3: memref<1x40x1x8xf32, #tpu.memory_space<vmem>>, %arg4: memref<1x40x8x128xf32, #tpu.memory_space<vmem>>, %arg5: memref<1x1x128xf32, #tpu.memory_space<vmem>>, %arg6: memref<1x2x128xf32, #tpu.memory_space<vmem>>) attributes {dimension_semantics = [#tpu.dimension_semantics<parallel>], iteration_bounds = array<i64: 3>, scalar_prefetch = 0 : i64, scratch_operands = 0 : i64, tpu.core_type = #tpu.core_type<tc>, window_params = [{transform_indices = @transform_0, window_bounds = array<i64: 1, 40, 2, 256>}, {transform_indices = @transform_1, window_bounds = array<i64: 1, 40, 8, 256>}, {transform_indices = @transform_2, window_bounds = array<i64: 1, 40, 1, 8>}, {transform_indices = @transform_3, window_bounds = array<i64: 1, 40, 8, 128>}, {transform_indices = @transform_4, window_bounds = array<i64: 1, 1, 128>}, {transform_indices = @transform_5, window_bounds = array<i64: 1, 2, 128>}]} {
    %c0 = arith.constant 0 : index
    %c0_0 = arith.constant 0 : index
    %c0_1 = arith.constant 0 : index
    %c0_2 = arith.constant 0 : index
    %0 = vector.load %arg1[%c0, %c0_0, %c0_1, %c0_2] : memref<1x40x2x256xf32, #tpu.memory_space<vmem>>, vector<1x40x2x256xf32>
    %1 = vector.shape_cast %0 : vector<1x40x2x256xf32> to vector<40x2x256xf32>
    %c0_3 = arith.constant 0 : index
    %c0_4 = arith.constant 0 : index
    %c0_5 = arith.constant 0 : index
    %c0_6 = arith.constant 0 : index
    %2 = vector.load %arg2[%c0_3, %c0_4, %c0_5, %c0_6] : memref<1x40x8x256xf32, #tpu.memory_space<vmem>>, vector<1x40x8x256xf32>
    %3 = vector.shape_cast %2 : vector<1x40x8x256xf32> to vector<40x8x256xf32>
    %cst = arith.constant dense<0.000000e+00> : vector<40x2x8xf32>
    %4 = tpu.matmul %1, %3, %cst {dimension_numbers = #tpu.dot_dimension_numbers<[2], [2], [1], [1], [0, 0, 0, 1, 1, 1], [0], [0]>} : vector<40x2x256xf32>, vector<40x8x256xf32>, vector<40x2x8xf32> -> vector<40x2x8xf32>
    %c0_7 = arith.constant 0 : index
    %c0_8 = arith.constant 0 : index
    %c0_9 = arith.constant 0 : index
    %c0_10 = arith.constant 0 : index
    %5 = vector.load %arg3[%c0_7, %c0_8, %c0_9, %c0_10] : memref<1x40x1x8xf32, #tpu.memory_space<vmem>>, vector<1x40x1x8xf32>
    %6 = vector.shape_cast %5 : vector<1x40x1x8xf32> to vector<40x1x8xf32>
    %7 = vector.broadcast %6 : vector<40x1x8xf32> to vector<40x2x8xf32>
    %8 = arith.addf %4, %7 : vector<40x2x8xf32>
    %cst_11 = arith.constant 0.000000e+00 : f32
    %9 = vector.broadcast %cst_11 : f32 to vector<40x2x8xf32>
    %10 = arith.maximumf %8, %9 : vector<40x2x8xf32>
    %c0_12 = arith.constant 0 : index
    %c0_13 = arith.constant 0 : index
    %c0_14 = arith.constant 0 : index
    %c0_15 = arith.constant 0 : index
    %11 = vector.load %arg4[%c0_12, %c0_13, %c0_14, %c0_15] : memref<1x40x8x128xf32, #tpu.memory_space<vmem>>, vector<1x40x8x128xf32>
    %12 = vector.shape_cast %11 : vector<1x40x8x128xf32> to vector<40x8x128xf32>
    %cst_16 = arith.constant dense<0.000000e+00> : vector<40x2x128xf32>
    %13 = tpu.matmul %10, %12, %cst_16 {dimension_numbers = #tpu.dot_dimension_numbers<[2], [1], [1], [2], [0, 0, 0, 1, 1, 2], [0], [0]>} : vector<40x2x8xf32>, vector<40x8x128xf32>, vector<40x2x128xf32> -> vector<40x2x128xf32>
    %cst_17 = arith.constant dense<0.000000e+00> : vector<2x128xf32>
    %14 = vector.multi_reduction <add>, %13, %cst_17 [0] : vector<40x2x128xf32> to vector<2x128xf32>
    %c0_18 = arith.constant 0 : index
    %c0_19 = arith.constant 0 : index
    %c0_20 = arith.constant 0 : index
    %15 = vector.load %arg5[%c0_18, %c0_19, %c0_20] : memref<1x1x128xf32, #tpu.memory_space<vmem>>, vector<1x1x128xf32>
    %16 = vector.shape_cast %15 : vector<1x1x128xf32> to vector<1x128xf32>
    %17 = vector.broadcast %16 : vector<1x128xf32> to vector<2x128xf32>
    %18 = arith.addf %14, %17 : vector<2x128xf32>
    %c0_21 = arith.constant 0 : index
    %c0_22 = arith.constant 0 : index
    %c0_23 = arith.constant 0 : index
    %19 = vector.load %arg6[%c0_21, %c0_22, %c0_23] : memref<1x2x128xf32, #tpu.memory_space<vmem>>, vector<1x2x128xf32>
    %20 = vector.shape_cast %19 : vector<1x2x128xf32> to vector<2x128xf32>
    %21 = vector.shape_cast %18 : vector<2x128xf32> to vector<1x2x128xf32>
    tpu.vector_store %arg6[%c0_21, %c0_22, %c0_23], %21 {strides = array<i32>} : memref<1x2x128xf32, #tpu.memory_space<vmem>>, vector<1x2x128xf32>,
    return
  }
  func.func @transform_0(%arg0: i32) -> (i32, i32, i32, i32) {
    %c0_i32 = arith.constant 0 : i32
    %c0_i32_0 = arith.constant 0 : i32
    %c0_i32_1 = arith.constant 0 : i32
    %c0_i32_2 = arith.constant 0 : i32
    return %arg0, %c0_i32, %c0_i32_0, %c0_i32_1 : i32, i32, i32, i32
  }
  func.func @transform_1(%arg0: i32) -> (i32, i32, i32, i32) {
    %c0_i32 = arith.constant 0 : i32
    %c0_i32_0 = arith.constant 0 : i32
    %c0_i32_1 = arith.constant 0 : i32
    %c0_i32_2 = arith.constant 0 : i32
    return %arg0, %c0_i32, %c0_i32_0, %c0_i32_1 : i32, i32, i32, i32
  }
  func.func @transform_2(%arg0: i32) -> (i32, i32, i32, i32) {
    %c0_i32 = arith.constant 0 : i32
    %c0_i32_0 = arith.constant 0 : i32
    %c0_i32_1 = arith.constant 0 : i32
    %c0_i32_2 = arith.constant 0 : i32
    return %arg0, %c0_i32, %c0_i32_0, %c0_i32_1 : i32, i32, i32, i32
  }
  func.func @transform_3(%arg0: i32) -> (i32, i32, i32, i32) {
    %c0_i32 = arith.constant 0 : i32
    %c0_i32_0 = arith.constant 0 : i32
    %c0_i32_1 = arith.constant 0 : i32
    %c0_i32_2 = arith.constant 0 : i32
    return %arg0, %c0_i32, %c0_i32_0, %c0_i32_1 : i32, i32, i32, i32
  }
  func.func @transform_4(%arg0: i32) -> (i32, i32, i32) {
    %c0_i32 = arith.constant 0 : i32
    %c0_i32_0 = arith.constant 0 : i32
    %c0_i32_1 = arith.constant 0 : i32
    return %arg0, %c0_i32, %c0_i32_0 : i32, i32, i32
  }
  func.func @transform_5(%arg0: i32) -> (i32, i32, i32) {
    %c0_i32 = arith.constant 0 : i32
    %c0_i32_0 = arith.constant 0 : i32
    %c0_i32_1 = arith.constant 0 : i32
    return %arg0, %c0_i32, %c0_i32_0 : i32, i32, i32
  }
}

</mosaic_0001>

<llo_original>
// kernel: my2dmodel_forward.1
$region0: #{my2dmodel_forward.1}
  #allocation0 [shape = 'u32[]', space=smem, size = 0x4, offset = 0x4, fixed_abs, tag = 'smem constant byte address 0x4 - core index']
  #allocation1 [shape = 'u32[72,128]{1,0:T(1,128)}', space=vmem, size = 0x9000, scoped, tag = 'internal scratch']
  %s0 = inlined_call_operand.vmem [shape: f32[3,40,2,256], index: 0, kind: input, shape index: {}]
  %s1 = inlined_call_operand.vmem [shape: f32[3,40,8,256], index: 1, kind: input, shape index: {}]
  %s2 = inlined_call_operand.vmem [shape: f32[3,40,1,8], index: 2, kind: input, shape index: {}]
  %s3 = inlined_call_operand.hbm [shape: f32[3,40,8,128], index: 3, kind: input, shape index: {}]
  %s4 = inlined_call_operand.vmem [shape: f32[3,1,128], index: 4, kind: input, shape index: {}]
  %s5 = inlined_call_operand.vmem [shape: f32[3,2,128], index: 5, kind: output, shape index: {}]
  %s6 = sld [smem:[#allocation0]]
  $region57: #{my2dmodel_forward.1} parent=0
    _
  %s8 = ssub.s32 1, %s6
  %s9 = scalar_select 0, %s8, %s6
  $region1: #{my2dmodel_forward.1} parent=0
    #allocation2 [shape = 'u8[327680]{0}', space=vmem, size = 0x50000, scoped, tag = 'input window, operand 3']
    #allocation3 [shape = 's32[2]{0}', space=sflag, size = 0x8, scoped, tag = 'scoped memory for my2dmodel_forward.1']
    %10 = vsyncpa [#allocation3], 0
    %s11 = scalar_lea.sflag [#allocation3], 1
    %12 = vsyncpa %s11, 0
    loop: start=0, step=1, limit=5
    $region2: #{my2dmodel_forward.1} parent=1 // loop_pre_header
      _
    $region3: #{my2dmodel_forward.1} parent=1 // loop_header
      %s14 = sphi 0, %s18
      %p15 = scmp.ge.s32.totalorder %s14, 5
      %s24 = sphi 0, %s26
      %s27 = sphi 0, %s24
      %s28 = sphi 0, %s27
      %s44 = sphi 0, %s28
      %s50 = sphi 0, %s52
      %s53 = sphi 0, %s50
      %s54 = sphi 0, %s53
      %s70 = sphi 0, %s54
      %s76 = sphi 0, %s78
      %s79 = sphi 0, %s76
      %s80 = sphi 0, %s79
      %s96 = sphi 0, %s80
      %s102 = sphi 0, %s104
      %s105 = sphi 0, %s102
      %s106 = sphi 0, %s105
      %s122 = sphi 0, %s106
      %s128 = sphi 0, %s130
      %s131 = sphi 0, %s128
      %s132 = sphi 0, %s131
      %s148 = sphi 0, %s132
      %s154 = sphi 0, %s156
      %s157 = sphi 0, %s154
      %s158 = sphi 0, %s157
      %s174 = sphi 0, %s158
    $region4: #{my2dmodel_forward.1} parent=1 // loop_header_branch
      %17 = sbr.rel (%p15) target = $region8
    $region5: #{my2dmodel_forward.1} parent=1 // loop_body
      %s19 = ssub.s32 %s14, 1
      %s20 = ssub.s32 %s14, 2
      %s21 = sadd.s32 %s14, 1
      %s22 = ssub.s32 %s14, %s21
      %p23 = scmp.eq.s32.totalorder %s22, 0
      %s25 = sadd.s32 %s24, 1
      %s26 = scalar_select %p23, %s24, %s25
      %p29 = pneg %p23
      %p30 = scmp.eq.s32.totalorder %s14, 2
      %p31 = por %p29, %p30
      %p32 = scmp.ne.s32.totalorder %s24, %s27
      %p33 = scmp.eq.s32.totalorder %s14, 0
      %p34 = por %p32, %p33
      %p35 = scmp.ne.s32.totalorder %s24, %s27
      %p36 = scmp.eq.s32.totalorder %s19, 2
      %p37 = por %p35, %p36
      %p38 = scmp.ne.s32.totalorder %s27, %s28
      %p39 = scmp.eq.s32.totalorder %s19, 0
      %p40 = por %p38, %p39
      %p41 = scmp.ne.s32.totalorder %s27, %s28
      %p42 = scmp.eq.s32.totalorder %s20, 2
      %p43 = por %p41, %p42
      %p45 = scmp.ne.s32.totalorder %s28, %s44
      %p46 = scmp.eq.s32.totalorder %s20, 0
      %p47 = por %p45, %p46
      %s48 = ssub.s32 %s14, %s21
      %p49 = scmp.eq.s32.totalorder %s48, 0
      %s51 = sadd.s32 %s50, 1
      %s52 = scalar_select %p49, %s50, %s51
      %p55 = pneg %p49
      %p56 = scmp.eq.s32.totalorder %s14, 2
      %p57 = por %p55, %p56
      %p58 = scmp.ne.s32.totalorder %s50, %s53
      %p59 = scmp.eq.s32.totalorder %s14, 0
      %p60 = por %p58, %p59
      %p61 = scmp.ne.s32.totalorder %s50, %s53
      %p62 = scmp.eq.s32.totalorder %s19, 2
      %p63 = por %p61, %p62
      %p64 = scmp.ne.s32.totalorder %s53, %s54
      %p65 = scmp.eq.s32.totalorder %s19, 0
      %p66 = por %p64, %p65
      %p67 = scmp.ne.s32.totalorder %s53, %s54
      %p68 = scmp.eq.s32.totalorder %s20, 2
      %p69 = por %p67, %p68
      %p71 = scmp.ne.s32.totalorder %s54, %s70
      %p72 = scmp.eq.s32.totalorder %s20, 0
      %p73 = por %p71, %p72
      %s74 = ssub.s32 %s14, %s21
      %p75 = scmp.eq.s32.totalorder %s74, 0
      %s77 = sadd.s32 %s76, 1
      %s78 = scalar_select %p75, %s76, %s77
      %p81 = pneg %p75
      %p82 = scmp.eq.s32.totalorder %s14, 2
      %p83 = por %p81, %p82
      %p84 = scmp.ne.s32.totalorder %s76, %s79
      %p85 = scmp.eq.s32.totalorder %s14, 0
      %p86 = por %p84, %p85
      %p87 = scmp.ne.s32.totalorder %s76, %s79
      %p88 = scmp.eq.s32.totalorder %s19, 2
      %p89 = por %p87, %p88
      %p90 = scmp.ne.s32.totalorder %s79, %s80
      %p91 = scmp.eq.s32.totalorder %s19, 0
      %p92 = por %p90, %p91
      %p93 = scmp.ne.s32.totalorder %s79, %s80
      %p94 = scmp.eq.s32.totalorder %s20, 2
      %p95 = por %p93, %p94
      %p97 = scmp.ne.s32.totalorder %s80, %s96
      %p98 = scmp.eq.s32.totalorder %s20, 0
      %p99 = por %p97, %p98
      %s100 = ssub.s32 %s14, %s21
      %p101 = scmp.eq.s32.totalorder %s100, 0
      %s103 = sadd.s32 %s102, 1
      %s104 = scalar_select %p101, %s102, %s103
      %p107 = pneg %p101
      %p108 = scmp.eq.s32.totalorder %s14, 2
      %p109 = por %p107, %p108
      %p110 = scmp.ne.s32.totalorder %s102, %s105
      %p111 = scmp.eq.s32.totalorder %s14, 0
      %p112 = por %p110, %p111
      %p113 = scmp.ne.s32.totalorder %s102, %s105
      %p114 = scmp.eq.s32.totalorder %s19, 2
      %p115 = por %p113, %p114
      %p116 = scmp.ne.s32.totalorder %s105, %s106
      %p117 = scmp.eq.s32.totalorder %s19, 0
      %p118 = por %p116, %p117
      %p119 = scmp.ne.s32.totalorder %s105, %s106
      %p120 = scmp.eq.s32.totalorder %s20, 2
      %p121 = por %p119, %p120
      %p123 = scmp.ne.s32.totalorder %s106, %s122
      %p124 = scmp.eq.s32.totalorder %s20, 0
      %p125 = por %p123, %p124
      %s126 = ssub.s32 %s14, %s21
      %p127 = scmp.eq.s32.totalorder %s126, 0
      %s129 = sadd.s32 %s128, 1
      %s130 = scalar_select %p127, %s128, %s129
      %p133 = pneg %p127
      %p134 = scmp.eq.s32.totalorder %s14, 2
      %p135 = por %p133, %p134
      %p136 = scmp.ne.s32.totalorder %s128, %s131
      %p137 = scmp.eq.s32.totalorder %s14, 0
      %p138 = por %p136, %p137
      %p139 = scmp.ne.s32.totalorder %s128, %s131
      %p140 = scmp.eq.s32.totalorder %s19, 2
      %p141 = por %p139, %p140
      %p142 = scmp.ne.s32.totalorder %s131, %s132
      %p143 = scmp.eq.s32.totalorder %s19, 0
      %p144 = por %p142, %p143
      %p145 = scmp.ne.s32.totalorder %s131, %s132
      %p146 = scmp.eq.s32.totalorder %s20, 2
      %p147 = por %p145, %p146
      %p149 = scmp.ne.s32.totalorder %s132, %s148
      %p150 = scmp.eq.s32.totalorder %s20, 0
      %p151 = por %p149, %p150
      %s152 = ssub.s32 %s14, %s21
      %p153 = scmp.eq.s32.totalorder %s152, 0
      %s155 = sadd.s32 %s154, 1
      %s156 = scalar_select %p153, %s154, %s155
      %p159 = pneg %p153
      %p160 = scmp.eq.s32.totalorder %s14, 2
      %p161 = por %p159, %p160
      %p162 = scmp.ne.s32.totalorder %s154, %s157
      %p163 = scmp.eq.s32.totalorder %s14, 0
      %p164 = por %p162, %p163
      %p165 = scmp.ne.s32.totalorder %s154, %s157
      %p166 = scmp.eq.s32.totalorder %s19, 2
      %p167 = por %p165, %p166
      %p168 = scmp.ne.s32.totalorder %s157, %s158
      %p169 = scmp.eq.s32.totalorder %s19, 0
      %p170 = por %p168, %p169
      %p171 = scmp.ne.s32.totalorder %s157, %s158
      %p172 = scmp.eq.s32.totalorder %s20, 2
      %p173 = por %p171, %p172
      %p175 = scmp.ne.s32.totalorder %s158, %s174
      %p176 = scmp.eq.s32.totalorder %s20, 0
      %p177 = por %p175, %p176
      %p178 = scmp.le.s32.totalorder 1, %s14
      %p179 = scmp.lt.s32.totalorder %s14, 4
      %p180 = pnand %p178, %p179
      %p181 = pneg %p180
      // Predicated region
      $region9: #{my2dmodel_forward.1} parent=5 // pred_check
        _
      $region10: #{my2dmodel_forward.1} parent=5 // pred_check_branch
        %183 = sbr.rel (%p180) target = $region12
      $region11: #{my2dmodel_forward.1} parent=5 // pred_region
        %s184 = ssub.s32 %s14, 1
      $region12: #{my2dmodel_forward.1} parent=5 // pred_fallthru
        _
      %p185 = scmp.lt.s32.totalorder %s14, 3
      // Predicated region
      $region13: #{my2dmodel_forward.1} parent=5 // pred_check
        %p186 = pneg %p185
      $region14: #{my2dmodel_forward.1} parent=5 // pred_check_branch
        %188 = sbr.rel (%p186) target = $region16
      $region15: #{my2dmodel_forward.1} parent=5 // pred_region
        // Predicated region
        $region17: #{my2dmodel_forward.1} parent=15 // pred_check
          %p189 = pneg %p34
        $region18: #{my2dmodel_forward.1} parent=15 // pred_check_branch
          %191 = sbr.rel (%p189) target = $region20
        $region19: #{my2dmodel_forward.1} parent=15 // pred_region
          %p192 = scmp.lt.s32.totalorder %s14, 2
          %s193 = scalar_select %p192, %s14, 2
          %s194 = smul.addr %s193, 80
          %s195 = smul.addr %s194, 2
          %s196 = scalar_lea.vmem %s0, %s195
        $region20: #{my2dmodel_forward.1} parent=15 // pred_fallthru
          _
        // Predicated region
        $region21: #{my2dmodel_forward.1} parent=15 // pred_check
          %p197 = pneg %p60
        $region22: #{my2dmodel_forward.1} parent=15 // pred_check_branch
          %199 = sbr.rel (%p197) target = $region24
        $region23: #{my2dmodel_forward.1} parent=15 // pred_region
          %p200 = scmp.lt.s32.totalorder %s14, 2
          %s201 = scalar_select %p200, %s14, 2
          %s202 = smul.addr %s201, 80
          %s203 = smul.addr %s202, 8
          %s204 = scalar_lea.vmem %s1, %s203
        $region24: #{my2dmodel_forward.1} parent=15 // pred_fallthru
          _
        // Predicated region
        $region25: #{my2dmodel_forward.1} parent=15 // pred_check
          %p205 = pneg %p86
        $region26: #{my2dmodel_forward.1} parent=15 // pred_check_branch
          %207 = sbr.rel (%p205) target = $region28
        $region27: #{my2dmodel_forward.1} parent=15 // pred_region
          %p208 = scmp.lt.s32.totalorder %s14, 2
          %s209 = scalar_select %p208, %s14, 2
          %s210 = smul.addr %s209, 40
          %s211 = scalar_lea.vmem %s2, %s210
        $region28: #{my2dmodel_forward.1} parent=15 // pred_fallthru
          _
        // Predicated region
        $region29: #{my2dmodel_forward.1} parent=15 // pred_check
          %p212 = pneg %p112
        $region30: #{my2dmodel_forward.1} parent=15 // pred_check_branch
          %214 = sbr.rel (%p212) target = $region32
        $region31: #{my2dmodel_forward.1} parent=15 // pred_region
          %s215 = sand.u32 %s102, 1
          %s216 = scalar_lea.sflag [#allocation3], %s215
          %s217 = sand.u32 %s102, 1
          %s218 = smul.addr %s217, 320
          %s219 = scalar_lea.vmem [#allocation2], %s218
          %221 = vsyncadd %s216, 0
          %s222 = smul.addr %s14, 40
          %s223 = smul.addr %s222, 8
          %s224 = scalar_lea.hbm %s3, %s223
          %s225 = sshll.u32 %s224, 4
          %s226 = int_to_ptr.hbm [resolvable:$true] %s225
          %s227 = sshll.u32 %s219, 4
          %s228 = int_to_ptr.vmem [resolvable:$true] %s227
          %233 = dma.hbm_to_vmem [thread:$0]  %s226, 5120, %s228, %s216, 128, 128, 8
        $region32: #{my2dmodel_forward.1} parent=15 // pred_fallthru
          _
        // Predicated region
        $region33: #{my2dmodel_forward.1} parent=15 // pred_check
          %p234 = pneg %p138
        $region34: #{my2dmodel_forward.1} parent=15 // pred_check_branch
          %236 = sbr.rel (%p234) target = $region36
        $region35: #{my2dmodel_forward.1} parent=15 // pred_region
          %p237 = scmp.lt.s32.totalorder %s14, 2
          %s238 = scalar_select %p237, %s14, 2
          %s239 = scalar_lea.vmem %s4, %s238
        $region36: #{my2dmodel_forward.1} parent=15 // pred_fallthru
          _
      $region16: #{my2dmodel_forward.1} parent=5 // pred_fallthru
        _
      %p240 = scmp.le.s32.totalorder 1, %s14
      %p241 = scmp.lt.s32.totalorder %s14, 4
      %p242 = pnand %p240, %p241
      %p243 = pneg %p242
      // Predicated region
      $region37: #{my2dmodel_forward.1} parent=5 // pred_check
        _
      $region38: #{my2dmodel_forward.1} parent=5 // pred_check_branch
        %245 = sbr.rel (%p242) target = $region40
      $region39: #{my2dmodel_forward.1} parent=5 // pred_region
        %s246 = ssub.s32 %s14, 1
        %s247 = sand.u32 %s105, 1
        %s248 = scalar_lea.sflag [#allocation3], %s247
        %s249 = sand.u32 %s105, 1
        %s250 = smul.addr %s249, 320
        %s251 = scalar_lea.vmem [#allocation2], %s250
        // Predicated region
        $region41: #{my2dmodel_forward.1} parent=39 // pred_check
          %p252 = pneg %p118
        $region42: #{my2dmodel_forward.1} parent=39 // pred_check_branch
          %254 = sbr.rel (%p252) target = $region44
        $region43: #{my2dmodel_forward.1} parent=39 // pred_region
          %256 = dma.done %s248, 5120
        $region44: #{my2dmodel_forward.1} parent=39 // pred_fallthru
          _
        %p257 = scmp.lt.s32.totalorder %s19, 2
        %s258 = scalar_select %p257, %s19, 2
        %s259 = smul.addr %s258, 80
        %s260 = smul.addr %s259, 2
        %s261 = scalar_lea.vmem %s0, %s260
        %p262 = pneg %p40
        %p263 = pneg %p37
        %p264 = scmp.lt.s32.totalorder %s19, 2
        %s265 = scalar_select %p264, %s19, 2
        %s266 = smul.addr %s265, 80
        %s267 = smul.addr %s266, 8
        %s268 = scalar_lea.vmem %s1, %s267
        %p269 = pneg %p66
        %p270 = pneg %p63
        %p271 = scmp.lt.s32.totalorder %s19, 2
        %s272 = scalar_select %p271, %s19, 2
        %s273 = smul.addr %s272, 40
        %s274 = scalar_lea.vmem %s2, %s273
        %p275 = pneg %p92
        %p276 = pneg %p89
        %s277 = sand.u32 %s105, 1
        %s278 = scalar_lea.sflag [#allocation3], %s277
        %s279 = sand.u32 %s105, 1
        %s280 = smul.addr %s279, 320
        %s281 = scalar_lea.vmem [#allocation2], %s280
        %p282 = pneg %p118
        %p283 = pneg %p115
        %p284 = scmp.lt.s32.totalorder %s19, 2
        %s285 = scalar_select %p284, %s19, 2
        %s286 = scalar_lea.vmem %s4, %s285
        %p287 = pneg %p144
        %p288 = pneg %p141
        %p289 = pneg %p170
        %p290 = pneg %p167
        %p291 = scmp.lt.s32.totalorder %s19, 2
        %s292 = scalar_select %p291, %s19, 2
        %s293 = smul.addr %s292, 2
        %s294 = scalar_lea.vmem %s5, %s293
        %p295 = scmp.lt.s32.totalorder %s19, 2
        %s296 = scalar_select %p295, %s19, 2
        %s297 = smul.addr %s296, 80
        %s298 = smul.addr %s297, 2
        %s299 = scalar_lea.vmem %s0, %s298
        %p300 = scmp.lt.s32.totalorder %s19, 2
        %s301 = scalar_select %p300, %s19, 2
        %s302 = smul.addr %s301, 80
        %s303 = smul.addr %s302, 8
        %s304 = scalar_lea.vmem %s1, %s303
        %p305 = scmp.lt.s32.totalorder %s19, 2
        %s306 = scalar_select %p305, %s19, 2
        %s307 = smul.addr %s306, 40
        %s308 = scalar_lea.vmem %s2, %s307
        %p309 = scmp.lt.s32.totalorder %s19, 2
        %s310 = scalar_select %p309, %s19, 2
        %s311 = scalar_lea.vmem %s4, %s310
        %p312 = scmp.lt.s32.totalorder %s19, 2
        %s313 = scalar_select %p312, %s19, 2
        %s314 = smul.addr %s313, 2
        %s315 = scalar_lea.vmem %s5, %s314
        %v316 = vld [vmem:[%s299] sm:$0xf]
        %v317 = vld [vmem:[%s299 + $0x4] sm:$0xf]
        %v318 = vld [vmem:[%s299 + $0x8] sm:$0xf]
        %v319 = vld [vmem:[%s299 + $0xc] sm:$0xf]
        %v320 = vld [vmem:[%s299 + $0x10] sm:$0xf]
        %v321 = vld [vmem:[%s299 + $0x14] sm:$0xf]
        %v322 = vld [vmem:[%s299 + $0x18] sm:$0xf]
        %v323 = vld [vmem:[%s299 + $0x1c] sm:$0xf]
        %v324 = vld [vmem:[%s299 + $0x20] sm:$0xf]
        %v325 = vld [vmem:[%s299 + $0x24] sm:$0xf]
        %v326 = vld [vmem:[%s299 + $0x28] sm:$0xf]
        %v327 = vld [vmem:[%s299 + $0x2c] sm:$0xf]
        %v328 = vld [vmem:[%s299 + $0x30] sm:$0xf]
        %v329 = vld [vmem:[%s299 + $0x34] sm:$0xf]
        %v330 = vld [vmem:[%s299 + $0x38] sm:$0xf]
        %v331 = vld [vmem:[%s299 + $0x3c] sm:$0xf]
        %v332 = vld [vmem:[%s299 + $0x40] sm:$0xf]
        %v333 = vld [vmem:[%s299 + $0x44] sm:$0xf]
        %v334 = vld [vmem:[%s299 + $0x48] sm:$0xf]
        %v335 = vld [vmem:[%s299 + $0x4c] sm:$0xf]
        %v336 = vld [vmem:[%s299 + $0x50] sm:$0xf]
        %v337 = vld [vmem:[%s299 + $0x54] sm:$0xf]
        %v338 = vld [vmem:[%s299 + $0x58] sm:$0xf]
        %v339 = vld [vmem:[%s299 + $0x5c] sm:$0xf]
        %v340 = vld [vmem:[%s299 + $0x60] sm:$0xf]
        %v341 = vld [vmem:[%s299 + $0x64] sm:$0xf]
        %v342 = vld [vmem:[%s299 + $0x68] sm:$0xf]
        %v343 = vld [vmem:[%s299 + $0x6c] sm:$0xf]
        %v344 = vld [vmem:[%s299 + $0x70] sm:$0xf]
        %v345 = vld [vmem:[%s299 + $0x74] sm:$0xf]
        %v346 = vld [vmem:[%s299 + $0x78] sm:$0xf]
        %v347 = vld [vmem:[%s299 + $0x7c] sm:$0xf]
        %v348 = vld [vmem:[%s299 + $0x80] sm:$0xf]
        %v349 = vld [vmem:[%s299 + $0x84] sm:$0xf]
        %v350 = vld [vmem:[%s299 + $0x88] sm:$0xf]
        %v351 = vld [vmem:[%s299 + $0x8c] sm:$0xf]
        %v352 = vld [vmem:[%s299 + $0x90] sm:$0xf]
        %v353 = vld [vmem:[%s299 + $0x94] sm:$0xf]
        %v354 = vld [vmem:[%s299 + $0x98] sm:$0xf]
        %v355 = vld [vmem:[%s299 + $0x9c] sm:$0xf]
        %v356 = vld [vmem:[%s304] sm:$0xff]
        %v357 = vld [vmem:[%s304 + $0x8] sm:$0xff]
        %v358 = vld [vmem:[%s304 + $0x10] sm:$0xff]
        %v359 = vld [vmem:[%s304 + $0x18] sm:$0xff]
        %v360 = vld [vmem:[%s304 + $0x20] sm:$0xff]
        %v361 = vld [vmem:[%s304 + $0x28] sm:$0xff]
        %v362 = vld [vmem:[%s304 + $0x30] sm:$0xff]
        %v363 = vld [vmem:[%s304 + $0x38] sm:$0xff]
        %v364 = vld [vmem:[%s304 + $0x40] sm:$0xff]
        %v365 = vld [vmem:[%s304 + $0x48] sm:$0xff]
        %v366 = vld [vmem:[%s304 + $0x50] sm:$0xff]
        %v367 = vld [vmem:[%s304 + $0x58] sm:$0xff]
        %v368 = vld [vmem:[%s304 + $0x60] sm:$0xff]
        %v369 = vld [vmem:[%s304 + $0x68] sm:$0xff]
        %v370 = vld [vmem:[%s304 + $0x70] sm:$0xff]
        %v371 = vld [vmem:[%s304 + $0x78] sm:$0xff]
        %v372 = vld [vmem:[%s304 + $0x80] sm:$0xff]
        %v373 = vld [vmem:[%s304 + $0x88] sm:$0xff]
        %v374 = vld [vmem:[%s304 + $0x90] sm:$0xff]
        %v375 = vld [vmem:[%s304 + $0x98] sm:$0xff]
        %v376 = vld [vmem:[%s304 + $0xa0] sm:$0xff]
        %v377 = vld [vmem:[%s304 + $0xa8] sm:$0xff]
        %v378 = vld [vmem:[%s304 + $0xb0] sm:$0xff]
        %v379 = vld [vmem:[%s304 + $0xb8] sm:$0xff]
        %v380 = vld [vmem:[%s304 + $0xc0] sm:$0xff]
        %v381 = vld [vmem:[%s304 + $0xc8] sm:$0xff]
        %v382 = vld [vmem:[%s304 + $0xd0] sm:$0xff]
        %v383 = vld [vmem:[%s304 + $0xd8] sm:$0xff]
        %v384 = vld [vmem:[%s304 + $0xe0] sm:$0xff]
        %v385 = vld [vmem:[%s304 + $0xe8] sm:$0xff]
        %v386 = vld [vmem:[%s304 + $0xf0] sm:$0xff]
        %v387 = vld [vmem:[%s304 + $0xf8] sm:$0xff]
        %v388 = vld [vmem:[%s304 + $0x100] sm:$0xff]
        %v389 = vld [vmem:[%s304 + $0x108] sm:$0xff]
        %v390 = vld [vmem:[%s304 + $0x110] sm:$0xff]
        %v391 = vld [vmem:[%s304 + $0x118] sm:$0xff]
        %v392 = vld [vmem:[%s304 + $0x120] sm:$0xff]
        %v393 = vld [vmem:[%s304 + $0x128] sm:$0xff]
        %v394 = vld [vmem:[%s304 + $0x130] sm:$0xff]
        %v395 = vld [vmem:[%s304 + $0x138] sm:$0xff]
        %v396 = vld [vmem:[%s304 + $0x140] sm:$0xff]
        %v397 = vld [vmem:[%s304 + $0x148] sm:$0xff]
        %v398 = vld [vmem:[%s304 + $0x150] sm:$0xff]
        %v399 = vld [vmem:[%s304 + $0x158] sm:$0xff]
        %v400 = vld [vmem:[%s304 + $0x160] sm:$0xff]
        %v401 = vld [vmem:[%s304 + $0x168] sm:$0xff]
        %v402 = vld [vmem:[%s304 + $0x170] sm:$0xff]
        %v403 = vld [vmem:[%s304 + $0x178] sm:$0xff]
        %v404 = vld [vmem:[%s304 + $0x180] sm:$0xff]
        %v405 = vld [vmem:[%s304 + $0x188] sm:$0xff]
        %v406 = vld [vmem:[%s304 + $0x190] sm:$0xff]
        %v407 = vld [vmem:[%s304 + $0x198] sm:$0xff]
        %v408 = vld [vmem:[%s304 + $0x1a0] sm:$0xff]
        %v409 = vld [vmem:[%s304 + $0x1a8] sm:$0xff]
        %v410 = vld [vmem:[%s304 + $0x1b0] sm:$0xff]
        %v411 = vld [vmem:[%s304 + $0x1b8] sm:$0xff]
        %v412 = vld [vmem:[%s304 + $0x1c0] sm:$0xff]
        %v413 = vld [vmem:[%s304 + $0x1c8] sm:$0xff]
        %v414 = vld [vmem:[%s304 + $0x1d0] sm:$0xff]
        %v415 = vld [vmem:[%s304 + $0x1d8] sm:$0xff]
        %v416 = vld [vmem:[%s304 + $0x1e0] sm:$0xff]
        %v417 = vld [vmem:[%s304 + $0x1e8] sm:$0xff]
        %v418 = vld [vmem:[%s304 + $0x1f0] sm:$0xff]
        %v419 = vld [vmem:[%s304 + $0x1f8] sm:$0xff]
        %v420 = vld [vmem:[%s304 + $0x200] sm:$0xff]
        %v421 = vld [vmem:[%s304 + $0x208] sm:$0xff]
        %v422 = vld [vmem:[%s304 + $0x210] sm:$0xff]
        %v423 = vld [vmem:[%s304 + $0x218] sm:$0xff]
        %v424 = vld [vmem:[%s304 + $0x220] sm:$0xff]
        %v425 = vld [vmem:[%s304 + $0x228] sm:$0xff]
        %v426 = vld [vmem:[%s304 + $0x230] sm:$0xff]
        %v427 = vld [vmem:[%s304 + $0x238] sm:$0xff]
        %v428 = vld [vmem:[%s304 + $0x240] sm:$0xff]
        %v429 = vld [vmem:[%s304 + $0x248] sm:$0xff]
        %v430 = vld [vmem:[%s304 + $0x250] sm:$0xff]
        %v431 = vld [vmem:[%s304 + $0x258] sm:$0xff]
        %v432 = vld [vmem:[%s304 + $0x260] sm:$0xff]
        %v433 = vld [vmem:[%s304 + $0x268] sm:$0xff]
        %v434 = vld [vmem:[%s304 + $0x270] sm:$0xff]
        %v435 = vld [vmem:[%s304 + $0x278] sm:$0xff]
        %v436 = vld [vmem:[%s308] sm:$0x1]
        %v437 = vld [vmem:[%s308 + $0x1] sm:$0x1]
        %v438 = vld [vmem:[%s308 + $0x2] sm:$0x1]
        %v439 = vld [vmem:[%s308 + $0x3] sm:$0x1]
        %v440 = vld [vmem:[%s308 + $0x4] sm:$0x1]
        %v441 = vld [vmem:[%s308 + $0x5] sm:$0x1]
        %v442 = vld [vmem:[%s308 + $0x6] sm:$0x1]
        %v443 = vld [vmem:[%s308 + $0x7] sm:$0x1]
        %v444 = vld [vmem:[%s308 + $0x8] sm:$0x1]
        %v445 = vld [vmem:[%s308 + $0x9] sm:$0x1]
        %v446 = vld [vmem:[%s308 + $0xa] sm:$0x1]
        %v447 = vld [vmem:[%s308 + $0xb] sm:$0x1]
        %v448 = vld [vmem:[%s308 + $0xc] sm:$0x1]
        %v449 = vld [vmem:[%s308 + $0xd] sm:$0x1]
        %v450 = vld [vmem:[%s308 + $0xe] sm:$0x1]
        %v451 = vld [vmem:[%s308 + $0xf] sm:$0x1]
        %v452 = vld [vmem:[%s308 + $0x10] sm:$0x1]
        %v453 = vld [vmem:[%s308 + $0x11] sm:$0x1]
        %v454 = vld [vmem:[%s308 + $0x12] sm:$0x1]
        %v455 = vld [vmem:[%s308 + $0x13] sm:$0x1]
        %v456 = vld [vmem:[%s308 + $0x14] sm:$0x1]
        %v457 = vld [vmem:[%s308 + $0x15] sm:$0x1]
        %v458 = vld [vmem:[%s308 + $0x16] sm:$0x1]
        %v459 = vld [vmem:[%s308 + $0x17] sm:$0x1]
        %v460 = vld [vmem:[%s308 + $0x18] sm:$0x1]
        %v461 = vld [vmem:[%s308 + $0x19] sm:$0x1]
        %v462 = vld [vmem:[%s308 + $0x1a] sm:$0x1]
        %v463 = vld [vmem:[%s308 + $0x1b] sm:$0x1]
        %v464 = vld [vmem:[%s308 + $0x1c] sm:$0x1]
        %v465 = vld [vmem:[%s308 + $0x1d] sm:$0x1]
        %v466 = vld [vmem:[%s308 + $0x1e] sm:$0x1]
        %v467 = vld [vmem:[%s308 + $0x1f] sm:$0x1]
        %v468 = vld [vmem:[%s308 + $0x20] sm:$0x1]
        %v469 = vld [vmem:[%s308 + $0x21] sm:$0x1]
        %v470 = vld [vmem:[%s308 + $0x22] sm:$0x1]
        %v471 = vld [vmem:[%s308 + $0x23] sm:$0x1]
        %v472 = vld [vmem:[%s308 + $0x24] sm:$0x1]
        %v473 = vld [vmem:[%s308 + $0x25] sm:$0x1]
        %v474 = vld [vmem:[%s308 + $0x26] sm:$0x1]
        %v475 = vld [vmem:[%s308 + $0x27] sm:$0x1]
        %v516 = vperm.slane %v436, 0
        %v517 = vperm.slane %v437, 0
        %v518 = vperm.slane %v438, 0
        %v519 = vperm.slane %v439, 0
        %v520 = vperm.slane %v440, 0
        %v521 = vperm.slane %v441, 0
        %v522 = vperm.slane %v442, 0
        %v523 = vperm.slane %v443, 0
        %v524 = vperm.slane %v444, 0
        %v525 = vperm.slane %v445, 0
        %v526 = vperm.slane %v446, 0
        %v527 = vperm.slane %v447, 0
        %v528 = vperm.slane %v448, 0
        %v529 = vperm.slane %v449, 0
        %v530 = vperm.slane %v450, 0
        %v531 = vperm.slane %v451, 0
        %v532 = vperm.slane %v452, 0
        %v533 = vperm.slane %v453, 0
        %v534 = vperm.slane %v454, 0
        %v535 = vperm.slane %v455, 0
        %v536 = vperm.slane %v456, 0
        %v537 = vperm.slane %v457, 0
        %v538 = vperm.slane %v458, 0
        %v539 = vperm.slane %v459, 0
        %v540 = vperm.slane %v460, 0
        %v541 = vperm.slane %v461, 0
        %v542 = vperm.slane %v462, 0
        %v543 = vperm.slane %v463, 0
        %v544 = vperm.slane %v464, 0
        %v545 = vperm.slane %v465, 0
        %v546 = vperm.slane %v466, 0
        %v547 = vperm.slane %v467, 0
        %v548 = vperm.slane %v468, 0
        %v549 = vperm.slane %v469, 0
        %v550 = vperm.slane %v470, 0
        %v551 = vperm.slane %v471, 0
        %v552 = vperm.slane %v472, 0
        %v553 = vperm.slane %v473, 0
        %v554 = vperm.slane %v474, 0
        %v555 = vperm.slane %v475, 0
        %597 = vst [vmem:[#allocation1] ss:$4 sm:$0xff] %v316
        %v598 = vld.sshfl [vmem:[#allocation1] sm:$0xff pattern:$0x73625140]
        %v599 = vld.sshfl [vmem:[#allocation1 + $0x8] sm:$0xff pattern:$0x73625140]
        %602 = vmatpush.xpose.msra.mxu0 0.0
        %603 = vmatpush.xpose.msra.mxu0 0.0
        %604 = vmatpush.xpose.msra.mxu0 0.0
        %605 = vmatpush.xpose.msra.mxu0 0.0
        %606 = vmatpush.xpose.msra.mxu0 0.0
        %607 = vmatpush.xpose.msra.mxu0 0.0
        %608 = vmatpush.xpose.msra.mxu0 0.0
        %609 = vmatpush.xpose.msra.mxu0 0.0
        %610 = vmatpush.xpose.msra.mxu0 0.0
        %611 = vmatpush.xpose.msra.mxu0 0.0
        %612 = vmatpush.xpose.msra.mxu0 0.0
        %613 = vmatpush.xpose.msra.mxu0 0.0
        %614 = vmatpush.xpose.msra.mxu0 0.0
        %615 = vmatpush.xpose.msra.mxu0 0.0
        %616 = vmatpush.xpose.msra.mxu0 0.0
        %617 = vmatpush.xpose.msra.mxu0 %v356
        %618 = vmatmul.f32.gmra.mxu0 %v598
        %v619 = vpop.f32.mrf.mxu0
        %v620 = vadd.f32 %v516, %v619
        %621 = vdwg.mxu0
        %622 = vmatpush.xpose.msra.mxu0 0.0
        %623 = vmatpush.xpose.msra.mxu0 0.0
        %624 = vmatpush.xpose.msra.mxu0 0.0
        %625 = vmatpush.xpose.msra.mxu0 0.0
        %626 = vmatpush.xpose.msra.mxu0 0.0
        %627 = vmatpush.xpose.msra.mxu0 0.0
        %628 = vmatpush.xpose.msra.mxu0 0.0
        %629 = vmatpush.xpose.msra.mxu0 0.0
        %630 = vmatpush.xpose.msra.mxu0 0.0
        %631 = vmatpush.xpose.msra.mxu0 0.0
        %632 = vmatpush.xpose.msra.mxu0 0.0
        %633 = vmatpush.xpose.msra.mxu0 0.0
        %634 = vmatpush.xpose.msra.mxu0 0.0
        %635 = vmatpush.xpose.msra.mxu0 0.0
        %636 = vmatpush.xpose.msra.mxu0 0.0
        %637 = vmatpush.xpose.msra.mxu0 %v357
        %638 = vmatmul.f32.gmra.mxu0 %v599
        %v639 = vpop.f32.mrf.mxu0
        %v640 = vadd.f32 %v620, %v639
        %641 = vdwg.mxu0
        %643 = vst [vmem:[#allocation1] ss:$4 sm:$0xff] %v317
        %v644 = vld.sshfl [vmem:[#allocation1] sm:$0xff pattern:$0x73625140]
        %v645 = vld.sshfl [vmem:[#allocation1 + $0x8] sm:$0xff pattern:$0x73625140]
        %648 = vmatpush.xpose.msra.mxu0 0.0
        %649 = vmatpush.xpose.msra.mxu0 0.0
        %650 = vmatpush.xpose.msra.mxu0 0.0
        %651 = vmatpush.xpose.msra.mxu0 0.0
        %652 = vmatpush.xpose.msra.mxu0 0.0
        %653 = vmatpush.xpose.msra.mxu0 0.0
        %654 = vmatpush.xpose.msra.mxu0 0.0
        %655 = vmatpush.xpose.msra.mxu0 0.0
        %656 = vmatpush.xpose.msra.mxu0 0.0
        %657 = vmatpush.xpose.msra.mxu0 0.0
        %658 = vmatpush.xpose.msra.mxu0 0.0
        %659 = vmatpush.xpose.msra.mxu0 0.0
        %660 = vmatpush.xpose.msra.mxu0 0.0
        %661 = vmatpush.xpose.msra.mxu0 0.0
        %662 = vmatpush.xpose.msra.mxu0 0.0
        %663 = vmatpush.xpose.msra.mxu0 %v358
        %664 = vmatmul.f32.gmra.mxu0 %v644
        %v665 = vpop.f32.mrf.mxu0
        %v666 = vadd.f32 %v517, %v665
        %667 = vdwg.mxu0
        %668 = vmatpush.xpose.msra.mxu0 0.0
        %669 = vmatpush.xpose.msra.mxu0 0.0
        %670 = vmatpush.xpose.msra.mxu0 0.0
        %671 = vmatpush.xpose.msra.mxu0 0.0
        %672 = vmatpush.xpose.msra.mxu0 0.0
        %673 = vmatpush.xpose.msra.mxu0 0.0
        %674 = vmatpush.xpose.msra.mxu0 0.0
        %675 = vmatpush.xpose.msra.mxu0 0.0
        %676 = vmatpush.xpose.msra.mxu0 0.0
        %677 = vmatpush.xpose.msra.mxu0 0.0
        %678 = vmatpush.xpose.msra.mxu0 0.0
        %679 = vmatpush.xpose.msra.mxu0 0.0
        %680 = vmatpush.xpose.msra.mxu0 0.0
        %681 = vmatpush.xpose.msra.mxu0 0.0
        %682 = vmatpush.xpose.msra.mxu0 0.0
        %683 = vmatpush.xpose.msra.mxu0 %v359
        %684 = vmatmul.f32.gmra.mxu0 %v645
        %v685 = vpop.f32.mrf.mxu0
        %v686 = vadd.f32 %v666, %v685
        %687 = vdwg.mxu0
        %689 = vst [vmem:[#allocation1] ss:$4 sm:$0xff] %v318
        %v690 = vld.sshfl [vmem:[#allocation1] sm:$0xff pattern:$0x73625140]
        %v691 = vld.sshfl [vmem:[#allocation1 + $0x8] sm:$0xff pattern:$0x73625140]
        %694 = vmatpush.xpose.msra.mxu0 0.0
        %695 = vmatpush.xpose.msra.mxu0 0.0
        %696 = vmatpush.xpose.msra.mxu0 0.0
        %697 = vmatpush.xpose.msra.mxu0 0.0
        %698 = vmatpush.xpose.msra.mxu0 0.0
        %699 = vmatpush.xpose.msra.mxu0 0.0
        %700 = vmatpush.xpose.msra.mxu0 0.0
        %701 = vmatpush.xpose.msra.mxu0 0.0
        %702 = vmatpush.xpose.msra.mxu0 0.0
        %703 = vmatpush.xpose.msra.mxu0 0.0
        %704 = vmatpush.xpose.msra.mxu0 0.0
        %705 = vmatpush.xpose.msra.mxu0 0.0
        %706 = vmatpush.xpose.msra.mxu0 0.0
        %707 = vmatpush.xpose.msra.mxu0 0.0
        %708 = vmatpush.xpose.msra.mxu0 0.0
        %709 = vmatpush.xpose.msra.mxu0 %v360
        %710 = vmatmul.f32.gmra.mxu0 %v690
        %v711 = vpop.f32.mrf.mxu0
        %v712 = vadd.f32 %v518, %v711
        %713 = vdwg.mxu0
        %714 = vmatpush.xpose.msra.mxu0 0.0
        %715 = vmatpush.xpose.msra.mxu0 0.0
        %716 = vmatpush.xpose.msra.mxu0 0.0
        %717 = vmatpush.xpose.msra.mxu0 0.0
        %718 = vmatpush.xpose.msra.mxu0 0.0
        %719 = vmatpush.xpose.msra.mxu0 0.0
        %720 = vmatpush.xpose.msra.mxu0 0.0
        %721 = vmatpush.xpose.msra.mxu0 0.0
        %722 = vmatpush.xpose.msra.mxu0 0.0
        %723 = vmatpush.xpose.msra.mxu0 0.0
        %724 = vmatpush.xpose.msra.mxu0 0.0
        %725 = vmatpush.xpose.msra.mxu0 0.0
        %726 = vmatpush.xpose.msra.mxu0 0.0
        %727 = vmatpush.xpose.msra.mxu0 0.0
        %728 = vmatpush.xpose.msra.mxu0 0.0
        %729 = vmatpush.xpose.msra.mxu0 %v361
        %730 = vmatmul.f32.gmra.mxu0 %v691
        %v731 = vpop.f32.mrf.mxu0
        %v732 = vadd.f32 %v712, %v731
        %733 = vdwg.mxu0
        %735 = vst [vmem:[#allocation1] ss:$4 sm:$0xff] %v319
        %v736 = vld.sshfl [vmem:[#allocation1] sm:$0xff pattern:$0x73625140]
        %v737 = vld.sshfl [vmem:[#allocation1 + $0x8] sm:$0xff pattern:$0x73625140]
        %740 = vmatpush.xpose.msra.mxu0 0.0
        %741 = vmatpush.xpose.msra.mxu0 0.0
        %742 = vmatpush.xpose.msra.mxu0 0.0
        %743 = vmatpush.xpose.msra.mxu0 0.0
        %744 = vmatpush.xpose.msra.mxu0 0.0
        %745 = vmatpush.xpose.msra.mxu0 0.0
        %746 = vmatpush.xpose.msra.mxu0 0.0
        %747 = vmatpush.xpose.msra.mxu0 0.0
        %748 = vmatpush.xpose.msra.mxu0 0.0
        %749 = vmatpush.xpose.msra.mxu0 0.0
        %750 = vmatpush.xpose.msra.mxu0 0.0
        %751 = vmatpush.xpose.msra.mxu0 0.0
        %752 = vmatpush.xpose.msra.mxu0 0.0
        %753 = vmatpush.xpose.msra.mxu0 0.0
        %754 = vmatpush.xpose.msra.mxu0 0.0
        %755 = vmatpush.xpose.msra.mxu0 %v362
        %756 = vmatmul.f32.gmra.mxu0 %v736
        %v757 = vpop.f32.mrf.mxu0
        %v758 = vadd.f32 %v519, %v757
        %759 = vdwg.mxu0
        %760 = vmatpush.xpose.msra.mxu0 0.0
        %761 = vmatpush.xpose.msra.mxu0 0.0
        %762 = vmatpush.xpose.msra.mxu0 0.0
        %763 = vmatpush.xpose.msra.mxu0 0.0
        %764 = vmatpush.xpose.msra.mxu0 0.0
        %765 = vmatpush.xpose.msra.mxu0 0.0
        %766 = vmatpush.xpose.msra.mxu0 0.0
        %767 = vmatpush.xpose.msra.mxu0 0.0
        %768 = vmatpush.xpose.msra.mxu0 0.0
        %769 = vmatpush.xpose.msra.mxu0 0.0
        %770 = vmatpush.xpose.msra.mxu0 0.0
        %771 = vmatpush.xpose.msra.mxu0 0.0
        %772 = vmatpush.xpose.msra.mxu0 0.0
        %773 = vmatpush.xpose.msra.mxu0 0.0
        %774 = vmatpush.xpose.msra.mxu0 0.0
        %775 = vmatpush.xpose.msra.mxu0 %v363
        %776 = vmatmul.f32.gmra.mxu0 %v737
        %v777 = vpop.f32.mrf.mxu0
        %v778 = vadd.f32 %v758, %v777
        %779 = vdwg.mxu0
        %781 = vst [vmem:[#allocation1] ss:$4 sm:$0xff] %v320
        %v782 = vld.sshfl [vmem:[#allocation1] sm:$0xff pattern:$0x73625140]
        %v783 = vld.sshfl [vmem:[#allocation1 + $0x8] sm:$0xff pattern:$0x73625140]
        %786 = vmatpush.xpose.msra.mxu0 0.0
        %787 = vmatpush.xpose.msra.mxu0 0.0
        %788 = vmatpush.xpose.msra.mxu0 0.0
        %789 = vmatpush.xpose.msra.mxu0 0.0
        %790 = vmatpush.xpose.msra.mxu0 0.0
        %791 = vmatpush.xpose.msra.mxu0 0.0
        %792 = vmatpush.xpose.msra.mxu0 0.0
        %793 = vmatpush.xpose.msra.mxu0 0.0
        %794 = vmatpush.xpose.msra.mxu0 0.0
        %795 = vmatpush.xpose.msra.mxu0 0.0
        %796 = vmatpush.xpose.msra.mxu0 0.0
        %797 = vmatpush.xpose.msra.mxu0 0.0
        %798 = vmatpush.xpose.msra.mxu0 0.0
        %799 = vmatpush.xpose.msra.mxu0 0.0
        %800 = vmatpush.xpose.msra.mxu0 0.0
        %801 = vmatpush.xpose.msra.mxu0 %v364
        %802 = vmatmul.f32.gmra.mxu0 %v782
        %v803 = vpop.f32.mrf.mxu0
        %v804 = vadd.f32 %v520, %v803
        %805 = vdwg.mxu0
        %806 = vmatpush.xpose.msra.mxu0 0.0
        %807 = vmatpush.xpose.msra.mxu0 0.0
        %808 = vmatpush.xpose.msra.mxu0 0.0
        %809 = vmatpush.xpose.msra.mxu0 0.0
        %810 = vmatpush.xpose.msra.mxu0 0.0
        %811 = vmatpush.xpose.msra.mxu0 0.0
        %812 = vmatpush.xpose.msra.mxu0 0.0
        %813 = vmatpush.xpose.msra.mxu0 0.0
        %814 = vmatpush.xpose.msra.mxu0 0.0
        %815 = vmatpush.xpose.msra.mxu0 0.0
        %816 = vmatpush.xpose.msra.mxu0 0.0
        %817 = vmatpush.xpose.msra.mxu0 0.0
        %818 = vmatpush.xpose.msra.mxu0 0.0
        %819 = vmatpush.xpose.msra.mxu0 0.0
        %820 = vmatpush.xpose.msra.mxu0 0.0
        %821 = vmatpush.xpose.msra.mxu0 %v365
        %822 = vmatmul.f32.gmra.mxu0 %v783
        %v823 = vpop.f32.mrf.mxu0
        %v824 = vadd.f32 %v804, %v823
        %825 = vdwg.mxu0
        %827 = vst [vmem:[#allocation1] ss:$4 sm:$0xff] %v321
        %v828 = vld.sshfl [vmem:[#allocation1] sm:$0xff pattern:$0x73625140]
        %v829 = vld.sshfl [vmem:[#allocation1 + $0x8] sm:$0xff pattern:$0x73625140]
        %832 = vmatpush.xpose.msra.mxu0 0.0
        %833 = vmatpush.xpose.msra.mxu0 0.0
        %834 = vmatpush.xpose.msra.mxu0 0.0
        %835 = vmatpush.xpose.msra.mxu0 0.0
        %836 = vmatpush.xpose.msra.mxu0 0.0
        %837 = vmatpush.xpose.msra.mxu0 0.0
        %838 = vmatpush.xpose.msra.mxu0 0.0
        %839 = vmatpush.xpose.msra.mxu0 0.0
        %840 = vmatpush.xpose.msra.mxu0 0.0
        %841 = vmatpush.xpose.msra.mxu0 0.0
        %842 = vmatpush.xpose.msra.mxu0 0.0
        %843 = vmatpush.xpose.msra.mxu0 0.0
        %844 = vmatpush.xpose.msra.mxu0 0.0
        %845 = vmatpush.xpose.msra.mxu0 0.0
        %846 = vmatpush.xpose.msra.mxu0 0.0
        %847 = vmatpush.xpose.msra.mxu0 %v366
        %848 = vmatmul.f32.gmra.mxu0 %v828
        %v849 = vpop.f32.mrf.mxu0
        %v850 = vadd.f32 %v521, %v849
        %851 = vdwg.mxu0
        %852 = vmatpush.xpose.msra.mxu0 0.0
        %853 = vmatpush.xpose.msra.mxu0 0.0
        %854 = vmatpush.xpose.msra.mxu0 0.0
        %855 = vmatpush.xpose.msra.mxu0 0.0
        %856 = vmatpush.xpose.msra.mxu0 0.0
        %857 = vmatpush.xpose.msra.mxu0 0.0
        %858 = vmatpush.xpose.msra.mxu0 0.0
        %859 = vmatpush.xpose.msra.mxu0 0.0
        %860 = vmatpush.xpose.msra.mxu0 0.0
        %861 = vmatpush.xpose.msra.mxu0 0.0
        %862 = vmatpush.xpose.msra.mxu0 0.0
        %863 = vmatpush.xpose.msra.mxu0 0.0
        %864 = vmatpush.xpose.msra.mxu0 0.0
        %865 = vmatpush.xpose.msra.mxu0 0.0
        %866 = vmatpush.xpose.msra.mxu0 0.0
        %867 = vmatpush.xpose.msra.mxu0 %v367
        %868 = vmatmul.f32.gmra.mxu0 %v829
        %v869 = vpop.f32.mrf.mxu0
        %v870 = vadd.f32 %v850, %v869
        %871 = vdwg.mxu0
        %873 = vst [vmem:[#allocation1] ss:$4 sm:$0xff] %v322
        %v874 = vld.sshfl [vmem:[#allocation1] sm:$0xff pattern:$0x73625140]
        %v875 = vld.sshfl [vmem:[#allocation1 + $0x8] sm:$0xff pattern:$0x73625140]
        %878 = vmatpush.xpose.msra.mxu0 0.0
        %879 = vmatpush.xpose.msra.mxu0 0.0
        %880 = vmatpush.xpose.msra.mxu0 0.0
        %881 = vmatpush.xpose.msra.mxu0 0.0
        %882 = vmatpush.xpose.msra.mxu0 0.0
        %883 = vmatpush.xpose.msra.mxu0 0.0
        %884 = vmatpush.xpose.msra.mxu0 0.0
        %885 = vmatpush.xpose.msra.mxu0 0.0
        %886 = vmatpush.xpose.msra.mxu0 0.0
        %887 = vmatpush.xpose.msra.mxu0 0.0
        %888 = vmatpush.xpose.msra.mxu0 0.0
        %889 = vmatpush.xpose.msra.mxu0 0.0
        %890 = vmatpush.xpose.msra.mxu0 0.0
        %891 = vmatpush.xpose.msra.mxu0 0.0
        %892 = vmatpush.xpose.msra.mxu0 0.0
        %893 = vmatpush.xpose.msra.mxu0 %v368
        %894 = vmatmul.f32.gmra.mxu0 %v874
        %v895 = vpop.f32.mrf.mxu0
        %v896 = vadd.f32 %v522, %v895
        %897 = vdwg.mxu0
        %898 = vmatpush.xpose.msra.mxu0 0.0
        %899 = vmatpush.xpose.msra.mxu0 0.0
        %900 = vmatpush.xpose.msra.mxu0 0.0
        %901 = vmatpush.xpose.msra.mxu0 0.0
        %902 = vmatpush.xpose.msra.mxu0 0.0
        %903 = vmatpush.xpose.msra.mxu0 0.0
        %904 = vmatpush.xpose.msra.mxu0 0.0
        %905 = vmatpush.xpose.msra.mxu0 0.0
        %906 = vmatpush.xpose.msra.mxu0 0.0
        %907 = vmatpush.xpose.msra.mxu0 0.0
        %908 = vmatpush.xpose.msra.mxu0 0.0
        %909 = vmatpush.xpose.msra.mxu0 0.0
        %910 = vmatpush.xpose.msra.mxu0 0.0
        %911 = vmatpush.xpose.msra.mxu0 0.0
        %912 = vmatpush.xpose.msra.mxu0 0.0
        %913 = vmatpush.xpose.msra.mxu0 %v369
        %914 = vmatmul.f32.gmra.mxu0 %v875
        %v915 = vpop.f32.mrf.mxu0
        %v916 = vadd.f32 %v896, %v915
        %917 = vdwg.mxu0
        %919 = vst [vmem:[#allocation1] ss:$4 sm:$0xff] %v323
        %v920 = vld.sshfl [vmem:[#allocation1] sm:$0xff pattern:$0x73625140]
        %v921 = vld.sshfl [vmem:[#allocation1 + $0x8] sm:$0xff pattern:$0x73625140]
        %924 = vmatpush.xpose.msra.mxu0 0.0
        %925 = vmatpush.xpose.msra.mxu0 0.0
        %926 = vmatpush.xpose.msra.mxu0 0.0
        %927 = vmatpush.xpose.msra.mxu0 0.0
        %928 = vmatpush.xpose.msra.mxu0 0.0
        %929 = vmatpush.xpose.msra.mxu0 0.0
        %930 = vmatpush.xpose.msra.mxu0 0.0
        %931 = vmatpush.xpose.msra.mxu0 0.0
        %932 = vmatpush.xpose.msra.mxu0 0.0
        %933 = vmatpush.xpose.msra.mxu0 0.0
        %934 = vmatpush.xpose.msra.mxu0 0.0
        %935 = vmatpush.xpose.msra.mxu0 0.0
        %936 = vmatpush.xpose.msra.mxu0 0.0
        %937 = vmatpush.xpose.msra.mxu0 0.0
        %938 = vmatpush.xpose.msra.mxu0 0.0
        %939 = vmatpush.xpose.msra.mxu0 %v370
        %940 = vmatmul.f32.gmra.mxu0 %v920
        %v941 = vpop.f32.mrf.mxu0
        %v942 = vadd.f32 %v523, %v941
        %943 = vdwg.mxu0
        %944 = vmatpush.xpose.msra.mxu0 0.0
        %945 = vmatpush.xpose.msra.mxu0 0.0
        %946 = vmatpush.xpose.msra.mxu0 0.0
        %947 = vmatpush.xpose.msra.mxu0 0.0
        %948 = vmatpush.xpose.msra.mxu0 0.0
        %949 = vmatpush.xpose.msra.mxu0 0.0
        %950 = vmatpush.xpose.msra.mxu0 0.0
        %951 = vmatpush.xpose.msra.mxu0 0.0
        %952 = vmatpush.xpose.msra.mxu0 0.0
        %953 = vmatpush.xpose.msra.mxu0 0.0
        %954 = vmatpush.xpose.msra.mxu0 0.0
        %955 = vmatpush.xpose.msra.mxu0 0.0
        %956 = vmatpush.xpose.msra.mxu0 0.0
        %957 = vmatpush.xpose.msra.mxu0 0.0
        %958 = vmatpush.xpose.msra.mxu0 0.0
        %959 = vmatpush.xpose.msra.mxu0 %v371
        %960 = vmatmul.f32.gmra.mxu0 %v921
        %v961 = vpop.f32.mrf.mxu0
        %v962 = vadd.f32 %v942, %v961
        %963 = vdwg.mxu0
        %965 = vst [vmem:[#allocation1] ss:$4 sm:$0xff] %v324
        %v966 = vld.sshfl [vmem:[#allocation1] sm:$0xff pattern:$0x73625140]
        %v967 = vld.sshfl [vmem:[#allocation1 + $0x8] sm:$0xff pattern:$0x73625140]
        %970 = vmatpush.xpose.msra.mxu0 0.0
        %971 = vmatpush.xpose.msra.mxu0 0.0
        %972 = vmatpush.xpose.msra.mxu0 0.0
        %973 = vmatpush.xpose.msra.mxu0 0.0
        %974 = vmatpush.xpose.msra.mxu0 0.0
        %975 = vmatpush.xpose.msra.mxu0 0.0
        %976 = vmatpush.xpose.msra.mxu0 0.0
        %977 = vmatpush.xpose.msra.mxu0 0.0
        %978 = vmatpush.xpose.msra.mxu0 0.0
        %979 = vmatpush.xpose.msra.mxu0 0.0
        %980 = vmatpush.xpose.msra.mxu0 0.0
        %981 = vmatpush.xpose.msra.mxu0 0.0
        %982 = vmatpush.xpose.msra.mxu0 0.0
        %983 = vmatpush.xpose.msra.mxu0 0.0
        %984 = vmatpush.xpose.msra.mxu0 0.0
        %985 = vmatpush.xpose.msra.mxu0 %v372
        %986 = vmatmul.f32.gmra.mxu0 %v966
        %v987 = vpop.f32.mrf.mxu0
        %v988 = vadd.f32 %v524, %v987
        %989 = vdwg.mxu0
        %990 = vmatpush.xpose.msra.mxu0 0.0
        %991 = vmatpush.xpose.msra.mxu0 0.0
        %992 = vmatpush.xpose.msra.mxu0 0.0
        %993 = vmatpush.xpose.msra.mxu0 0.0
        %994 = vmatpush.xpose.msra.mxu0 0.0
        %995 = vmatpush.xpose.msra.mxu0 0.0
        %996 = vmatpush.xpose.msra.mxu0 0.0
        %997 = vmatpush.xpose.msra.mxu0 0.0
        %998 = vmatpush.xpose.msra.mxu0 0.0
        %999 = vmatpush.xpose.msra.mxu0 0.0
        %1000 = vmatpush.xpose.msra.mxu0 0.0
        %1001 = vmatpush.xpose.msra.mxu0 0.0
        %1002 = vmatpush.xpose.msra.mxu0 0.0
        %1003 = vmatpush.xpose.msra.mxu0 0.0
        %1004 = vmatpush.xpose.msra.mxu0 0.0
        %1005 = vmatpush.xpose.msra.mxu0 %v373
        %1006 = vmatmul.f32.gmra.mxu0 %v967
        %v1007 = vpop.f32.mrf.mxu0
        %v1008 = vadd.f32 %v988, %v1007
        %1009 = vdwg.mxu0
        %1011 = vst [vmem:[#allocation1] ss:$4 sm:$0xff] %v325
        %v1012 = vld.sshfl [vmem:[#allocation1] sm:$0xff pattern:$0x73625140]
        %v1013 = vld.sshfl [vmem:[#allocation1 + $0x8] sm:$0xff pattern:$0x73625140]
        %1016 = vmatpush.xpose.msra.mxu0 0.0
        %1017 = vmatpush.xpose.msra.mxu0 0.0
        %1018 = vmatpush.xpose.msra.mxu0 0.0
        %1019 = vmatpush.xpose.msra.mxu0 0.0
        %1020 = vmatpush.xpose.msra.mxu0 0.0
        %1021 = vmatpush.xpose.msra.mxu0 0.0
        %1022 = vmatpush.xpose.msra.mxu0 0.0
        %1023 = vmatpush.xpose.msra.mxu0 0.0
        %1024 = vmatpush.xpose.msra.mxu0 0.0
        %1025 = vmatpush.xpose.msra.mxu0 0.0
        %1026 = vmatpush.xpose.msra.mxu0 0.0
        %1027 = vmatpush.xpose.msra.mxu0 0.0
        %1028 = vmatpush.xpose.msra.mxu0 0.0
        %1029 = vmatpush.xpose.msra.mxu0 0.0
        %1030 = vmatpush.xpose.msra.mxu0 0.0
        %1031 = vmatpush.xpose.msra.mxu0 %v374
        %1032 = vmatmul.f32.gmra.mxu0 %v1012
        %v1033 = vpop.f32.mrf.mxu0
        %v1034 = vadd.f32 %v525, %v1033
        %1035 = vdwg.mxu0
        %1036 = vmatpush.xpose.msra.mxu0 0.0
        %1037 = vmatpush.xpose.msra.mxu0 0.0
        %1038 = vmatpush.xpose.msra.mxu0 0.0
        %1039 = vmatpush.xpose.msra.mxu0 0.0
        %1040 = vmatpush.xpose.msra.mxu0 0.0
        %1041 = vmatpush.xpose.msra.mxu0 0.0
        %1042 = vmatpush.xpose.msra.mxu0 0.0
        %1043 = vmatpush.xpose.msra.mxu0 0.0
        %1044 = vmatpush.xpose.msra.mxu0 0.0
        %1045 = vmatpush.xpose.msra.mxu0 0.0
        %1046 = vmatpush.xpose.msra.mxu0 0.0
        %1047 = vmatpush.xpose.msra.mxu0 0.0
        %1048 = vmatpush.xpose.msra.mxu0 0.0
        %1049 = vmatpush.xpose.msra.mxu0 0.0
        %1050 = vmatpush.xpose.msra.mxu0 0.0
        %1051 = vmatpush.xpose.msra.mxu0 %v375
        %1052 = vmatmul.f32.gmra.mxu0 %v1013
        %v1053 = vpop.f32.mrf.mxu0
        %v1054 = vadd.f32 %v1034, %v1053
        %1055 = vdwg.mxu0
        %1057 = vst [vmem:[#allocation1] ss:$4 sm:$0xff] %v326
        %v1058 = vld.sshfl [vmem:[#allocation1] sm:$0xff pattern:$0x73625140]
        %v1059 = vld.sshfl [vmem:[#allocation1 + $0x8] sm:$0xff pattern:$0x73625140]
        %1062 = vmatpush.xpose.msra.mxu0 0.0
        %1063 = vmatpush.xpose.msra.mxu0 0.0
        %1064 = vmatpush.xpose.msra.mxu0 0.0
        %1065 = vmatpush.xpose.msra.mxu0 0.0
        %1066 = vmatpush.xpose.msra.mxu0 0.0
        %1067 = vmatpush.xpose.msra.mxu0 0.0
        %1068 = vmatpush.xpose.msra.mxu0 0.0
        %1069 = vmatpush.xpose.msra.mxu0 0.0
        %1070 = vmatpush.xpose.msra.mxu0 0.0
        %1071 = vmatpush.xpose.msra.mxu0 0.0
        %1072 = vmatpush.xpose.msra.mxu0 0.0
        %1073 = vmatpush.xpose.msra.mxu0 0.0
        %1074 = vmatpush.xpose.msra.mxu0 0.0
        %1075 = vmatpush.xpose.msra.mxu0 0.0
        %1076 = vmatpush.xpose.msra.mxu0 0.0
        %1077 = vmatpush.xpose.msra.mxu0 %v376
        %1078 = vmatmul.f32.gmra.mxu0 %v1058
        %v1079 = vpop.f32.mrf.mxu0
        %v1080 = vadd.f32 %v526, %v1079
        %1081 = vdwg.mxu0
        %1082 = vmatpush.xpose.msra.mxu0 0.0
        %1083 = vmatpush.xpose.msra.mxu0 0.0
        %1084 = vmatpush.xpose.msra.mxu0 0.0
        %1085 = vmatpush.xpose.msra.mxu0 0.0
        %1086 = vmatpush.xpose.msra.mxu0 0.0
        %1087 = vmatpush.xpose.msra.mxu0 0.0
        %1088 = vmatpush.xpose.msra.mxu0 0.0
        %1089 = vmatpush.xpose.msra.mxu0 0.0
        %1090 = vmatpush.xpose.msra.mxu0 0.0
        %1091 = vmatpush.xpose.msra.mxu0 0.0
        %1092 = vmatpush.xpose.msra.mxu0 0.0
        %1093 = vmatpush.xpose.msra.mxu0 0.0
        %1094 = vmatpush.xpose.msra.mxu0 0.0
        %1095 = vmatpush.xpose.msra.mxu0 0.0
        %1096 = vmatpush.xpose.msra.mxu0 0.0
        %1097 = vmatpush.xpose.msra.mxu0 %v377
        %1098 = vmatmul.f32.gmra.mxu0 %v1059
        %v1099 = vpop.f32.mrf.mxu0
        %v1100 = vadd.f32 %v1080, %v1099
        %1101 = vdwg.mxu0
        %1103 = vst [vmem:[#allocation1] ss:$4 sm:$0xff] %v327
        %v1104 = vld.sshfl [vmem:[#allocation1] sm:$0xff pattern:$0x73625140]
        %v1105 = vld.sshfl [vmem:[#allocation1 + $0x8] sm:$0xff pattern:$0x73625140]
        %1108 = vmatpush.xpose.msra.mxu0 0.0
        %1109 = vmatpush.xpose.msra.mxu0 0.0
        %1110 = vmatpush.xpose.msra.mxu0 0.0
        %1111 = vmatpush.xpose.msra.mxu0 0.0
        %1112 = vmatpush.xpose.msra.mxu0 0.0
        %1113 = vmatpush.xpose.msra.mxu0 0.0
        %1114 = vmatpush.xpose.msra.mxu0 0.0
        %1115 = vmatpush.xpose.msra.mxu0 0.0
        %1116 = vmatpush.xpose.msra.mxu0 0.0
        %1117 = vmatpush.xpose.msra.mxu0 0.0
        %1118 = vmatpush.xpose.msra.mxu0 0.0
        %1119 = vmatpush.xpose.msra.mxu0 0.0
        %1120 = vmatpush.xpose.msra.mxu0 0.0
        %1121 = vmatpush.xpose.msra.mxu0 0.0
        %1122 = vmatpush.xpose.msra.mxu0 0.0
        %1123 = vmatpush.xpose.msra.mxu0 %v378
        %1124 = vmatmul.f32.gmra.mxu0 %v1104
        %v1125 = vpop.f32.mrf.mxu0
        %v1126 = vadd.f32 %v527, %v1125
        %1127 = vdwg.mxu0
        %1128 = vmatpush.xpose.msra.mxu0 0.0
        %1129 = vmatpush.xpose.msra.mxu0 0.0
        %1130 = vmatpush.xpose.msra.mxu0 0.0
        %1131 = vmatpush.xpose.msra.mxu0 0.0
        %1132 = vmatpush.xpose.msra.mxu0 0.0
        %1133 = vmatpush.xpose.msra.mxu0 0.0
        %1134 = vmatpush.xpose.msra.mxu0 0.0
        %1135 = vmatpush.xpose.msra.mxu0 0.0
        %1136 = vmatpush.xpose.msra.mxu0 0.0
        %1137 = vmatpush.xpose.msra.mxu0 0.0
        %1138 = vmatpush.xpose.msra.mxu0 0.0
        %1139 = vmatpush.xpose.msra.mxu0 0.0
        %1140 = vmatpush.xpose.msra.mxu0 0.0
        %1141 = vmatpush.xpose.msra.mxu0 0.0
        %1142 = vmatpush.xpose.msra.mxu0 0.0
        %1143 = vmatpush.xpose.msra.mxu0 %v379
        %1144 = vmatmul.f32.gmra.mxu0 %v1105
        %v1145 = vpop.f32.mrf.mxu0
        %v1146 = vadd.f32 %v1126, %v1145
        %1147 = vdwg.mxu0
        %1149 = vst [vmem:[#allocation1] ss:$4 sm:$0xff] %v328
        %v1150 = vld.sshfl [vmem:[#allocation1] sm:$0xff pattern:$0x73625140]
        %v1151 = vld.sshfl [vmem:[#allocation1 + $0x8] sm:$0xff pattern:$0x73625140]
        %1154 = vmatpush.xpose.msra.mxu0 0.0
        %1155 = vmatpush.xpose.msra.mxu0 0.0
        %1156 = vmatpush.xpose.msra.mxu0 0.0
        %1157 = vmatpush.xpose.msra.mxu0 0.0
        %1158 = vmatpush.xpose.msra.mxu0 0.0
        %1159 = vmatpush.xpose.msra.mxu0 0.0
        %1160 = vmatpush.xpose.msra.mxu0 0.0
        %1161 = vmatpush.xpose.msra.mxu0 0.0
        %1162 = vmatpush.xpose.msra.mxu0 0.0
        %1163 = vmatpush.xpose.msra.mxu0 0.0
        %1164 = vmatpush.xpose.msra.mxu0 0.0
        %1165 = vmatpush.xpose.msra.mxu0 0.0
        %1166 = vmatpush.xpose.msra.mxu0 0.0
        %1167 = vmatpush.xpose.msra.mxu0 0.0
        %1168 = vmatpush.xpose.msra.mxu0 0.0
        %1169 = vmatpush.xpose.msra.mxu0 %v380
        %1170 = vmatmul.f32.gmra.mxu0 %v1150
        %v1171 = vpop.f32.mrf.mxu0
        %v1172 = vadd.f32 %v528, %v1171
        %1173 = vdwg.mxu0
        %1174 = vmatpush.xpose.msra.mxu0 0.0
        %1175 = vmatpush.xpose.msra.mxu0 0.0
        %1176 = vmatpush.xpose.msra.mxu0 0.0
        %1177 = vmatpush.xpose.msra.mxu0 0.0
        %1178 = vmatpush.xpose.msra.mxu0 0.0
        %1179 = vmatpush.xpose.msra.mxu0 0.0
        %1180 = vmatpush.xpose.msra.mxu0 0.0
        %1181 = vmatpush.xpose.msra.mxu0 0.0
        %1182 = vmatpush.xpose.msra.mxu0 0.0
        %1183 = vmatpush.xpose.msra.mxu0 0.0
        %1184 = vmatpush.xpose.msra.mxu0 0.0
        %1185 = vmatpush.xpose.msra.mxu0 0.0
        %1186 = vmatpush.xpose.msra.mxu0 0.0
        %1187 = vmatpush.xpose.msra.mxu0 0.0
        %1188 = vmatpush.xpose.msra.mxu0 0.0
        %1189 = vmatpush.xpose.msra.mxu0 %v381
        %1190 = vmatmul.f32.gmra.mxu0 %v1151
        %v1191 = vpop.f32.mrf.mxu0
        %v1192 = vadd.f32 %v1172, %v1191
        %1193 = vdwg.mxu0
        %1195 = vst [vmem:[#allocation1] ss:$4 sm:$0xff] %v329
        %v1196 = vld.sshfl [vmem:[#allocation1] sm:$0xff pattern:$0x73625140]
        %v1197 = vld.sshfl [vmem:[#allocation1 + $0x8] sm:$0xff pattern:$0x73625140]
        %1200 = vmatpush.xpose.msra.mxu0 0.0
        %1201 = vmatpush.xpose.msra.mxu0 0.0
        %1202 = vmatpush.xpose.msra.mxu0 0.0
        %1203 = vmatpush.xpose.msra.mxu0 0.0
        %1204 = vmatpush.xpose.msra.mxu0 0.0
        %1205 = vmatpush.xpose.msra.mxu0 0.0
        %1206 = vmatpush.xpose.msra.mxu0 0.0
        %1207 = vmatpush.xpose.msra.mxu0 0.0
        %1208 = vmatpush.xpose.msra.mxu0 0.0
        %1209 = vmatpush.xpose.msra.mxu0 0.0
        %1210 = vmatpush.xpose.msra.mxu0 0.0
        %1211 = vmatpush.xpose.msra.mxu0 0.0
        %1212 = vmatpush.xpose.msra.mxu0 0.0
        %1213 = vmatpush.xpose.msra.mxu0 0.0
        %1214 = vmatpush.xpose.msra.mxu0 0.0
        %1215 = vmatpush.xpose.msra.mxu0 %v382
        %1216 = vmatmul.f32.gmra.mxu0 %v1196
        %v1217 = vpop.f32.mrf.mxu0
        %v1218 = vadd.f32 %v529, %v1217
        %1219 = vdwg.mxu0
        %1220 = vmatpush.xpose.msra.mxu0 0.0
        %1221 = vmatpush.xpose.msra.mxu0 0.0
        %1222 = vmatpush.xpose.msra.mxu0 0.0
        %1223 = vmatpush.xpose.msra.mxu0 0.0
        %1224 = vmatpush.xpose.msra.mxu0 0.0
        %1225 = vmatpush.xpose.msra.mxu0 0.0
        %1226 = vmatpush.xpose.msra.mxu0 0.0
        %1227 = vmatpush.xpose.msra.mxu0 0.0
        %1228 = vmatpush.xpose.msra.mxu0 0.0
        %1229 = vmatpush.xpose.msra.mxu0 0.0
        %1230 = vmatpush.xpose.msra.mxu0 0.0
        %1231 = vmatpush.xpose.msra.mxu0 0.0
        %1232 = vmatpush.xpose.msra.mxu0 0.0
        %1233 = vmatpush.xpose.msra.mxu0 0.0
        %1234 = vmatpush.xpose.msra.mxu0 0.0
        %1235 = vmatpush.xpose.msra.mxu0 %v383
        %1236 = vmatmul.f32.gmra.mxu0 %v1197
        %v1237 = vpop.f32.mrf.mxu0
        %v1238 = vadd.f32 %v1218, %v1237
        %1239 = vdwg.mxu0
        %1241 = vst [vmem:[#allocation1] ss:$4 sm:$0xff] %v330
        %v1242 = vld.sshfl [vmem:[#allocation1] sm:$0xff pattern:$0x73625140]
        %v1243 = vld.sshfl [vmem:[#allocation1 + $0x8] sm:$0xff pattern:$0x73625140]
        %1246 = vmatpush.xpose.msra.mxu0 0.0
        %1247 = vmatpush.xpose.msra.mxu0 0.0
        %1248 = vmatpush.xpose.msra.mxu0 0.0
        %1249 = vmatpush.xpose.msra.mxu0 0.0
        %1250 = vmatpush.xpose.msra.mxu0 0.0
        %1251 = vmatpush.xpose.msra.mxu0 0.0
        %1252 = vmatpush.xpose.msra.mxu0 0.0
        %1253 = vmatpush.xpose.msra.mxu0 0.0
        %1254 = vmatpush.xpose.msra.mxu0 0.0
        %1255 = vmatpush.xpose.msra.mxu0 0.0
        %1256 = vmatpush.xpose.msra.mxu0 0.0
        %1257 = vmatpush.xpose.msra.mxu0 0.0
        %1258 = vmatpush.xpose.msra.mxu0 0.0
        %1259 = vmatpush.xpose.msra.mxu0 0.0
        %1260 = vmatpush.xpose.msra.mxu0 0.0
        %1261 = vmatpush.xpose.msra.mxu0 %v384
        %1262 = vmatmul.f32.gmra.mxu0 %v1242
        %v1263 = vpop.f32.mrf.mxu0
        %v1264 = vadd.f32 %v530, %v1263
        %1265 = vdwg.mxu0
        %1266 = vmatpush.xpose.msra.mxu0 0.0
        %1267 = vmatpush.xpose.msra.mxu0 0.0
        %1268 = vmatpush.xpose.msra.mxu0 0.0
        %1269 = vmatpush.xpose.msra.mxu0 0.0
        %1270 = vmatpush.xpose.msra.mxu0 0.0
        %1271 = vmatpush.xpose.msra.mxu0 0.0
        %1272 = vmatpush.xpose.msra.mxu0 0.0
        %1273 = vmatpush.xpose.msra.mxu0 0.0
        %1274 = vmatpush.xpose.msra.mxu0 0.0
        %1275 = vmatpush.xpose.msra.mxu0 0.0
        %1276 = vmatpush.xpose.msra.mxu0 0.0
        %1277 = vmatpush.xpose.msra.mxu0 0.0
        %1278 = vmatpush.xpose.msra.mxu0 0.0
        %1279 = vmatpush.xpose.msra.mxu0 0.0
        %1280 = vmatpush.xpose.msra.mxu0 0.0
        %1281 = vmatpush.xpose.msra.mxu0 %v385
        %1282 = vmatmul.f32.gmra.mxu0 %v1243
        %v1283 = vpop.f32.mrf.mxu0
        %v1284 = vadd.f32 %v1264, %v1283
        %1285 = vdwg.mxu0
        %1287 = vst [vmem:[#allocation1] ss:$4 sm:$0xff] %v331
        %v1288 = vld.sshfl [vmem:[#allocation1] sm:$0xff pattern:$0x73625140]
        %v1289 = vld.sshfl [vmem:[#allocation1 + $0x8] sm:$0xff pattern:$0x73625140]
        %1292 = vmatpush.xpose.msra.mxu0 0.0
        %1293 = vmatpush.xpose.msra.mxu0 0.0
        %1294 = vmatpush.xpose.msra.mxu0 0.0
        %1295 = vmatpush.xpose.msra.mxu0 0.0
        %1296 = vmatpush.xpose.msra.mxu0 0.0
        %1297 = vmatpush.xpose.msra.mxu0 0.0
        %1298 = vmatpush.xpose.msra.mxu0 0.0
        %1299 = vmatpush.xpose.msra.mxu0 0.0
        %1300 = vmatpush.xpose.msra.mxu0 0.0
        %1301 = vmatpush.xpose.msra.mxu0 0.0
        %1302 = vmatpush.xpose.msra.mxu0 0.0
        %1303 = vmatpush.xpose.msra.mxu0 0.0
        %1304 = vmatpush.xpose.msra.mxu0 0.0
        %1305 = vmatpush.xpose.msra.mxu0 0.0
        %1306 = vmatpush.xpose.msra.mxu0 0.0
        %1307 = vmatpush.xpose.msra.mxu0 %v386
        %1308 = vmatmul.f32.gmra.mxu0 %v1288
        %v1309 = vpop.f32.mrf.mxu0
        %v1310 = vadd.f32 %v531, %v1309
        %1311 = vdwg.mxu0
        %1312 = vmatpush.xpose.msra.mxu0 0.0
        %1313 = vmatpush.xpose.msra.mxu0 0.0
        %1314 = vmatpush.xpose.msra.mxu0 0.0
        %1315 = vmatpush.xpose.msra.mxu0 0.0
        %1316 = vmatpush.xpose.msra.mxu0 0.0
        %1317 = vmatpush.xpose.msra.mxu0 0.0
        %1318 = vmatpush.xpose.msra.mxu0 0.0
        %1319 = vmatpush.xpose.msra.mxu0 0.0
        %1320 = vmatpush.xpose.msra.mxu0 0.0
        %1321 = vmatpush.xpose.msra.mxu0 0.0
        %1322 = vmatpush.xpose.msra.mxu0 0.0
        %1323 = vmatpush.xpose.msra.mxu0 0.0
        %1324 = vmatpush.xpose.msra.mxu0 0.0
        %1325 = vmatpush.xpose.msra.mxu0 0.0
        %1326 = vmatpush.xpose.msra.mxu0 0.0
        %1327 = vmatpush.xpose.msra.mxu0 %v387
        %1328 = vmatmul.f32.gmra.mxu0 %v1289
        %v1329 = vpop.f32.mrf.mxu0
        %v1330 = vadd.f32 %v1310, %v1329
        %1331 = vdwg.mxu0
        %1333 = vst [vmem:[#allocation1] ss:$4 sm:$0xff] %v332
        %v1334 = vld.sshfl [vmem:[#allocation1] sm:$0xff pattern:$0x73625140]
        %v1335 = vld.sshfl [vmem:[#allocation1 + $0x8] sm:$0xff pattern:$0x73625140]
        %1338 = vmatpush.xpose.msra.mxu0 0.0
        %1339 = vmatpush.xpose.msra.mxu0 0.0
        %1340 = vmatpush.xpose.msra.mxu0 0.0
        %1341 = vmatpush.xpose.msra.mxu0 0.0
        %1342 = vmatpush.xpose.msra.mxu0 0.0
        %1343 = vmatpush.xpose.msra.mxu0 0.0
        %1344 = vmatpush.xpose.msra.mxu0 0.0
        %1345 = vmatpush.xpose.msra.mxu0 0.0
        %1346 = vmatpush.xpose.msra.mxu0 0.0
        %1347 = vmatpush.xpose.msra.mxu0 0.0
        %1348 = vmatpush.xpose.msra.mxu0 0.0
        %1349 = vmatpush.xpose.msra.mxu0 0.0
        %1350 = vmatpush.xpose.msra.mxu0 0.0
        %1351 = vmatpush.xpose.msra.mxu0 0.0
        %1352 = vmatpush.xpose.msra.mxu0 0.0
        %1353 = vmatpush.xpose.msra.mxu0 %v388
        %1354 = vmatmul.f32.gmra.mxu0 %v1334
        %v1355 = vpop.f32.mrf.mxu0
        %v1356 = vadd.f32 %v532, %v1355
        %1357 = vdwg.mxu0
        %1358 = vmatpush.xpose.msra.mxu0 0.0
        %1359 = vmatpush.xpose.msra.mxu0 0.0
        %1360 = vmatpush.xpose.msra.mxu0 0.0
        %1361 = vmatpush.xpose.msra.mxu0 0.0
        %1362 = vmatpush.xpose.msra.mxu0 0.0
        %1363 = vmatpush.xpose.msra.mxu0 0.0
        %1364 = vmatpush.xpose.msra.mxu0 0.0
        %1365 = vmatpush.xpose.msra.mxu0 0.0
        %1366 = vmatpush.xpose.msra.mxu0 0.0
        %1367 = vmatpush.xpose.msra.mxu0 0.0
        %1368 = vmatpush.xpose.msra.mxu0 0.0
        %1369 = vmatpush.xpose.msra.mxu0 0.0
        %1370 = vmatpush.xpose.msra.mxu0 0.0
        %1371 = vmatpush.xpose.msra.mxu0 0.0
        %1372 = vmatpush.xpose.msra.mxu0 0.0
        %1373 = vmatpush.xpose.msra.mxu0 %v389
        %1374 = vmatmul.f32.gmra.mxu0 %v1335
        %v1375 = vpop.f32.mrf.mxu0
        %v1376 = vadd.f32 %v1356, %v1375
        %1377 = vdwg.mxu0
        %1379 = vst [vmem:[#allocation1] ss:$4 sm:$0xff] %v333
        %v1380 = vld.sshfl [vmem:[#allocation1] sm:$0xff pattern:$0x73625140]
        %v1381 = vld.sshfl [vmem:[#allocation1 + $0x8] sm:$0xff pattern:$0x73625140]
        %1384 = vmatpush.xpose.msra.mxu0 0.0
        %1385 = vmatpush.xpose.msra.mxu0 0.0
        %1386 = vmatpush.xpose.msra.mxu0 0.0
        %1387 = vmatpush.xpose.msra.mxu0 0.0
        %1388 = vmatpush.xpose.msra.mxu0 0.0
        %1389 = vmatpush.xpose.msra.mxu0 0.0
        %1390 = vmatpush.xpose.msra.mxu0 0.0
        %1391 = vmatpush.xpose.msra.mxu0 0.0
        %1392 = vmatpush.xpose.msra.mxu0 0.0
        %1393 = vmatpush.xpose.msra.mxu0 0.0
        %1394 = vmatpush.xpose.msra.mxu0 0.0
        %1395 = vmatpush.xpose.msra.mxu0 0.0
        %1396 = vmatpush.xpose.msra.mxu0 0.0
        %1397 = vmatpush.xpose.msra.mxu0 0.0
        %1398 = vmatpush.xpose.msra.mxu0 0.0
        %1399 = vmatpush.xpose.msra.mxu0 %v390
        %1400 = vmatmul.f32.gmra.mxu0 %v1380
        %v1401 = vpop.f32.mrf.mxu0
        %v1402 = vadd.f32 %v533, %v1401
        %1403 = vdwg.mxu0
        %1404 = vmatpush.xpose.msra.mxu0 0.0
        %1405 = vmatpush.xpose.msra.mxu0 0.0
        %1406 = vmatpush.xpose.msra.mxu0 0.0
        %1407 = vmatpush.xpose.msra.mxu0 0.0
        %1408 = vmatpush.xpose.msra.mxu0 0.0
        %1409 = vmatpush.xpose.msra.mxu0 0.0
        %1410 = vmatpush.xpose.msra.mxu0 0.0
        %1411 = vmatpush.xpose.msra.mxu0 0.0
        %1412 = vmatpush.xpose.msra.mxu0 0.0
        %1413 = vmatpush.xpose.msra.mxu0 0.0
        %1414 = vmatpush.xpose.msra.mxu0 0.0
        %1415 = vmatpush.xpose.msra.mxu0 0.0
        %1416 = vmatpush.xpose.msra.mxu0 0.0
        %1417 = vmatpush.xpose.msra.mxu0 0.0
        %1418 = vmatpush.xpose.msra.mxu0 0.0
        %1419 = vmatpush.xpose.msra.mxu0 %v391
        %1420 = vmatmul.f32.gmra.mxu0 %v1381
        %v1421 = vpop.f32.mrf.mxu0
        %v1422 = vadd.f32 %v1402, %v1421
        %1423 = vdwg.mxu0
        %1425 = vst [vmem:[#allocation1] ss:$4 sm:$0xff] %v334
        %v1426 = vld.sshfl [vmem:[#allocation1] sm:$0xff pattern:$0x73625140]
        %v1427 = vld.sshfl [vmem:[#allocation1 + $0x8] sm:$0xff pattern:$0x73625140]
        %1430 = vmatpush.xpose.msra.mxu0 0.0
        %1431 = vmatpush.xpose.msra.mxu0 0.0
        %1432 = vmatpush.xpose.msra.mxu0 0.0
        %1433 = vmatpush.xpose.msra.mxu0 0.0
        %1434 = vmatpush.xpose.msra.mxu0 0.0
        %1435 = vmatpush.xpose.msra.mxu0 0.0
        %1436 = vmatpush.xpose.msra.mxu0 0.0
        %1437 = vmatpush.xpose.msra.mxu0 0.0
        %1438 = vmatpush.xpose.msra.mxu0 0.0
        %1439 = vmatpush.xpose.msra.mxu0 0.0
        %1440 = vmatpush.xpose.msra.mxu0 0.0
        %1441 = vmatpush.xpose.msra.mxu0 0.0
        %1442 = vmatpush.xpose.msra.mxu0 0.0
        %1443 = vmatpush.xpose.msra.mxu0 0.0
        %1444 = vmatpush.xpose.msra.mxu0 0.0
        %1445 = vmatpush.xpose.msra.mxu0 %v392
        %1446 = vmatmul.f32.gmra.mxu0 %v1426
        %v1447 = vpop.f32.mrf.mxu0
        %v1448 = vadd.f32 %v534, %v1447
        %1449 = vdwg.mxu0
        %1450 = vmatpush.xpose.msra.mxu0 0.0
        %1451 = vmatpush.xpose.msra.mxu0 0.0
        %1452 = vmatpush.xpose.msra.mxu0 0.0
        %1453 = vmatpush.xpose.msra.mxu0 0.0
        %1454 = vmatpush.xpose.msra.mxu0 0.0
        %1455 = vmatpush.xpose.msra.mxu0 0.0
        %1456 = vmatpush.xpose.msra.mxu0 0.0
        %1457 = vmatpush.xpose.msra.mxu0 0.0
        %1458 = vmatpush.xpose.msra.mxu0 0.0
        %1459 = vmatpush.xpose.msra.mxu0 0.0
        %1460 = vmatpush.xpose.msra.mxu0 0.0
        %1461 = vmatpush.xpose.msra.mxu0 0.0
        %1462 = vmatpush.xpose.msra.mxu0 0.0
        %1463 = vmatpush.xpose.msra.mxu0 0.0
        %1464 = vmatpush.xpose.msra.mxu0 0.0
        %1465 = vmatpush.xpose.msra.mxu0 %v393
        %1466 = vmatmul.f32.gmra.mxu0 %v1427
        %v1467 = vpop.f32.mrf.mxu0
        %v1468 = vadd.f32 %v1448, %v1467
        %1469 = vdwg.mxu0
        %1471 = vst [vmem:[#allocation1] ss:$4 sm:$0xff] %v335
        %v1472 = vld.sshfl [vmem:[#allocation1] sm:$0xff pattern:$0x73625140]
        %v1473 = vld.sshfl [vmem:[#allocation1 + $0x8] sm:$0xff pattern:$0x73625140]
        %1476 = vmatpush.xpose.msra.mxu0 0.0
        %1477 = vmatpush.xpose.msra.mxu0 0.0
        %1478 = vmatpush.xpose.msra.mxu0 0.0
        %1479 = vmatpush.xpose.msra.mxu0 0.0
        %1480 = vmatpush.xpose.msra.mxu0 0.0
        %1481 = vmatpush.xpose.msra.mxu0 0.0
        %1482 = vmatpush.xpose.msra.mxu0 0.0
        %1483 = vmatpush.xpose.msra.mxu0 0.0
        %1484 = vmatpush.xpose.msra.mxu0 0.0
        %1485 = vmatpush.xpose.msra.mxu0 0.0
        %1486 = vmatpush.xpose.msra.mxu0 0.0
        %1487 = vmatpush.xpose.msra.mxu0 0.0
        %1488 = vmatpush.xpose.msra.mxu0 0.0
        %1489 = vmatpush.xpose.msra.mxu0 0.0
        %1490 = vmatpush.xpose.msra.mxu0 0.0
        %1491 = vmatpush.xpose.msra.mxu0 %v394
        %1492 = vmatmul.f32.gmra.mxu0 %v1472
        %v1493 = vpop.f32.mrf.mxu0
        %v1494 = vadd.f32 %v535, %v1493
        %1495 = vdwg.mxu0
        %1496 = vmatpush.xpose.msra.mxu0 0.0
        %1497 = vmatpush.xpose.msra.mxu0 0.0
        %1498 = vmatpush.xpose.msra.mxu0 0.0
        %1499 = vmatpush.xpose.msra.mxu0 0.0
        %1500 = vmatpush.xpose.msra.mxu0 0.0
        %1501 = vmatpush.xpose.msra.mxu0 0.0
        %1502 = vmatpush.xpose.msra.mxu0 0.0
        %1503 = vmatpush.xpose.msra.mxu0 0.0
        %1504 = vmatpush.xpose.msra.mxu0 0.0
        %1505 = vmatpush.xpose.msra.mxu0 0.0
        %1506 = vmatpush.xpose.msra.mxu0 0.0
        %1507 = vmatpush.xpose.msra.mxu0 0.0
        %1508 = vmatpush.xpose.msra.mxu0 0.0
        %1509 = vmatpush.xpose.msra.mxu0 0.0
        %1510 = vmatpush.xpose.msra.mxu0 0.0
        %1511 = vmatpush.xpose.msra.mxu0 %v395
        %1512 = vmatmul.f32.gmra.mxu0 %v1473
        %v1513 = vpop.f32.mrf.mxu0
        %v1514 = vadd.f32 %v1494, %v1513
        %1515 = vdwg.mxu0
        %1517 = vst [vmem:[#allocation1] ss:$4 sm:$0xff] %v336
        %v1518 = vld.sshfl [vmem:[#allocation1] sm:$0xff pattern:$0x73625140]
        %v1519 = vld.sshfl [vmem:[#allocation1 + $0x8] sm:$0xff pattern:$0x73625140]
        %1522 = vmatpush.xpose.msra.mxu0 0.0
        %1523 = vmatpush.xpose.msra.mxu0 0.0
        %1524 = vmatpush.xpose.msra.mxu0 0.0
        %1525 = vmatpush.xpose.msra.mxu0 0.0
        %1526 = vmatpush.xpose.msra.mxu0 0.0
        %1527 = vmatpush.xpose.msra.mxu0 0.0
        %1528 = vmatpush.xpose.msra.mxu0 0.0
        %1529 = vmatpush.xpose.msra.mxu0 0.0
        %1530 = vmatpush.xpose.msra.mxu0 0.0
        %1531 = vmatpush.xpose.msra.mxu0 0.0
        %1532 = vmatpush.xpose.msra.mxu0 0.0
        %1533 = vmatpush.xpose.msra.mxu0 0.0
        %1534 = vmatpush.xpose.msra.mxu0 0.0
        %1535 = vmatpush.xpose.msra.mxu0 0.0
        %1536 = vmatpush.xpose.msra.mxu0 0.0
        %1537 = vmatpush.xpose.msra.mxu0 %v396
        %1538 = vmatmul.f32.gmra.mxu0 %v1518
        %v1539 = vpop.f32.mrf.mxu0
        %v1540 = vadd.f32 %v536, %v1539
        %1541 = vdwg.mxu0
        %1542 = vmatpush.xpose.msra.mxu0 0.0
        %1543 = vmatpush.xpose.msra.mxu0 0.0
        %1544 = vmatpush.xpose.msra.mxu0 0.0
        %1545 = vmatpush.xpose.msra.mxu0 0.0
        %1546 = vmatpush.xpose.msra.mxu0 0.0
        %1547 = vmatpush.xpose.msra.mxu0 0.0
        %1548 = vmatpush.xpose.msra.mxu0 0.0
        %1549 = vmatpush.xpose.msra.mxu0 0.0
        %1550 = vmatpush.xpose.msra.mxu0 0.0
        %1551 = vmatpush.xpose.msra.mxu0 0.0
        %1552 = vmatpush.xpose.msra.mxu0 0.0
        %1553 = vmatpush.xpose.msra.mxu0 0.0
        %1554 = vmatpush.xpose.msra.mxu0 0.0
        %1555 = vmatpush.xpose.msra.mxu0 0.0
        %1556 = vmatpush.xpose.msra.mxu0 0.0
        %1557 = vmatpush.xpose.msra.mxu0 %v397
        %1558 = vmatmul.f32.gmra.mxu0 %v1519
        %v1559 = vpop.f32.mrf.mxu0
        %v1560 = vadd.f32 %v1540, %v1559
        %1561 = vdwg.mxu0
        %1563 = vst [vmem:[#allocation1] ss:$4 sm:$0xff] %v337
        %v1564 = vld.sshfl [vmem:[#allocation1] sm:$0xff pattern:$0x73625140]
        %v1565 = vld.sshfl [vmem:[#allocation1 + $0x8] sm:$0xff pattern:$0x73625140]
        %1568 = vmatpush.xpose.msra.mxu0 0.0
        %1569 = vmatpush.xpose.msra.mxu0 0.0
        %1570 = vmatpush.xpose.msra.mxu0 0.0
        %1571 = vmatpush.xpose.msra.mxu0 0.0
        %1572 = vmatpush.xpose.msra.mxu0 0.0
        %1573 = vmatpush.xpose.msra.mxu0 0.0
        %1574 = vmatpush.xpose.msra.mxu0 0.0
        %1575 = vmatpush.xpose.msra.mxu0 0.0
        %1576 = vmatpush.xpose.msra.mxu0 0.0
        %1577 = vmatpush.xpose.msra.mxu0 0.0
        %1578 = vmatpush.xpose.msra.mxu0 0.0
        %1579 = vmatpush.xpose.msra.mxu0 0.0
        %1580 = vmatpush.xpose.msra.mxu0 0.0
        %1581 = vmatpush.xpose.msra.mxu0 0.0
        %1582 = vmatpush.xpose.msra.mxu0 0.0
        %1583 = vmatpush.xpose.msra.mxu0 %v398
        %1584 = vmatmul.f32.gmra.mxu0 %v1564
        %v1585 = vpop.f32.mrf.mxu0
        %v1586 = vadd.f32 %v537, %v1585
        %1587 = vdwg.mxu0
        %1588 = vmatpush.xpose.msra.mxu0 0.0
        %1589 = vmatpush.xpose.msra.mxu0 0.0
        %1590 = vmatpush.xpose.msra.mxu0 0.0
        %1591 = vmatpush.xpose.msra.mxu0 0.0
        %1592 = vmatpush.xpose.msra.mxu0 0.0
        %1593 = vmatpush.xpose.msra.mxu0 0.0
        %1594 = vmatpush.xpose.msra.mxu0 0.0
        %1595 = vmatpush.xpose.msra.mxu0 0.0
        %1596 = vmatpush.xpose.msra.mxu0 0.0
        %1597 = vmatpush.xpose.msra.mxu0 0.0
        %1598 = vmatpush.xpose.msra.mxu0 0.0
        %1599 = vmatpush.xpose.msra.mxu0 0.0
        %1600 = vmatpush.xpose.msra.mxu0 0.0
        %1601 = vmatpush.xpose.msra.mxu0 0.0
        %1602 = vmatpush.xpose.msra.mxu0 0.0
        %1603 = vmatpush.xpose.msra.mxu0 %v399
        %1604 = vmatmul.f32.gmra.mxu0 %v1565
        %v1605 = vpop.f32.mrf.mxu0
        %v1606 = vadd.f32 %v1586, %v1605
        %1607 = vdwg.mxu0
        %1609 = vst [vmem:[#allocation1] ss:$4 sm:$0xff] %v338
        %v1610 = vld.sshfl [vmem:[#allocation1] sm:$0xff pattern:$0x73625140]
        %v1611 = vld.sshfl [vmem:[#allocation1 + $0x8] sm:$0xff pattern:$0x73625140]
        %1614 = vmatpush.xpose.msra.mxu0 0.0
        %1615 = vmatpush.xpose.msra.mxu0 0.0
        %1616 = vmatpush.xpose.msra.mxu0 0.0
        %1617 = vmatpush.xpose.msra.mxu0 0.0
        %1618 = vmatpush.xpose.msra.mxu0 0.0
        %1619 = vmatpush.xpose.msra.mxu0 0.0
        %1620 = vmatpush.xpose.msra.mxu0 0.0
        %1621 = vmatpush.xpose.msra.mxu0 0.0
        %1622 = vmatpush.xpose.msra.mxu0 0.0
        %1623 = vmatpush.xpose.msra.mxu0 0.0
        %1624 = vmatpush.xpose.msra.mxu0 0.0
        %1625 = vmatpush.xpose.msra.mxu0 0.0
        %1626 = vmatpush.xpose.msra.mxu0 0.0
        %1627 = vmatpush.xpose.msra.mxu0 0.0
        %1628 = vmatpush.xpose.msra.mxu0 0.0
        %1629 = vmatpush.xpose.msra.mxu0 %v400
        %1630 = vmatmul.f32.gmra.mxu0 %v1610
        %v1631 = vpop.f32.mrf.mxu0
        %v1632 = vadd.f32 %v538, %v1631
        %1633 = vdwg.mxu0
        %1634 = vmatpush.xpose.msra.mxu0 0.0
        %1635 = vmatpush.xpose.msra.mxu0 0.0
        %1636 = vmatpush.xpose.msra.mxu0 0.0
        %1637 = vmatpush.xpose.msra.mxu0 0.0
        %1638 = vmatpush.xpose.msra.mxu0 0.0
        %1639 = vmatpush.xpose.msra.mxu0 0.0
        %1640 = vmatpush.xpose.msra.mxu0 0.0
        %1641 = vmatpush.xpose.msra.mxu0 0.0
        %1642 = vmatpush.xpose.msra.mxu0 0.0
        %1643 = vmatpush.xpose.msra.mxu0 0.0
        %1644 = vmatpush.xpose.msra.mxu0 0.0
        %1645 = vmatpush.xpose.msra.mxu0 0.0
        %1646 = vmatpush.xpose.msra.mxu0 0.0
        %1647 = vmatpush.xpose.msra.mxu0 0.0
        %1648 = vmatpush.xpose.msra.mxu0 0.0
        %1649 = vmatpush.xpose.msra.mxu0 %v401
        %1650 = vmatmul.f32.gmra.mxu0 %v1611
        %v1651 = vpop.f32.mrf.mxu0
        %v1652 = vadd.f32 %v1632, %v1651
        %1653 = vdwg.mxu0
        %1655 = vst [vmem:[#allocation1] ss:$4 sm:$0xff] %v339
        %v1656 = vld.sshfl [vmem:[#allocation1] sm:$0xff pattern:$0x73625140]
        %v1657 = vld.sshfl [vmem:[#allocation1 + $0x8] sm:$0xff pattern:$0x73625140]
        %1660 = vmatpush.xpose.msra.mxu0 0.0
        %1661 = vmatpush.xpose.msra.mxu0 0.0
        %1662 = vmatpush.xpose.msra.mxu0 0.0
        %1663 = vmatpush.xpose.msra.mxu0 0.0
        %1664 = vmatpush.xpose.msra.mxu0 0.0
        %1665 = vmatpush.xpose.msra.mxu0 0.0
        %1666 = vmatpush.xpose.msra.mxu0 0.0
        %1667 = vmatpush.xpose.msra.mxu0 0.0
        %1668 = vmatpush.xpose.msra.mxu0 0.0
        %1669 = vmatpush.xpose.msra.mxu0 0.0
        %1670 = vmatpush.xpose.msra.mxu0 0.0
        %1671 = vmatpush.xpose.msra.mxu0 0.0
        %1672 = vmatpush.xpose.msra.mxu0 0.0
        %1673 = vmatpush.xpose.msra.mxu0 0.0
        %1674 = vmatpush.xpose.msra.mxu0 0.0
        %1675 = vmatpush.xpose.msra.mxu0 %v402
        %1676 = vmatmul.f32.gmra.mxu0 %v1656
        %v1677 = vpop.f32.mrf.mxu0
        %v1678 = vadd.f32 %v539, %v1677
        %1679 = vdwg.mxu0
        %1680 = vmatpush.xpose.msra.mxu0 0.0
        %1681 = vmatpush.xpose.msra.mxu0 0.0
        %1682 = vmatpush.xpose.msra.mxu0 0.0
        %1683 = vmatpush.xpose.msra.mxu0 0.0
        %1684 = vmatpush.xpose.msra.mxu0 0.0
        %1685 = vmatpush.xpose.msra.mxu0 0.0
        %1686 = vmatpush.xpose.msra.mxu0 0.0
        %1687 = vmatpush.xpose.msra.mxu0 0.0
        %1688 = vmatpush.xpose.msra.mxu0 0.0
        %1689 = vmatpush.xpose.msra.mxu0 0.0
        %1690 = vmatpush.xpose.msra.mxu0 0.0
        %1691 = vmatpush.xpose.msra.mxu0 0.0
        %1692 = vmatpush.xpose.msra.mxu0 0.0
        %1693 = vmatpush.xpose.msra.mxu0 0.0
        %1694 = vmatpush.xpose.msra.mxu0 0.0
        %1695 = vmatpush.xpose.msra.mxu0 %v403
        %1696 = vmatmul.f32.gmra.mxu0 %v1657
        %v1697 = vpop.f32.mrf.mxu0
        %v1698 = vadd.f32 %v1678, %v1697
        %1699 = vdwg.mxu0
        %1701 = vst [vmem:[#allocation1] ss:$4 sm:$0xff] %v340
        %v1702 = vld.sshfl [vmem:[#allocation1] sm:$0xff pattern:$0x73625140]
        %v1703 = vld.sshfl [vmem:[#allocation1 + $0x8] sm:$0xff pattern:$0x73625140]
        %1706 = vmatpush.xpose.msra.mxu0 0.0
        %1707 = vmatpush.xpose.msra.mxu0 0.0
        %1708 = vmatpush.xpose.msra.mxu0 0.0
        %1709 = vmatpush.xpose.msra.mxu0 0.0
        %1710 = vmatpush.xpose.msra.mxu0 0.0
        %1711 = vmatpush.xpose.msra.mxu0 0.0
        %1712 = vmatpush.xpose.msra.mxu0 0.0
        %1713 = vmatpush.xpose.msra.mxu0 0.0
        %1714 = vmatpush.xpose.msra.mxu0 0.0
        %1715 = vmatpush.xpose.msra.mxu0 0.0
        %1716 = vmatpush.xpose.msra.mxu0 0.0
        %1717 = vmatpush.xpose.msra.mxu0 0.0
        %1718 = vmatpush.xpose.msra.mxu0 0.0
        %1719 = vmatpush.xpose.msra.mxu0 0.0
        %1720 = vmatpush.xpose.msra.mxu0 0.0
        %1721 = vmatpush.xpose.msra.mxu0 %v404
        %1722 = vmatmul.f32.gmra.mxu0 %v1702
        %v1723 = vpop.f32.mrf.mxu0
        %v1724 = vadd.f32 %v540, %v1723
        %1725 = vdwg.mxu0
        %1726 = vmatpush.xpose.msra.mxu0 0.0
        %1727 = vmatpush.xpose.msra.mxu0 0.0
        %1728 = vmatpush.xpose.msra.mxu0 0.0
        %1729 = vmatpush.xpose.msra.mxu0 0.0
        %1730 = vmatpush.xpose.msra.mxu0 0.0
        %1731 = vmatpush.xpose.msra.mxu0 0.0
        %1732 = vmatpush.xpose.msra.mxu0 0.0
        %1733 = vmatpush.xpose.msra.mxu0 0.0
        %1734 = vmatpush.xpose.msra.mxu0 0.0
        %1735 = vmatpush.xpose.msra.mxu0 0.0
        %1736 = vmatpush.xpose.msra.mxu0 0.0
        %1737 = vmatpush.xpose.msra.mxu0 0.0
        %1738 = vmatpush.xpose.msra.mxu0 0.0
        %1739 = vmatpush.xpose.msra.mxu0 0.0
        %1740 = vmatpush.xpose.msra.mxu0 0.0
        %1741 = vmatpush.xpose.msra.mxu0 %v405
        %1742 = vmatmul.f32.gmra.mxu0 %v1703
        %v1743 = vpop.f32.mrf.mxu0
        %v1744 = vadd.f32 %v1724, %v1743
        %1745 = vdwg.mxu0
        %1747 = vst [vmem:[#allocation1] ss:$4 sm:$0xff] %v341
        %v1748 = vld.sshfl [vmem:[#allocation1] sm:$0xff pattern:$0x73625140]
        %v1749 = vld.sshfl [vmem:[#allocation1 + $0x8] sm:$0xff pattern:$0x73625140]
        %1752 = vmatpush.xpose.msra.mxu0 0.0
        %1753 = vmatpush.xpose.msra.mxu0 0.0
        %1754 = vmatpush.xpose.msra.mxu0 0.0
        %1755 = vmatpush.xpose.msra.mxu0 0.0
        %1756 = vmatpush.xpose.msra.mxu0 0.0
        %1757 = vmatpush.xpose.msra.mxu0 0.0
        %1758 = vmatpush.xpose.msra.mxu0 0.0
        %1759 = vmatpush.xpose.msra.mxu0 0.0
        %1760 = vmatpush.xpose.msra.mxu0 0.0
        %1761 = vmatpush.xpose.msra.mxu0 0.0
        %1762 = vmatpush.xpose.msra.mxu0 0.0
        %1763 = vmatpush.xpose.msra.mxu0 0.0
        %1764 = vmatpush.xpose.msra.mxu0 0.0
        %1765 = vmatpush.xpose.msra.mxu0 0.0
        %1766 = vmatpush.xpose.msra.mxu0 0.0
        %1767 = vmatpush.xpose.msra.mxu0 %v406
        %1768 = vmatmul.f32.gmra.mxu0 %v1748
        %v1769 = vpop.f32.mrf.mxu0
        %v1770 = vadd.f32 %v541, %v1769
        %1771 = vdwg.mxu0
        %1772 = vmatpush.xpose.msra.mxu0 0.0
        %1773 = vmatpush.xpose.msra.mxu0 0.0
        %1774 = vmatpush.xpose.msra.mxu0 0.0
        %1775 = vmatpush.xpose.msra.mxu0 0.0
        %1776 = vmatpush.xpose.msra.mxu0 0.0
        %1777 = vmatpush.xpose.msra.mxu0 0.0
        %1778 = vmatpush.xpose.msra.mxu0 0.0
        %1779 = vmatpush.xpose.msra.mxu0 0.0
        %1780 = vmatpush.xpose.msra.mxu0 0.0
        %1781 = vmatpush.xpose.msra.mxu0 0.0
        %1782 = vmatpush.xpose.msra.mxu0 0.0
        %1783 = vmatpush.xpose.msra.mxu0 0.0
        %1784 = vmatpush.xpose.msra.mxu0 0.0
        %1785 = vmatpush.xpose.msra.mxu0 0.0
        %1786 = vmatpush.xpose.msra.mxu0 0.0
        %1787 = vmatpush.xpose.msra.mxu0 %v407
        %1788 = vmatmul.f32.gmra.mxu0 %v1749
        %v1789 = vpop.f32.mrf.mxu0
        %v1790 = vadd.f32 %v1770, %v1789
        %1791 = vdwg.mxu0
        %1793 = vst [vmem:[#allocation1] ss:$4 sm:$0xff] %v342
        %v1794 = vld.sshfl [vmem:[#allocation1] sm:$0xff pattern:$0x73625140]
        %v1795 = vld.sshfl [vmem:[#allocation1 + $0x8] sm:$0xff pattern:$0x73625140]
        %1798 = vmatpush.xpose.msra.mxu0 0.0
        %1799 = vmatpush.xpose.msra.mxu0 0.0
        %1800 = vmatpush.xpose.msra.mxu0 0.0
        %1801 = vmatpush.xpose.msra.mxu0 0.0
        %1802 = vmatpush.xpose.msra.mxu0 0.0
        %1803 = vmatpush.xpose.msra.mxu0 0.0
        %1804 = vmatpush.xpose.msra.mxu0 0.0
        %1805 = vmatpush.xpose.msra.mxu0 0.0
        %1806 = vmatpush.xpose.msra.mxu0 0.0
        %1807 = vmatpush.xpose.msra.mxu0 0.0
        %1808 = vmatpush.xpose.msra.mxu0 0.0
        %1809 = vmatpush.xpose.msra.mxu0 0.0
        %1810 = vmatpush.xpose.msra.mxu0 0.0
        %1811 = vmatpush.xpose.msra.mxu0 0.0
        %1812 = vmatpush.xpose.msra.mxu0 0.0
        %1813 = vmatpush.xpose.msra.mxu0 %v408
        %1814 = vmatmul.f32.gmra.mxu0 %v1794
        %v1815 = vpop.f32.mrf.mxu0
        %v1816 = vadd.f32 %v542, %v1815
        %1817 = vdwg.mxu0
        %1818 = vmatpush.xpose.msra.mxu0 0.0
        %1819 = vmatpush.xpose.msra.mxu0 0.0
        %1820 = vmatpush.xpose.msra.mxu0 0.0
        %1821 = vmatpush.xpose.msra.mxu0 0.0
        %1822 = vmatpush.xpose.msra.mxu0 0.0
        %1823 = vmatpush.xpose.msra.mxu0 0.0
        %1824 = vmatpush.xpose.msra.mxu0 0.0
        %1825 = vmatpush.xpose.msra.mxu0 0.0
        %1826 = vmatpush.xpose.msra.mxu0 0.0
        %1827 = vmatpush.xpose.msra.mxu0 0.0
        %1828 = vmatpush.xpose.msra.mxu0 0.0
        %1829 = vmatpush.xpose.msra.mxu0 0.0
        %1830 = vmatpush.xpose.msra.mxu0 0.0
        %1831 = vmatpush.xpose.msra.mxu0 0.0
        %1832 = vmatpush.xpose.msra.mxu0 0.0
        %1833 = vmatpush.xpose.msra.mxu0 %v409
        %1834 = vmatmul.f32.gmra.mxu0 %v1795
        %v1835 = vpop.f32.mrf.mxu0
        %v1836 = vadd.f32 %v1816, %v1835
        %1837 = vdwg.mxu0
        %1839 = vst [vmem:[#allocation1] ss:$4 sm:$0xff] %v343
        %v1840 = vld.sshfl [vmem:[#allocation1] sm:$0xff pattern:$0x73625140]
        %v1841 = vld.sshfl [vmem:[#allocation1 + $0x8] sm:$0xff pattern:$0x73625140]
        %1844 = vmatpush.xpose.msra.mxu0 0.0
        %1845 = vmatpush.xpose.msra.mxu0 0.0
        %1846 = vmatpush.xpose.msra.mxu0 0.0
        %1847 = vmatpush.xpose.msra.mxu0 0.0
        %1848 = vmatpush.xpose.msra.mxu0 0.0
        %1849 = vmatpush.xpose.msra.mxu0 0.0
        %1850 = vmatpush.xpose.msra.mxu0 0.0
        %1851 = vmatpush.xpose.msra.mxu0 0.0
        %1852 = vmatpush.xpose.msra.mxu0 0.0
        %1853 = vmatpush.xpose.msra.mxu0 0.0
        %1854 = vmatpush.xpose.msra.mxu0 0.0
        %1855 = vmatpush.xpose.msra.mxu0 0.0
        %1856 = vmatpush.xpose.msra.mxu0 0.0
        %1857 = vmatpush.xpose.msra.mxu0 0.0
        %1858 = vmatpush.xpose.msra.mxu0 0.0
        %1859 = vmatpush.xpose.msra.mxu0 %v410
        %1860 = vmatmul.f32.gmra.mxu0 %v1840
        %v1861 = vpop.f32.mrf.mxu0
        %v1862 = vadd.f32 %v543, %v1861
        %1863 = vdwg.mxu0
        %1864 = vmatpush.xpose.msra.mxu0 0.0
        %1865 = vmatpush.xpose.msra.mxu0 0.0
        %1866 = vmatpush.xpose.msra.mxu0 0.0
        %1867 = vmatpush.xpose.msra.mxu0 0.0
        %1868 = vmatpush.xpose.msra.mxu0 0.0
        %1869 = vmatpush.xpose.msra.mxu0 0.0
        %1870 = vmatpush.xpose.msra.mxu0 0.0
        %1871 = vmatpush.xpose.msra.mxu0 0.0
        %1872 = vmatpush.xpose.msra.mxu0 0.0
        %1873 = vmatpush.xpose.msra.mxu0 0.0
        %1874 = vmatpush.xpose.msra.mxu0 0.0
        %1875 = vmatpush.xpose.msra.mxu0 0.0
        %1876 = vmatpush.xpose.msra.mxu0 0.0
        %1877 = vmatpush.xpose.msra.mxu0 0.0
        %1878 = vmatpush.xpose.msra.mxu0 0.0
        %1879 = vmatpush.xpose.msra.mxu0 %v411
        %1880 = vmatmul.f32.gmra.mxu0 %v1841
        %v1881 = vpop.f32.mrf.mxu0
        %v1882 = vadd.f32 %v1862, %v1881
        %1883 = vdwg.mxu0
        %1885 = vst [vmem:[#allocation1] ss:$4 sm:$0xff] %v344
        %v1886 = vld.sshfl [vmem:[#allocation1] sm:$0xff pattern:$0x73625140]
        %v1887 = vld.sshfl [vmem:[#allocation1 + $0x8] sm:$0xff pattern:$0x73625140]
        %1890 = vmatpush.xpose.msra.mxu0 0.0
        %1891 = vmatpush.xpose.msra.mxu0 0.0
        %1892 = vmatpush.xpose.msra.mxu0 0.0
        %1893 = vmatpush.xpose.msra.mxu0 0.0
        %1894 = vmatpush.xpose.msra.mxu0 0.0
        %1895 = vmatpush.xpose.msra.mxu0 0.0
        %1896 = vmatpush.xpose.msra.mxu0 0.0
        %1897 = vmatpush.xpose.msra.mxu0 0.0
        %1898 = vmatpush.xpose.msra.mxu0 0.0
        %1899 = vmatpush.xpose.msra.mxu0 0.0
        %1900 = vmatpush.xpose.msra.mxu0 0.0
        %1901 = vmatpush.xpose.msra.mxu0 0.0
        %1902 = vmatpush.xpose.msra.mxu0 0.0
        %1903 = vmatpush.xpose.msra.mxu0 0.0
        %1904 = vmatpush.xpose.msra.mxu0 0.0
        %1905 = vmatpush.xpose.msra.mxu0 %v412
        %1906 = vmatmul.f32.gmra.mxu0 %v1886
        %v1907 = vpop.f32.mrf.mxu0
        %v1908 = vadd.f32 %v544, %v1907
        %1909 = vdwg.mxu0
        %1910 = vmatpush.xpose.msra.mxu0 0.0
        %1911 = vmatpush.xpose.msra.mxu0 0.0
        %1912 = vmatpush.xpose.msra.mxu0 0.0
        %1913 = vmatpush.xpose.msra.mxu0 0.0
        %1914 = vmatpush.xpose.msra.mxu0 0.0
        %1915 = vmatpush.xpose.msra.mxu0 0.0
        %1916 = vmatpush.xpose.msra.mxu0 0.0
        %1917 = vmatpush.xpose.msra.mxu0 0.0
        %1918 = vmatpush.xpose.msra.mxu0 0.0
        %1919 = vmatpush.xpose.msra.mxu0 0.0
        %1920 = vmatpush.xpose.msra.mxu0 0.0
        %1921 = vmatpush.xpose.msra.mxu0 0.0
        %1922 = vmatpush.xpose.msra.mxu0 0.0
        %1923 = vmatpush.xpose.msra.mxu0 0.0
        %1924 = vmatpush.xpose.msra.mxu0 0.0
        %1925 = vmatpush.xpose.msra.mxu0 %v413
        %1926 = vmatmul.f32.gmra.mxu0 %v1887
        %v1927 = vpop.f32.mrf.mxu0
        %v1928 = vadd.f32 %v1908, %v1927
        %1929 = vdwg.mxu0
        %1931 = vst [vmem:[#allocation1] ss:$4 sm:$0xff] %v345
        %v1932 = vld.sshfl [vmem:[#allocation1] sm:$0xff pattern:$0x73625140]
        %v1933 = vld.sshfl [vmem:[#allocation1 + $0x8] sm:$0xff pattern:$0x73625140]
        %1936 = vmatpush.xpose.msra.mxu0 0.0
        %1937 = vmatpush.xpose.msra.mxu0 0.0
        %1938 = vmatpush.xpose.msra.mxu0 0.0
        %1939 = vmatpush.xpose.msra.mxu0 0.0
        %1940 = vmatpush.xpose.msra.mxu0 0.0
        %1941 = vmatpush.xpose.msra.mxu0 0.0
        %1942 = vmatpush.xpose.msra.mxu0 0.0
        %1943 = vmatpush.xpose.msra.mxu0 0.0
        %1944 = vmatpush.xpose.msra.mxu0 0.0
        %1945 = vmatpush.xpose.msra.mxu0 0.0
        %1946 = vmatpush.xpose.msra.mxu0 0.0
        %1947 = vmatpush.xpose.msra.mxu0 0.0
        %1948 = vmatpush.xpose.msra.mxu0 0.0
        %1949 = vmatpush.xpose.msra.mxu0 0.0
        %1950 = vmatpush.xpose.msra.mxu0 0.0
        %1951 = vmatpush.xpose.msra.mxu0 %v414
        %1952 = vmatmul.f32.gmra.mxu0 %v1932
        %v1953 = vpop.f32.mrf.mxu0
        %v1954 = vadd.f32 %v545, %v1953
        %1955 = vdwg.mxu0
        %1956 = vmatpush.xpose.msra.mxu0 0.0
        %1957 = vmatpush.xpose.msra.mxu0 0.0
        %1958 = vmatpush.xpose.msra.mxu0 0.0
        %1959 = vmatpush.xpose.msra.mxu0 0.0
        %1960 = vmatpush.xpose.msra.mxu0 0.0
        %1961 = vmatpush.xpose.msra.mxu0 0.0
        %1962 = vmatpush.xpose.msra.mxu0 0.0
        %1963 = vmatpush.xpose.msra.mxu0 0.0
        %1964 = vmatpush.xpose.msra.mxu0 0.0
        %1965 = vmatpush.xpose.msra.mxu0 0.0
        %1966 = vmatpush.xpose.msra.mxu0 0.0
        %1967 = vmatpush.xpose.msra.mxu0 0.0
        %1968 = vmatpush.xpose.msra.mxu0 0.0
        %1969 = vmatpush.xpose.msra.mxu0 0.0
        %1970 = vmatpush.xpose.msra.mxu0 0.0
        %1971 = vmatpush.xpose.msra.mxu0 %v415
        %1972 = vmatmul.f32.gmra.mxu0 %v1933
        %v1973 = vpop.f32.mrf.mxu0
        %v1974 = vadd.f32 %v1954, %v1973
        %1975 = vdwg.mxu0
        %1977 = vst [vmem:[#allocation1] ss:$4 sm:$0xff] %v346
        %v1978 = vld.sshfl [vmem:[#allocation1] sm:$0xff pattern:$0x73625140]
        %v1979 = vld.sshfl [vmem:[#allocation1 + $0x8] sm:$0xff pattern:$0x73625140]
        %1982 = vmatpush.xpose.msra.mxu0 0.0
        %1983 = vmatpush.xpose.msra.mxu0 0.0
        %1984 = vmatpush.xpose.msra.mxu0 0.0
        %1985 = vmatpush.xpose.msra.mxu0 0.0
        %1986 = vmatpush.xpose.msra.mxu0 0.0
        %1987 = vmatpush.xpose.msra.mxu0 0.0
        %1988 = vmatpush.xpose.msra.mxu0 0.0
        %1989 = vmatpush.xpose.msra.mxu0 0.0
        %1990 = vmatpush.xpose.msra.mxu0 0.0
        %1991 = vmatpush.xpose.msra.mxu0 0.0
        %1992 = vmatpush.xpose.msra.mxu0 0.0
        %1993 = vmatpush.xpose.msra.mxu0 0.0
        %1994 = vmatpush.xpose.msra.mxu0 0.0
        %1995 = vmatpush.xpose.msra.mxu0 0.0
        %1996 = vmatpush.xpose.msra.mxu0 0.0
        %1997 = vmatpush.xpose.msra.mxu0 %v416
        %1998 = vmatmul.f32.gmra.mxu0 %v1978
        %v1999 = vpop.f32.mrf.mxu0
        %v2000 = vadd.f32 %v546, %v1999
        %2001 = vdwg.mxu0
        %2002 = vmatpush.xpose.msra.mxu0 0.0
        %2003 = vmatpush.xpose.msra.mxu0 0.0
        %2004 = vmatpush.xpose.msra.mxu0 0.0
        %2005 = vmatpush.xpose.msra.mxu0 0.0
        %2006 = vmatpush.xpose.msra.mxu0 0.0
        %2007 = vmatpush.xpose.msra.mxu0 0.0
        %2008 = vmatpush.xpose.msra.mxu0 0.0
        %2009 = vmatpush.xpose.msra.mxu0 0.0
        %2010 = vmatpush.xpose.msra.mxu0 0.0
        %2011 = vmatpush.xpose.msra.mxu0 0.0
        %2012 = vmatpush.xpose.msra.mxu0 0.0
        %2013 = vmatpush.xpose.msra.mxu0 0.0
        %2014 = vmatpush.xpose.msra.mxu0 0.0
        %2015 = vmatpush.xpose.msra.mxu0 0.0
        %2016 = vmatpush.xpose.msra.mxu0 0.0
        %2017 = vmatpush.xpose.msra.mxu0 %v417
        %2018 = vmatmul.f32.gmra.mxu0 %v1979
        %v2019 = vpop.f32.mrf.mxu0
        %v2020 = vadd.f32 %v2000, %v2019
        %2021 = vdwg.mxu0
        %2023 = vst [vmem:[#allocation1] ss:$4 sm:$0xff] %v347
        %v2024 = vld.sshfl [vmem:[#allocation1] sm:$0xff pattern:$0x73625140]
        %v2025 = vld.sshfl [vmem:[#allocation1 + $0x8] sm:$0xff pattern:$0x73625140]
        %2028 = vmatpush.xpose.msra.mxu0 0.0
        %2029 = vmatpush.xpose.msra.mxu0 0.0
        %2030 = vmatpush.xpose.msra.mxu0 0.0
        %2031 = vmatpush.xpose.msra.mxu0 0.0
        %2032 = vmatpush.xpose.msra.mxu0 0.0
        %2033 = vmatpush.xpose.msra.mxu0 0.0
        %2034 = vmatpush.xpose.msra.mxu0 0.0
        %2035 = vmatpush.xpose.msra.mxu0 0.0
        %2036 = vmatpush.xpose.msra.mxu0 0.0
        %2037 = vmatpush.xpose.msra.mxu0 0.0
        %2038 = vmatpush.xpose.msra.mxu0 0.0
        %2039 = vmatpush.xpose.msra.mxu0 0.0
        %2040 = vmatpush.xpose.msra.mxu0 0.0
        %2041 = vmatpush.xpose.msra.mxu0 0.0
        %2042 = vmatpush.xpose.msra.mxu0 0.0
        %2043 = vmatpush.xpose.msra.mxu0 %v418
        %2044 = vmatmul.f32.gmra.mxu0 %v2024
        %v2045 = vpop.f32.mrf.mxu0
        %v2046 = vadd.f32 %v547, %v2045
        %2047 = vdwg.mxu0
        %2048 = vmatpush.xpose.msra.mxu0 0.0
        %2049 = vmatpush.xpose.msra.mxu0 0.0
        %2050 = vmatpush.xpose.msra.mxu0 0.0
        %2051 = vmatpush.xpose.msra.mxu0 0.0
        %2052 = vmatpush.xpose.msra.mxu0 0.0
        %2053 = vmatpush.xpose.msra.mxu0 0.0
        %2054 = vmatpush.xpose.msra.mxu0 0.0
        %2055 = vmatpush.xpose.msra.mxu0 0.0
        %2056 = vmatpush.xpose.msra.mxu0 0.0
        %2057 = vmatpush.xpose.msra.mxu0 0.0
        %2058 = vmatpush.xpose.msra.mxu0 0.0
        %2059 = vmatpush.xpose.msra.mxu0 0.0
        %2060 = vmatpush.xpose.msra.mxu0 0.0
        %2061 = vmatpush.xpose.msra.mxu0 0.0
        %2062 = vmatpush.xpose.msra.mxu0 0.0
        %2063 = vmatpush.xpose.msra.mxu0 %v419
        %2064 = vmatmul.f32.gmra.mxu0 %v2025
        %v2065 = vpop.f32.mrf.mxu0
        %v2066 = vadd.f32 %v2046, %v2065
        %2067 = vdwg.mxu0
        %2069 = vst [vmem:[#allocation1] ss:$4 sm:$0xff] %v348
        %v2070 = vld.sshfl [vmem:[#allocation1] sm:$0xff pattern:$0x73625140]
        %v2071 = vld.sshfl [vmem:[#allocation1 + $0x8] sm:$0xff pattern:$0x73625140]
        %2074 = vmatpush.xpose.msra.mxu0 0.0
        %2075 = vmatpush.xpose.msra.mxu0 0.0
        %2076 = vmatpush.xpose.msra.mxu0 0.0
        %2077 = vmatpush.xpose.msra.mxu0 0.0
        %2078 = vmatpush.xpose.msra.mxu0 0.0
        %2079 = vmatpush.xpose.msra.mxu0 0.0
        %2080 = vmatpush.xpose.msra.mxu0 0.0
        %2081 = vmatpush.xpose.msra.mxu0 0.0
        %2082 = vmatpush.xpose.msra.mxu0 0.0
        %2083 = vmatpush.xpose.msra.mxu0 0.0
        %2084 = vmatpush.xpose.msra.mxu0 0.0
        %2085 = vmatpush.xpose.msra.mxu0 0.0
        %2086 = vmatpush.xpose.msra.mxu0 0.0
        %2087 = vmatpush.xpose.msra.mxu0 0.0
        %2088 = vmatpush.xpose.msra.mxu0 0.0
        %2089 = vmatpush.xpose.msra.mxu0 %v420
        %2090 = vmatmul.f32.gmra.mxu0 %v2070
        %v2091 = vpop.f32.mrf.mxu0
        %v2092 = vadd.f32 %v548, %v2091
        %2093 = vdwg.mxu0
        %2094 = vmatpush.xpose.msra.mxu0 0.0
        %2095 = vmatpush.xpose.msra.mxu0 0.0
        %2096 = vmatpush.xpose.msra.mxu0 0.0
        %2097 = vmatpush.xpose.msra.mxu0 0.0
        %2098 = vmatpush.xpose.msra.mxu0 0.0
        %2099 = vmatpush.xpose.msra.mxu0 0.0
        %2100 = vmatpush.xpose.msra.mxu0 0.0
        %2101 = vmatpush.xpose.msra.mxu0 0.0
        %2102 = vmatpush.xpose.msra.mxu0 0.0
        %2103 = vmatpush.xpose.msra.mxu0 0.0
        %2104 = vmatpush.xpose.msra.mxu0 0.0
        %2105 = vmatpush.xpose.msra.mxu0 0.0
        %2106 = vmatpush.xpose.msra.mxu0 0.0
        %2107 = vmatpush.xpose.msra.mxu0 0.0
        %2108 = vmatpush.xpose.msra.mxu0 0.0
        %2109 = vmatpush.xpose.msra.mxu0 %v421
        %2110 = vmatmul.f32.gmra.mxu0 %v2071
        %v2111 = vpop.f32.mrf.mxu0
        %v2112 = vadd.f32 %v2092, %v2111
        %2113 = vdwg.mxu0
        %2115 = vst [vmem:[#allocation1] ss:$4 sm:$0xff] %v349
        %v2116 = vld.sshfl [vmem:[#allocation1] sm:$0xff pattern:$0x73625140]
        %v2117 = vld.sshfl [vmem:[#allocation1 + $0x8] sm:$0xff pattern:$0x73625140]
        %2120 = vmatpush.xpose.msra.mxu0 0.0
        %2121 = vmatpush.xpose.msra.mxu0 0.0
        %2122 = vmatpush.xpose.msra.mxu0 0.0
        %2123 = vmatpush.xpose.msra.mxu0 0.0
        %2124 = vmatpush.xpose.msra.mxu0 0.0
        %2125 = vmatpush.xpose.msra.mxu0 0.0
        %2126 = vmatpush.xpose.msra.mxu0 0.0
        %2127 = vmatpush.xpose.msra.mxu0 0.0
        %2128 = vmatpush.xpose.msra.mxu0 0.0
        %2129 = vmatpush.xpose.msra.mxu0 0.0
        %2130 = vmatpush.xpose.msra.mxu0 0.0
        %2131 = vmatpush.xpose.msra.mxu0 0.0
        %2132 = vmatpush.xpose.msra.mxu0 0.0
        %2133 = vmatpush.xpose.msra.mxu0 0.0
        %2134 = vmatpush.xpose.msra.mxu0 0.0
        %2135 = vmatpush.xpose.msra.mxu0 %v422
        %2136 = vmatmul.f32.gmra.mxu0 %v2116
        %v2137 = vpop.f32.mrf.mxu0
        %v2138 = vadd.f32 %v549, %v2137
        %2139 = vdwg.mxu0
        %2140 = vmatpush.xpose.msra.mxu0 0.0
        %2141 = vmatpush.xpose.msra.mxu0 0.0
        %2142 = vmatpush.xpose.msra.mxu0 0.0
        %2143 = vmatpush.xpose.msra.mxu0 0.0
        %2144 = vmatpush.xpose.msra.mxu0 0.0
        %2145 = vmatpush.xpose.msra.mxu0 0.0
        %2146 = vmatpush.xpose.msra.mxu0 0.0
        %2147 = vmatpush.xpose.msra.mxu0 0.0
        %2148 = vmatpush.xpose.msra.mxu0 0.0
        %2149 = vmatpush.xpose.msra.mxu0 0.0
        %2150 = vmatpush.xpose.msra.mxu0 0.0
        %2151 = vmatpush.xpose.msra.mxu0 0.0
        %2152 = vmatpush.xpose.msra.mxu0 0.0
        %2153 = vmatpush.xpose.msra.mxu0 0.0
        %2154 = vmatpush.xpose.msra.mxu0 0.0
        %2155 = vmatpush.xpose.msra.mxu0 %v423
        %2156 = vmatmul.f32.gmra.mxu0 %v2117
        %v2157 = vpop.f32.mrf.mxu0
        %v2158 = vadd.f32 %v2138, %v2157
        %2159 = vdwg.mxu0
        %2161 = vst [vmem:[#allocation1] ss:$4 sm:$0xff] %v350
        %v2162 = vld.sshfl [vmem:[#allocation1] sm:$0xff pattern:$0x73625140]
        %v2163 = vld.sshfl [vmem:[#allocation1 + $0x8] sm:$0xff pattern:$0x73625140]
        %2166 = vmatpush.xpose.msra.mxu0 0.0
        %2167 = vmatpush.xpose.msra.mxu0 0.0
        %2168 = vmatpush.xpose.msra.mxu0 0.0
        %2169 = vmatpush.xpose.msra.mxu0 0.0
        %2170 = vmatpush.xpose.msra.mxu0 0.0
        %2171 = vmatpush.xpose.msra.mxu0 0.0
        %2172 = vmatpush.xpose.msra.mxu0 0.0
        %2173 = vmatpush.xpose.msra.mxu0 0.0
        %2174 = vmatpush.xpose.msra.mxu0 0.0
        %2175 = vmatpush.xpose.msra.mxu0 0.0
        %2176 = vmatpush.xpose.msra.mxu0 0.0
        %2177 = vmatpush.xpose.msra.mxu0 0.0
        %2178 = vmatpush.xpose.msra.mxu0 0.0
        %2179 = vmatpush.xpose.msra.mxu0 0.0
        %2180 = vmatpush.xpose.msra.mxu0 0.0
        %2181 = vmatpush.xpose.msra.mxu0 %v424
        %2182 = vmatmul.f32.gmra.mxu0 %v2162
        %v2183 = vpop.f32.mrf.mxu0
        %v2184 = vadd.f32 %v550, %v2183
        %2185 = vdwg.mxu0
        %2186 = vmatpush.xpose.msra.mxu0 0.0
        %2187 = vmatpush.xpose.msra.mxu0 0.0
        %2188 = vmatpush.xpose.msra.mxu0 0.0
        %2189 = vmatpush.xpose.msra.mxu0 0.0
        %2190 = vmatpush.xpose.msra.mxu0 0.0
        %2191 = vmatpush.xpose.msra.mxu0 0.0
        %2192 = vmatpush.xpose.msra.mxu0 0.0
        %2193 = vmatpush.xpose.msra.mxu0 0.0
        %2194 = vmatpush.xpose.msra.mxu0 0.0
        %2195 = vmatpush.xpose.msra.mxu0 0.0
        %2196 = vmatpush.xpose.msra.mxu0 0.0
        %2197 = vmatpush.xpose.msra.mxu0 0.0
        %2198 = vmatpush.xpose.msra.mxu0 0.0
        %2199 = vmatpush.xpose.msra.mxu0 0.0
        %2200 = vmatpush.xpose.msra.mxu0 0.0
        %2201 = vmatpush.xpose.msra.mxu0 %v425
        %2202 = vmatmul.f32.gmra.mxu0 %v2163
        %v2203 = vpop.f32.mrf.mxu0
        %v2204 = vadd.f32 %v2184, %v2203
        %2205 = vdwg.mxu0
        %2207 = vst [vmem:[#allocation1] ss:$4 sm:$0xff] %v351
        %v2208 = vld.sshfl [vmem:[#allocation1] sm:$0xff pattern:$0x73625140]
        %v2209 = vld.sshfl [vmem:[#allocation1 + $0x8] sm:$0xff pattern:$0x73625140]
        %2212 = vmatpush.xpose.msra.mxu0 0.0
        %2213 = vmatpush.xpose.msra.mxu0 0.0
        %2214 = vmatpush.xpose.msra.mxu0 0.0
        %2215 = vmatpush.xpose.msra.mxu0 0.0
        %2216 = vmatpush.xpose.msra.mxu0 0.0
        %2217 = vmatpush.xpose.msra.mxu0 0.0
        %2218 = vmatpush.xpose.msra.mxu0 0.0
        %2219 = vmatpush.xpose.msra.mxu0 0.0
        %2220 = vmatpush.xpose.msra.mxu0 0.0
        %2221 = vmatpush.xpose.msra.mxu0 0.0
        %2222 = vmatpush.xpose.msra.mxu0 0.0
        %2223 = vmatpush.xpose.msra.mxu0 0.0
        %2224 = vmatpush.xpose.msra.mxu0 0.0
        %2225 = vmatpush.xpose.msra.mxu0 0.0
        %2226 = vmatpush.xpose.msra.mxu0 0.0
        %2227 = vmatpush.xpose.msra.mxu0 %v426
        %2228 = vmatmul.f32.gmra.mxu0 %v2208
        %v2229 = vpop.f32.mrf.mxu0
        %v2230 = vadd.f32 %v551, %v2229
        %2231 = vdwg.mxu0
        %2232 = vmatpush.xpose.msra.mxu0 0.0
        %2233 = vmatpush.xpose.msra.mxu0 0.0
        %2234 = vmatpush.xpose.msra.mxu0 0.0
        %2235 = vmatpush.xpose.msra.mxu0 0.0
        %2236 = vmatpush.xpose.msra.mxu0 0.0
        %2237 = vmatpush.xpose.msra.mxu0 0.0
        %2238 = vmatpush.xpose.msra.mxu0 0.0
        %2239 = vmatpush.xpose.msra.mxu0 0.0
        %2240 = vmatpush.xpose.msra.mxu0 0.0
        %2241 = vmatpush.xpose.msra.mxu0 0.0
        %2242 = vmatpush.xpose.msra.mxu0 0.0
        %2243 = vmatpush.xpose.msra.mxu0 0.0
        %2244 = vmatpush.xpose.msra.mxu0 0.0
        %2245 = vmatpush.xpose.msra.mxu0 0.0
        %2246 = vmatpush.xpose.msra.mxu0 0.0
        %2247 = vmatpush.xpose.msra.mxu0 %v427
        %2248 = vmatmul.f32.gmra.mxu0 %v2209
        %v2249 = vpop.f32.mrf.mxu0
        %v2250 = vadd.f32 %v2230, %v2249
        %2251 = vdwg.mxu0
        %2253 = vst [vmem:[#allocation1] ss:$4 sm:$0xff] %v352
        %v2254 = vld.sshfl [vmem:[#allocation1] sm:$0xff pattern:$0x73625140]
        %v2255 = vld.sshfl [vmem:[#allocation1 + $0x8] sm:$0xff pattern:$0x73625140]
        %2258 = vmatpush.xpose.msra.mxu0 0.0
        %2259 = vmatpush.xpose.msra.mxu0 0.0
        %2260 = vmatpush.xpose.msra.mxu0 0.0
        %2261 = vmatpush.xpose.msra.mxu0 0.0
        %2262 = vmatpush.xpose.msra.mxu0 0.0
        %2263 = vmatpush.xpose.msra.mxu0 0.0
        %2264 = vmatpush.xpose.msra.mxu0 0.0
        %2265 = vmatpush.xpose.msra.mxu0 0.0
        %2266 = vmatpush.xpose.msra.mxu0 0.0
        %2267 = vmatpush.xpose.msra.mxu0 0.0
        %2268 = vmatpush.xpose.msra.mxu0 0.0
        %2269 = vmatpush.xpose.msra.mxu0 0.0
        %2270 = vmatpush.xpose.msra.mxu0 0.0
        %2271 = vmatpush.xpose.msra.mxu0 0.0
        %2272 = vmatpush.xpose.msra.mxu0 0.0
        %2273 = vmatpush.xpose.msra.mxu0 %v428
        %2274 = vmatmul.f32.gmra.mxu0 %v2254
        %v2275 = vpop.f32.mrf.mxu0
        %v2276 = vadd.f32 %v552, %v2275
        %2277 = vdwg.mxu0
        %2278 = vmatpush.xpose.msra.mxu0 0.0
        %2279 = vmatpush.xpose.msra.mxu0 0.0
        %2280 = vmatpush.xpose.msra.mxu0 0.0
        %2281 = vmatpush.xpose.msra.mxu0 0.0
        %2282 = vmatpush.xpose.msra.mxu0 0.0
        %2283 = vmatpush.xpose.msra.mxu0 0.0
        %2284 = vmatpush.xpose.msra.mxu0 0.0
        %2285 = vmatpush.xpose.msra.mxu0 0.0
        %2286 = vmatpush.xpose.msra.mxu0 0.0
        %2287 = vmatpush.xpose.msra.mxu0 0.0
        %2288 = vmatpush.xpose.msra.mxu0 0.0
        %2289 = vmatpush.xpose.msra.mxu0 0.0
        %2290 = vmatpush.xpose.msra.mxu0 0.0
        %2291 = vmatpush.xpose.msra.mxu0 0.0
        %2292 = vmatpush.xpose.msra.mxu0 0.0
        %2293 = vmatpush.xpose.msra.mxu0 %v429
        %2294 = vmatmul.f32.gmra.mxu0 %v2255
        %v2295 = vpop.f32.mrf.mxu0
        %v2296 = vadd.f32 %v2276, %v2295
        %2297 = vdwg.mxu0
        %2299 = vst [vmem:[#allocation1] ss:$4 sm:$0xff] %v353
        %v2300 = vld.sshfl [vmem:[#allocation1] sm:$0xff pattern:$0x73625140]
        %v2301 = vld.sshfl [vmem:[#allocation1 + $0x8] sm:$0xff pattern:$0x73625140]
        %2304 = vmatpush.xpose.msra.mxu0 0.0
        %2305 = vmatpush.xpose.msra.mxu0 0.0
        %2306 = vmatpush.xpose.msra.mxu0 0.0
        %2307 = vmatpush.xpose.msra.mxu0 0.0
        %2308 = vmatpush.xpose.msra.mxu0 0.0
        %2309 = vmatpush.xpose.msra.mxu0 0.0
        %2310 = vmatpush.xpose.msra.mxu0 0.0
        %2311 = vmatpush.xpose.msra.mxu0 0.0
        %2312 = vmatpush.xpose.msra.mxu0 0.0
        %2313 = vmatpush.xpose.msra.mxu0 0.0
        %2314 = vmatpush.xpose.msra.mxu0 0.0
        %2315 = vmatpush.xpose.msra.mxu0 0.0
        %2316 = vmatpush.xpose.msra.mxu0 0.0
        %2317 = vmatpush.xpose.msra.mxu0 0.0
        %2318 = vmatpush.xpose.msra.mxu0 0.0
        %2319 = vmatpush.xpose.msra.mxu0 %v430
        %2320 = vmatmul.f32.gmra.mxu0 %v2300
        %v2321 = vpop.f32.mrf.mxu0
        %v2322 = vadd.f32 %v553, %v2321
        %2323 = vdwg.mxu0
        %2324 = vmatpush.xpose.msra.mxu0 0.0
        %2325 = vmatpush.xpose.msra.mxu0 0.0
        %2326 = vmatpush.xpose.msra.mxu0 0.0
        %2327 = vmatpush.xpose.msra.mxu0 0.0
        %2328 = vmatpush.xpose.msra.mxu0 0.0
        %2329 = vmatpush.xpose.msra.mxu0 0.0
        %2330 = vmatpush.xpose.msra.mxu0 0.0
        %2331 = vmatpush.xpose.msra.mxu0 0.0
        %2332 = vmatpush.xpose.msra.mxu0 0.0
        %2333 = vmatpush.xpose.msra.mxu0 0.0
        %2334 = vmatpush.xpose.msra.mxu0 0.0
        %2335 = vmatpush.xpose.msra.mxu0 0.0
        %2336 = vmatpush.xpose.msra.mxu0 0.0
        %2337 = vmatpush.xpose.msra.mxu0 0.0
        %2338 = vmatpush.xpose.msra.mxu0 0.0
        %2339 = vmatpush.xpose.msra.mxu0 %v431
        %2340 = vmatmul.f32.gmra.mxu0 %v2301
        %v2341 = vpop.f32.mrf.mxu0
        %v2342 = vadd.f32 %v2322, %v2341
        %2343 = vdwg.mxu0
        %2345 = vst [vmem:[#allocation1] ss:$4 sm:$0xff] %v354
        %v2346 = vld.sshfl [vmem:[#allocation1] sm:$0xff pattern:$0x73625140]
        %v2347 = vld.sshfl [vmem:[#allocation1 + $0x8] sm:$0xff pattern:$0x73625140]
        %2350 = vmatpush.xpose.msra.mxu0 0.0
        %2351 = vmatpush.xpose.msra.mxu0 0.0
        %2352 = vmatpush.xpose.msra.mxu0 0.0
        %2353 = vmatpush.xpose.msra.mxu0 0.0
        %2354 = vmatpush.xpose.msra.mxu0 0.0
        %2355 = vmatpush.xpose.msra.mxu0 0.0
        %2356 = vmatpush.xpose.msra.mxu0 0.0
        %2357 = vmatpush.xpose.msra.mxu0 0.0
        %2358 = vmatpush.xpose.msra.mxu0 0.0
        %2359 = vmatpush.xpose.msra.mxu0 0.0
        %2360 = vmatpush.xpose.msra.mxu0 0.0
        %2361 = vmatpush.xpose.msra.mxu0 0.0
        %2362 = vmatpush.xpose.msra.mxu0 0.0
        %2363 = vmatpush.xpose.msra.mxu0 0.0
        %2364 = vmatpush.xpose.msra.mxu0 0.0
        %2365 = vmatpush.xpose.msra.mxu0 %v432
        %2366 = vmatmul.f32.gmra.mxu0 %v2346
        %v2367 = vpop.f32.mrf.mxu0
        %v2368 = vadd.f32 %v554, %v2367
        %2369 = vdwg.mxu0
        %2370 = vmatpush.xpose.msra.mxu0 0.0
        %2371 = vmatpush.xpose.msra.mxu0 0.0
        %2372 = vmatpush.xpose.msra.mxu0 0.0
        %2373 = vmatpush.xpose.msra.mxu0 0.0
        %2374 = vmatpush.xpose.msra.mxu0 0.0
        %2375 = vmatpush.xpose.msra.mxu0 0.0
        %2376 = vmatpush.xpose.msra.mxu0 0.0
        %2377 = vmatpush.xpose.msra.mxu0 0.0
        %2378 = vmatpush.xpose.msra.mxu0 0.0
        %2379 = vmatpush.xpose.msra.mxu0 0.0
        %2380 = vmatpush.xpose.msra.mxu0 0.0
        %2381 = vmatpush.xpose.msra.mxu0 0.0
        %2382 = vmatpush.xpose.msra.mxu0 0.0
        %2383 = vmatpush.xpose.msra.mxu0 0.0
        %2384 = vmatpush.xpose.msra.mxu0 0.0
        %2385 = vmatpush.xpose.msra.mxu0 %v433
        %2386 = vmatmul.f32.gmra.mxu0 %v2347
        %v2387 = vpop.f32.mrf.mxu0
        %v2388 = vadd.f32 %v2368, %v2387
        %2389 = vdwg.mxu0
        %2391 = vst [vmem:[#allocation1] ss:$4 sm:$0xff] %v355
        %v2392 = vld.sshfl [vmem:[#allocation1] sm:$0xff pattern:$0x73625140]
        %v2393 = vld.sshfl [vmem:[#allocation1 + $0x8] sm:$0xff pattern:$0x73625140]
        %2396 = vmatpush.xpose.msra.mxu0 0.0
        %2397 = vmatpush.xpose.msra.mxu0 0.0
        %2398 = vmatpush.xpose.msra.mxu0 0.0
        %2399 = vmatpush.xpose.msra.mxu0 0.0
        %2400 = vmatpush.xpose.msra.mxu0 0.0
        %2401 = vmatpush.xpose.msra.mxu0 0.0
        %2402 = vmatpush.xpose.msra.mxu0 0.0
        %2403 = vmatpush.xpose.msra.mxu0 0.0
        %2404 = vmatpush.xpose.msra.mxu0 0.0
        %2405 = vmatpush.xpose.msra.mxu0 0.0
        %2406 = vmatpush.xpose.msra.mxu0 0.0
        %2407 = vmatpush.xpose.msra.mxu0 0.0
        %2408 = vmatpush.xpose.msra.mxu0 0.0
        %2409 = vmatpush.xpose.msra.mxu0 0.0
        %2410 = vmatpush.xpose.msra.mxu0 0.0
        %2411 = vmatpush.xpose.msra.mxu0 %v434
        %2412 = vmatmul.f32.gmra.mxu0 %v2392
        %v2413 = vpop.f32.mrf.mxu0
        %v2414 = vadd.f32 %v555, %v2413
        %2415 = vdwg.mxu0
        %2416 = vmatpush.xpose.msra.mxu0 0.0
        %2417 = vmatpush.xpose.msra.mxu0 0.0
        %2418 = vmatpush.xpose.msra.mxu0 0.0
        %2419 = vmatpush.xpose.msra.mxu0 0.0
        %2420 = vmatpush.xpose.msra.mxu0 0.0
        %2421 = vmatpush.xpose.msra.mxu0 0.0
        %2422 = vmatpush.xpose.msra.mxu0 0.0
        %2423 = vmatpush.xpose.msra.mxu0 0.0
        %2424 = vmatpush.xpose.msra.mxu0 0.0
        %2425 = vmatpush.xpose.msra.mxu0 0.0
        %2426 = vmatpush.xpose.msra.mxu0 0.0
        %2427 = vmatpush.xpose.msra.mxu0 0.0
        %2428 = vmatpush.xpose.msra.mxu0 0.0
        %2429 = vmatpush.xpose.msra.mxu0 0.0
        %2430 = vmatpush.xpose.msra.mxu0 0.0
        %2431 = vmatpush.xpose.msra.mxu0 %v435
        %2432 = vmatmul.f32.gmra.mxu0 %v2393
        %v2433 = vpop.f32.mrf.mxu0
        %v2434 = vadd.f32 %v2414, %v2433
        %2435 = vdwg.mxu0
        %v2436 = vmax.f32 %v640, 0.0
        %v2437 = vmax.f32 %v686, 0.0
        %v2438 = vmax.f32 %v732, 0.0
        %v2439 = vmax.f32 %v778, 0.0
        %v2440 = vmax.f32 %v824, 0.0
        %v2441 = vmax.f32 %v870, 0.0
        %v2442 = vmax.f32 %v916, 0.0
        %v2443 = vmax.f32 %v962, 0.0
        %v2444 = vmax.f32 %v1008, 0.0
        %v2445 = vmax.f32 %v1054, 0.0
        %v2446 = vmax.f32 %v1100, 0.0
        %v2447 = vmax.f32 %v1146, 0.0
        %v2448 = vmax.f32 %v1192, 0.0
        %v2449 = vmax.f32 %v1238, 0.0
        %v2450 = vmax.f32 %v1284, 0.0
        %v2451 = vmax.f32 %v1330, 0.0
        %v2452 = vmax.f32 %v1376, 0.0
        %v2453 = vmax.f32 %v1422, 0.0
        %v2454 = vmax.f32 %v1468, 0.0
        %v2455 = vmax.f32 %v1514, 0.0
        %v2456 = vmax.f32 %v1560, 0.0
        %v2457 = vmax.f32 %v1606, 0.0
        %v2458 = vmax.f32 %v1652, 0.0
        %v2459 = vmax.f32 %v1698, 0.0
        %v2460 = vmax.f32 %v1744, 0.0
        %v2461 = vmax.f32 %v1790, 0.0
        %v2462 = vmax.f32 %v1836, 0.0
        %v2463 = vmax.f32 %v1882, 0.0
        %v2464 = vmax.f32 %v1928, 0.0
        %v2465 = vmax.f32 %v1974, 0.0
        %v2466 = vmax.f32 %v2020, 0.0
        %v2467 = vmax.f32 %v2066, 0.0
        %v2468 = vmax.f32 %v2112, 0.0
        %v2469 = vmax.f32 %v2158, 0.0
        %v2470 = vmax.f32 %v2204, 0.0
        %v2471 = vmax.f32 %v2250, 0.0
        %v2472 = vmax.f32 %v2296, 0.0
        %v2473 = vmax.f32 %v2342, 0.0
        %v2474 = vmax.f32 %v2388, 0.0
        %v2475 = vmax.f32 %v2434, 0.0
        %v2476 = vld [vmem:[%s251] sm:$0xff]
        %v2477 = vld [vmem:[%s251 + $0x8] sm:$0xff]
        %v2478 = vld [vmem:[%s251 + $0x10] sm:$0xff]
        %v2479 = vld [vmem:[%s251 + $0x18] sm:$0xff]
        %v2480 = vld [vmem:[%s251 + $0x20] sm:$0xff]
        %v2481 = vld [vmem:[%s251 + $0x28] sm:$0xff]
        %v2482 = vld [vmem:[%s251 + $0x30] sm:$0xff]
        %v2483 = vld [vmem:[%s251 + $0x38] sm:$0xff]
        %v2484 = vld [vmem:[%s251 + $0x40] sm:$0xff]
        %v2485 = vld [vmem:[%s251 + $0x48] sm:$0xff]
        %v2486 = vld [vmem:[%s251 + $0x50] sm:$0xff]
        %v2487 = vld [vmem:[%s251 + $0x58] sm:$0xff]
        %v2488 = vld [vmem:[%s251 + $0x60] sm:$0xff]
        %v2489 = vld [vmem:[%s251 + $0x68] sm:$0xff]
        %v2490 = vld [vmem:[%s251 + $0x70] sm:$0xff]
        %v2491 = vld [vmem:[%s251 + $0x78] sm:$0xff]
        %v2492 = vld [vmem:[%s251 + $0x80] sm:$0xff]
        %v2493 = vld [vmem:[%s251 + $0x88] sm:$0xff]
        %v2494 = vld [vmem:[%s251 + $0x90] sm:$0xff]
        %v2495 = vld [vmem:[%s251 + $0x98] sm:$0xff]
        %v2496 = vld [vmem:[%s251 + $0xa0] sm:$0xff]
        %v2497 = vld [vmem:[%s251 + $0xa8] sm:$0xff]
        %v2498 = vld [vmem:[%s251 + $0xb0] sm:$0xff]
        %v2499 = vld [vmem:[%s251 + $0xb8] sm:$0xff]
        %v2500 = vld [vmem:[%s251 + $0xc0] sm:$0xff]
        %v2501 = vld [vmem:[%s251 + $0xc8] sm:$0xff]
        %v2502 = vld [vmem:[%s251 + $0xd0] sm:$0xff]
        %v2503 = vld [vmem:[%s251 + $0xd8] sm:$0xff]
        %v2504 = vld [vmem:[%s251 + $0xe0] sm:$0xff]
        %v2505 = vld [vmem:[%s251 + $0xe8] sm:$0xff]
        %v2506 = vld [vmem:[%s251 + $0xf0] sm:$0xff]
        %v2507 = vld [vmem:[%s251 + $0xf8] sm:$0xff]
        %v2508 = vld [vmem:[%s251 + $0x100] sm:$0xff]
        %v2509 = vld [vmem:[%s251 + $0x108] sm:$0xff]
        %v2510 = vld [vmem:[%s251 + $0x110] sm:$0xff]
        %v2511 = vld [vmem:[%s251 + $0x118] sm:$0xff]
        %v2512 = vld [vmem:[%s251 + $0x120] sm:$0xff]
        %v2513 = vld [vmem:[%s251 + $0x128] sm:$0xff]
        %v2514 = vld [vmem:[%s251 + $0x130] sm:$0xff]
        %v2515 = vld [vmem:[%s251 + $0x138] sm:$0xff]
        %vm2516 = vcmask 64512
        %v2518 = vsel %vm2516, %v2436, 0
        %2520 = vmatpush.msra.mxu0 0.0
        %2521 = vmatpush.msra.mxu0 0.0
        %2522 = vmatpush.msra.mxu0 0.0
        %2523 = vmatpush.msra.mxu0 0.0
        %2524 = vmatpush.msra.mxu0 0.0
        %2525 = vmatpush.msra.mxu0 0.0
        %2526 = vmatpush.msra.mxu0 0.0
        %2527 = vmatpush.msra.mxu0 0.0
        %2528 = vmatpush.msra.mxu0 0.0
        %2529 = vmatpush.msra.mxu0 0.0
        %2530 = vmatpush.msra.mxu0 0.0
        %2531 = vmatpush.msra.mxu0 0.0
        %2532 = vmatpush.msra.mxu0 0.0
        %2533 = vmatpush.msra.mxu0 0.0
        %2534 = vmatpush.msra.mxu0 0.0
        %2535 = vmatpush.msra.mxu0 %v2476
        %2536 = vmatmul.f32.gmra.mxu0 %v2518
        %v2537 = vpop.f32.mrf.mxu0
        %v2538 = vadd.f32 0.0, %v2537
        %2539 = vdwg.mxu0
        %v2541 = vsel %vm2516, %v2437, 0
        %2543 = vmatpush.msra.mxu0 0.0
        %2544 = vmatpush.msra.mxu0 0.0
        %2545 = vmatpush.msra.mxu0 0.0
        %2546 = vmatpush.msra.mxu0 0.0
        %2547 = vmatpush.msra.mxu0 0.0
        %2548 = vmatpush.msra.mxu0 0.0
        %2549 = vmatpush.msra.mxu0 0.0
        %2550 = vmatpush.msra.mxu0 0.0
        %2551 = vmatpush.msra.mxu0 0.0
        %2552 = vmatpush.msra.mxu0 0.0
        %2553 = vmatpush.msra.mxu0 0.0
        %2554 = vmatpush.msra.mxu0 0.0
        %2555 = vmatpush.msra.mxu0 0.0
        %2556 = vmatpush.msra.mxu0 0.0
        %2557 = vmatpush.msra.mxu0 0.0
        %2558 = vmatpush.msra.mxu0 %v2477
        %2559 = vmatmul.f32.gmra.mxu0 %v2541
        %v2560 = vpop.f32.mrf.mxu0
        %v2561 = vadd.f32 0.0, %v2560
        %2562 = vdwg.mxu0
        %v2564 = vsel %vm2516, %v2438, 0
        %2566 = vmatpush.msra.mxu0 0.0
        %2567 = vmatpush.msra.mxu0 0.0
        %2568 = vmatpush.msra.mxu0 0.0
        %2569 = vmatpush.msra.mxu0 0.0
        %2570 = vmatpush.msra.mxu0 0.0
        %2571 = vmatpush.msra.mxu0 0.0
        %2572 = vmatpush.msra.mxu0 0.0
        %2573 = vmatpush.msra.mxu0 0.0
        %2574 = vmatpush.msra.mxu0 0.0
        %2575 = vmatpush.msra.mxu0 0.0
        %2576 = vmatpush.msra.mxu0 0.0
        %2577 = vmatpush.msra.mxu0 0.0
        %2578 = vmatpush.msra.mxu0 0.0
        %2579 = vmatpush.msra.mxu0 0.0
        %2580 = vmatpush.msra.mxu0 0.0
        %2581 = vmatpush.msra.mxu0 %v2478
        %2582 = vmatmul.f32.gmra.mxu0 %v2564
        %v2583 = vpop.f32.mrf.mxu0
        %v2584 = vadd.f32 0.0, %v2583
        %2585 = vdwg.mxu0
        %v2587 = vsel %vm2516, %v2439, 0
        %2589 = vmatpush.msra.mxu0 0.0
        %2590 = vmatpush.msra.mxu0 0.0
        %2591 = vmatpush.msra.mxu0 0.0
        %2592 = vmatpush.msra.mxu0 0.0
        %2593 = vmatpush.msra.mxu0 0.0
        %2594 = vmatpush.msra.mxu0 0.0
        %2595 = vmatpush.msra.mxu0 0.0
        %2596 = vmatpush.msra.mxu0 0.0
        %2597 = vmatpush.msra.mxu0 0.0
        %2598 = vmatpush.msra.mxu0 0.0
        %2599 = vmatpush.msra.mxu0 0.0
        %2600 = vmatpush.msra.mxu0 0.0
        %2601 = vmatpush.msra.mxu0 0.0
        %2602 = vmatpush.msra.mxu0 0.0
        %2603 = vmatpush.msra.mxu0 0.0
        %2604 = vmatpush.msra.mxu0 %v2479
        %2605 = vmatmul.f32.gmra.mxu0 %v2587
        %v2606 = vpop.f32.mrf.mxu0
        %v2607 = vadd.f32 0.0, %v2606
        %2608 = vdwg.mxu0
        %v2610 = vsel %vm2516, %v2440, 0
        %2612 = vmatpush.msra.mxu0 0.0
        %2613 = vmatpush.msra.mxu0 0.0
        %2614 = vmatpush.msra.mxu0 0.0
        %2615 = vmatpush.msra.mxu0 0.0
        %2616 = vmatpush.msra.mxu0 0.0
        %2617 = vmatpush.msra.mxu0 0.0
        %2618 = vmatpush.msra.mxu0 0.0
        %2619 = vmatpush.msra.mxu0 0.0
        %2620 = vmatpush.msra.mxu0 0.0
        %2621 = vmatpush.msra.mxu0 0.0
        %2622 = vmatpush.msra.mxu0 0.0
        %2623 = vmatpush.msra.mxu0 0.0
        %2624 = vmatpush.msra.mxu0 0.0
        %2625 = vmatpush.msra.mxu0 0.0
        %2626 = vmatpush.msra.mxu0 0.0
        %2627 = vmatpush.msra.mxu0 %v2480
        %2628 = vmatmul.f32.gmra.mxu0 %v2610
        %v2629 = vpop.f32.mrf.mxu0
        %v2630 = vadd.f32 0.0, %v2629
        %2631 = vdwg.mxu0
        %v2633 = vsel %vm2516, %v2441, 0
        %2635 = vmatpush.msra.mxu0 0.0
        %2636 = vmatpush.msra.mxu0 0.0
        %2637 = vmatpush.msra.mxu0 0.0
        %2638 = vmatpush.msra.mxu0 0.0
        %2639 = vmatpush.msra.mxu0 0.0
        %2640 = vmatpush.msra.mxu0 0.0
        %2641 = vmatpush.msra.mxu0 0.0
        %2642 = vmatpush.msra.mxu0 0.0
        %2643 = vmatpush.msra.mxu0 0.0
        %2644 = vmatpush.msra.mxu0 0.0
        %2645 = vmatpush.msra.mxu0 0.0
        %2646 = vmatpush.msra.mxu0 0.0
        %2647 = vmatpush.msra.mxu0 0.0
        %2648 = vmatpush.msra.mxu0 0.0
        %2649 = vmatpush.msra.mxu0 0.0
        %2650 = vmatpush.msra.mxu0 %v2481
        %2651 = vmatmul.f32.gmra.mxu0 %v2633
        %v2652 = vpop.f32.mrf.mxu0
        %v2653 = vadd.f32 0.0, %v2652
        %2654 = vdwg.mxu0
        %v2656 = vsel %vm2516, %v2442, 0
        %2658 = vmatpush.msra.mxu0 0.0
        %2659 = vmatpush.msra.mxu0 0.0
        %2660 = vmatpush.msra.mxu0 0.0
        %2661 = vmatpush.msra.mxu0 0.0
        %2662 = vmatpush.msra.mxu0 0.0
        %2663 = vmatpush.msra.mxu0 0.0
        %2664 = vmatpush.msra.mxu0 0.0
        %2665 = vmatpush.msra.mxu0 0.0
        %2666 = vmatpush.msra.mxu0 0.0
        %2667 = vmatpush.msra.mxu0 0.0
        %2668 = vmatpush.msra.mxu0 0.0
        %2669 = vmatpush.msra.mxu0 0.0
        %2670 = vmatpush.msra.mxu0 0.0
        %2671 = vmatpush.msra.mxu0 0.0
        %2672 = vmatpush.msra.mxu0 0.0
        %2673 = vmatpush.msra.mxu0 %v2482
        %2674 = vmatmul.f32.gmra.mxu0 %v2656
        %v2675 = vpop.f32.mrf.mxu0
        %v2676 = vadd.f32 0.0, %v2675
        %2677 = vdwg.mxu0
        %v2679 = vsel %vm2516, %v2443, 0
        %2681 = vmatpush.msra.mxu0 0.0
        %2682 = vmatpush.msra.mxu0 0.0
        %2683 = vmatpush.msra.mxu0 0.0
        %2684 = vmatpush.msra.mxu0 0.0
        %2685 = vmatpush.msra.mxu0 0.0
        %2686 = vmatpush.msra.mxu0 0.0
        %2687 = vmatpush.msra.mxu0 0.0
        %2688 = vmatpush.msra.mxu0 0.0
        %2689 = vmatpush.msra.mxu0 0.0
        %2690 = vmatpush.msra.mxu0 0.0
        %2691 = vmatpush.msra.mxu0 0.0
        %2692 = vmatpush.msra.mxu0 0.0
        %2693 = vmatpush.msra.mxu0 0.0
        %2694 = vmatpush.msra.mxu0 0.0
        %2695 = vmatpush.msra.mxu0 0.0
        %2696 = vmatpush.msra.mxu0 %v2483
        %2697 = vmatmul.f32.gmra.mxu0 %v2679
        %v2698 = vpop.f32.mrf.mxu0
        %v2699 = vadd.f32 0.0, %v2698
        %2700 = vdwg.mxu0
        %v2702 = vsel %vm2516, %v2444, 0
        %2704 = vmatpush.msra.mxu0 0.0
        %2705 = vmatpush.msra.mxu0 0.0
        %2706 = vmatpush.msra.mxu0 0.0
        %2707 = vmatpush.msra.mxu0 0.0
        %2708 = vmatpush.msra.mxu0 0.0
        %2709 = vmatpush.msra.mxu0 0.0
        %2710 = vmatpush.msra.mxu0 0.0
        %2711 = vmatpush.msra.mxu0 0.0
        %2712 = vmatpush.msra.mxu0 0.0
        %2713 = vmatpush.msra.mxu0 0.0
        %2714 = vmatpush.msra.mxu0 0.0
        %2715 = vmatpush.msra.mxu0 0.0
        %2716 = vmatpush.msra.mxu0 0.0
        %2717 = vmatpush.msra.mxu0 0.0
        %2718 = vmatpush.msra.mxu0 0.0
        %2719 = vmatpush.msra.mxu0 %v2484
        %2720 = vmatmul.f32.gmra.mxu0 %v2702
        %v2721 = vpop.f32.mrf.mxu0
        %v2722 = vadd.f32 0.0, %v2721
        %2723 = vdwg.mxu0
        %v2725 = vsel %vm2516, %v2445, 0
        %2727 = vmatpush.msra.mxu0 0.0
        %2728 = vmatpush.msra.mxu0 0.0
        %2729 = vmatpush.msra.mxu0 0.0
        %2730 = vmatpush.msra.mxu0 0.0
        %2731 = vmatpush.msra.mxu0 0.0
        %2732 = vmatpush.msra.mxu0 0.0
        %2733 = vmatpush.msra.mxu0 0.0
        %2734 = vmatpush.msra.mxu0 0.0
        %2735 = vmatpush.msra.mxu0 0.0
        %2736 = vmatpush.msra.mxu0 0.0
        %2737 = vmatpush.msra.mxu0 0.0
        %2738 = vmatpush.msra.mxu0 0.0
        %2739 = vmatpush.msra.mxu0 0.0
        %2740 = vmatpush.msra.mxu0 0.0
        %2741 = vmatpush.msra.mxu0 0.0
        %2742 = vmatpush.msra.mxu0 %v2485
        %2743 = vmatmul.f32.gmra.mxu0 %v2725
        %v2744 = vpop.f32.mrf.mxu0
        %v2745 = vadd.f32 0.0, %v2744
        %2746 = vdwg.mxu0
        %v2748 = vsel %vm2516, %v2446, 0
        %2750 = vmatpush.msra.mxu0 0.0
        %2751 = vmatpush.msra.mxu0 0.0
        %2752 = vmatpush.msra.mxu0 0.0
        %2753 = vmatpush.msra.mxu0 0.0
        %2754 = vmatpush.msra.mxu0 0.0
        %2755 = vmatpush.msra.mxu0 0.0
        %2756 = vmatpush.msra.mxu0 0.0
        %2757 = vmatpush.msra.mxu0 0.0
        %2758 = vmatpush.msra.mxu0 0.0
        %2759 = vmatpush.msra.mxu0 0.0
        %2760 = vmatpush.msra.mxu0 0.0
        %2761 = vmatpush.msra.mxu0 0.0
        %2762 = vmatpush.msra.mxu0 0.0
        %2763 = vmatpush.msra.mxu0 0.0
        %2764 = vmatpush.msra.mxu0 0.0
        %2765 = vmatpush.msra.mxu0 %v2486
        %2766 = vmatmul.f32.gmra.mxu0 %v2748
        %v2767 = vpop.f32.mrf.mxu0
        %v2768 = vadd.f32 0.0, %v2767
        %2769 = vdwg.mxu0
        %v2771 = vsel %vm2516, %v2447, 0
        %2773 = vmatpush.msra.mxu0 0.0
        %2774 = vmatpush.msra.mxu0 0.0
        %2775 = vmatpush.msra.mxu0 0.0
        %2776 = vmatpush.msra.mxu0 0.0
        %2777 = vmatpush.msra.mxu0 0.0
        %2778 = vmatpush.msra.mxu0 0.0
        %2779 = vmatpush.msra.mxu0 0.0
        %2780 = vmatpush.msra.mxu0 0.0
        %2781 = vmatpush.msra.mxu0 0.0
        %2782 = vmatpush.msra.mxu0 0.0
        %2783 = vmatpush.msra.mxu0 0.0
        %2784 = vmatpush.msra.mxu0 0.0
        %2785 = vmatpush.msra.mxu0 0.0
        %2786 = vmatpush.msra.mxu0 0.0
        %2787 = vmatpush.msra.mxu0 0.0
        %2788 = vmatpush.msra.mxu0 %v2487
        %2789 = vmatmul.f32.gmra.mxu0 %v2771
        %v2790 = vpop.f32.mrf.mxu0
        %v2791 = vadd.f32 0.0, %v2790
        %2792 = vdwg.mxu0
        %v2794 = vsel %vm2516, %v2448, 0
        %2796 = vmatpush.msra.mxu0 0.0
        %2797 = vmatpush.msra.mxu0 0.0
        %2798 = vmatpush.msra.mxu0 0.0
        %2799 = vmatpush.msra.mxu0 0.0
        %2800 = vmatpush.msra.mxu0 0.0
        %2801 = vmatpush.msra.mxu0 0.0
        %2802 = vmatpush.msra.mxu0 0.0
        %2803 = vmatpush.msra.mxu0 0.0
        %2804 = vmatpush.msra.mxu0 0.0
        %2805 = vmatpush.msra.mxu0 0.0
        %2806 = vmatpush.msra.mxu0 0.0
        %2807 = vmatpush.msra.mxu0 0.0
        %2808 = vmatpush.msra.mxu0 0.0
        %2809 = vmatpush.msra.mxu0 0.0
        %2810 = vmatpush.msra.mxu0 0.0
        %2811 = vmatpush.msra.mxu0 %v2488
        %2812 = vmatmul.f32.gmra.mxu0 %v2794
        %v2813 = vpop.f32.mrf.mxu0
        %v2814 = vadd.f32 0.0, %v2813
        %2815 = vdwg.mxu0
        %v2817 = vsel %vm2516, %v2449, 0
        %2819 = vmatpush.msra.mxu0 0.0
        %2820 = vmatpush.msra.mxu0 0.0
        %2821 = vmatpush.msra.mxu0 0.0
        %2822 = vmatpush.msra.mxu0 0.0
        %2823 = vmatpush.msra.mxu0 0.0
        %2824 = vmatpush.msra.mxu0 0.0
        %2825 = vmatpush.msra.mxu0 0.0
        %2826 = vmatpush.msra.mxu0 0.0
        %2827 = vmatpush.msra.mxu0 0.0
        %2828 = vmatpush.msra.mxu0 0.0
        %2829 = vmatpush.msra.mxu0 0.0
        %2830 = vmatpush.msra.mxu0 0.0
        %2831 = vmatpush.msra.mxu0 0.0
        %2832 = vmatpush.msra.mxu0 0.0
        %2833 = vmatpush.msra.mxu0 0.0
        %2834 = vmatpush.msra.mxu0 %v2489
        %2835 = vmatmul.f32.gmra.mxu0 %v2817
        %v2836 = vpop.f32.mrf.mxu0
        %v2837 = vadd.f32 0.0, %v2836
        %2838 = vdwg.mxu0
        %v2840 = vsel %vm2516, %v2450, 0
        %2842 = vmatpush.msra.mxu0 0.0
        %2843 = vmatpush.msra.mxu0 0.0
        %2844 = vmatpush.msra.mxu0 0.0
        %2845 = vmatpush.msra.mxu0 0.0
        %2846 = vmatpush.msra.mxu0 0.0
        %2847 = vmatpush.msra.mxu0 0.0
        %2848 = vmatpush.msra.mxu0 0.0
        %2849 = vmatpush.msra.mxu0 0.0
        %2850 = vmatpush.msra.mxu0 0.0
        %2851 = vmatpush.msra.mxu0 0.0
        %2852 = vmatpush.msra.mxu0 0.0
        %2853 = vmatpush.msra.mxu0 0.0
        %2854 = vmatpush.msra.mxu0 0.0
        %2855 = vmatpush.msra.mxu0 0.0
        %2856 = vmatpush.msra.mxu0 0.0
        %2857 = vmatpush.msra.mxu0 %v2490
        %2858 = vmatmul.f32.gmra.mxu0 %v2840
        %v2859 = vpop.f32.mrf.mxu0
        %v2860 = vadd.f32 0.0, %v2859
        %2861 = vdwg.mxu0
        %v2863 = vsel %vm2516, %v2451, 0
        %2865 = vmatpush.msra.mxu0 0.0
        %2866 = vmatpush.msra.mxu0 0.0
        %2867 = vmatpush.msra.mxu0 0.0
        %2868 = vmatpush.msra.mxu0 0.0
        %2869 = vmatpush.msra.mxu0 0.0
        %2870 = vmatpush.msra.mxu0 0.0
        %2871 = vmatpush.msra.mxu0 0.0
        %2872 = vmatpush.msra.mxu0 0.0
        %2873 = vmatpush.msra.mxu0 0.0
        %2874 = vmatpush.msra.mxu0 0.0
        %2875 = vmatpush.msra.mxu0 0.0
        %2876 = vmatpush.msra.mxu0 0.0
        %2877 = vmatpush.msra.mxu0 0.0
        %2878 = vmatpush.msra.mxu0 0.0
        %2879 = vmatpush.msra.mxu0 0.0
        %2880 = vmatpush.msra.mxu0 %v2491
        %2881 = vmatmul.f32.gmra.mxu0 %v2863
        %v2882 = vpop.f32.mrf.mxu0
        %v2883 = vadd.f32 0.0, %v2882
        %2884 = vdwg.mxu0
        %v2886 = vsel %vm2516, %v2452, 0
        %2888 = vmatpush.msra.mxu0 0.0
        %2889 = vmatpush.msra.mxu0 0.0
        %2890 = vmatpush.msra.mxu0 0.0
        %2891 = vmatpush.msra.mxu0 0.0
        %2892 = vmatpush.msra.mxu0 0.0
        %2893 = vmatpush.msra.mxu0 0.0
        %2894 = vmatpush.msra.mxu0 0.0
        %2895 = vmatpush.msra.mxu0 0.0
        %2896 = vmatpush.msra.mxu0 0.0
        %2897 = vmatpush.msra.mxu0 0.0
        %2898 = vmatpush.msra.mxu0 0.0
        %2899 = vmatpush.msra.mxu0 0.0
        %2900 = vmatpush.msra.mxu0 0.0
        %2901 = vmatpush.msra.mxu0 0.0
        %2902 = vmatpush.msra.mxu0 0.0
        %2903 = vmatpush.msra.mxu0 %v2492
        %2904 = vmatmul.f32.gmra.mxu0 %v2886
        %v2905 = vpop.f32.mrf.mxu0
        %v2906 = vadd.f32 0.0, %v2905
        %2907 = vdwg.mxu0
        %v2909 = vsel %vm2516, %v2453, 0
        %2911 = vmatpush.msra.mxu0 0.0
        %2912 = vmatpush.msra.mxu0 0.0
        %2913 = vmatpush.msra.mxu0 0.0
        %2914 = vmatpush.msra.mxu0 0.0
        %2915 = vmatpush.msra.mxu0 0.0
        %2916 = vmatpush.msra.mxu0 0.0
        %2917 = vmatpush.msra.mxu0 0.0
        %2918 = vmatpush.msra.mxu0 0.0
        %2919 = vmatpush.msra.mxu0 0.0
        %2920 = vmatpush.msra.mxu0 0.0
        %2921 = vmatpush.msra.mxu0 0.0
        %2922 = vmatpush.msra.mxu0 0.0
        %2923 = vmatpush.msra.mxu0 0.0
        %2924 = vmatpush.msra.mxu0 0.0
        %2925 = vmatpush.msra.mxu0 0.0
        %2926 = vmatpush.msra.mxu0 %v2493
        %2927 = vmatmul.f32.gmra.mxu0 %v2909
        %v2928 = vpop.f32.mrf.mxu0
        %v2929 = vadd.f32 0.0, %v2928
        %2930 = vdwg.mxu0
        %v2932 = vsel %vm2516, %v2454, 0
        %2934 = vmatpush.msra.mxu0 0.0
        %2935 = vmatpush.msra.mxu0 0.0
        %2936 = vmatpush.msra.mxu0 0.0
        %2937 = vmatpush.msra.mxu0 0.0
        %2938 = vmatpush.msra.mxu0 0.0
        %2939 = vmatpush.msra.mxu0 0.0
        %2940 = vmatpush.msra.mxu0 0.0
        %2941 = vmatpush.msra.mxu0 0.0
        %2942 = vmatpush.msra.mxu0 0.0
        %2943 = vmatpush.msra.mxu0 0.0
        %2944 = vmatpush.msra.mxu0 0.0
        %2945 = vmatpush.msra.mxu0 0.0
        %2946 = vmatpush.msra.mxu0 0.0
        %2947 = vmatpush.msra.mxu0 0.0
        %2948 = vmatpush.msra.mxu0 0.0
        %2949 = vmatpush.msra.mxu0 %v2494
        %2950 = vmatmul.f32.gmra.mxu0 %v2932
        %v2951 = vpop.f32.mrf.mxu0
        %v2952 = vadd.f32 0.0, %v2951
        %2953 = vdwg.mxu0
        %v2955 = vsel %vm2516, %v2455, 0
        %2957 = vmatpush.msra.mxu0 0.0
        %2958 = vmatpush.msra.mxu0 0.0
        %2959 = vmatpush.msra.mxu0 0.0
        %2960 = vmatpush.msra.mxu0 0.0
        %2961 = vmatpush.msra.mxu0 0.0
        %2962 = vmatpush.msra.mxu0 0.0
        %2963 = vmatpush.msra.mxu0 0.0
        %2964 = vmatpush.msra.mxu0 0.0
        %2965 = vmatpush.msra.mxu0 0.0
        %2966 = vmatpush.msra.mxu0 0.0
        %2967 = vmatpush.msra.mxu0 0.0
        %2968 = vmatpush.msra.mxu0 0.0
        %2969 = vmatpush.msra.mxu0 0.0
        %2970 = vmatpush.msra.mxu0 0.0
        %2971 = vmatpush.msra.mxu0 0.0
        %2972 = vmatpush.msra.mxu0 %v2495
        %2973 = vmatmul.f32.gmra.mxu0 %v2955
        %v2974 = vpop.f32.mrf.mxu0
        %v2975 = vadd.f32 0.0, %v2974
        %2976 = vdwg.mxu0
        %v2978 = vsel %vm2516, %v2456, 0
        %2980 = vmatpush.msra.mxu0 0.0
        %2981 = vmatpush.msra.mxu0 0.0
        %2982 = vmatpush.msra.mxu0 0.0
        %2983 = vmatpush.msra.mxu0 0.0
        %2984 = vmatpush.msra.mxu0 0.0
        %2985 = vmatpush.msra.mxu0 0.0
        %2986 = vmatpush.msra.mxu0 0.0
        %2987 = vmatpush.msra.mxu0 0.0
        %2988 = vmatpush.msra.mxu0 0.0
        %2989 = vmatpush.msra.mxu0 0.0
        %2990 = vmatpush.msra.mxu0 0.0
        %2991 = vmatpush.msra.mxu0 0.0
        %2992 = vmatpush.msra.mxu0 0.0
        %2993 = vmatpush.msra.mxu0 0.0
        %2994 = vmatpush.msra.mxu0 0.0
        %2995 = vmatpush.msra.mxu0 %v2496
        %2996 = vmatmul.f32.gmra.mxu0 %v2978
        %v2997 = vpop.f32.mrf.mxu0
        %v2998 = vadd.f32 0.0, %v2997
        %2999 = vdwg.mxu0
        %v3001 = vsel %vm2516, %v2457, 0
        %3003 = vmatpush.msra.mxu0 0.0
        %3004 = vmatpush.msra.mxu0 0.0
        %3005 = vmatpush.msra.mxu0 0.0
        %3006 = vmatpush.msra.mxu0 0.0
        %3007 = vmatpush.msra.mxu0 0.0
        %3008 = vmatpush.msra.mxu0 0.0
        %3009 = vmatpush.msra.mxu0 0.0
        %3010 = vmatpush.msra.mxu0 0.0
        %3011 = vmatpush.msra.mxu0 0.0
        %3012 = vmatpush.msra.mxu0 0.0
        %3013 = vmatpush.msra.mxu0 0.0
        %3014 = vmatpush.msra.mxu0 0.0
        %3015 = vmatpush.msra.mxu0 0.0
        %3016 = vmatpush.msra.mxu0 0.0
        %3017 = vmatpush.msra.mxu0 0.0
        %3018 = vmatpush.msra.mxu0 %v2497
        %3019 = vmatmul.f32.gmra.mxu0 %v3001
        %v3020 = vpop.f32.mrf.mxu0
        %v3021 = vadd.f32 0.0, %v3020
        %3022 = vdwg.mxu0
        %v3024 = vsel %vm2516, %v2458, 0
        %3026 = vmatpush.msra.mxu0 0.0
        %3027 = vmatpush.msra.mxu0 0.0
        %3028 = vmatpush.msra.mxu0 0.0
        %3029 = vmatpush.msra.mxu0 0.0
        %3030 = vmatpush.msra.mxu0 0.0
        %3031 = vmatpush.msra.mxu0 0.0
        %3032 = vmatpush.msra.mxu0 0.0
        %3033 = vmatpush.msra.mxu0 0.0
        %3034 = vmatpush.msra.mxu0 0.0
        %3035 = vmatpush.msra.mxu0 0.0
        %3036 = vmatpush.msra.mxu0 0.0
        %3037 = vmatpush.msra.mxu0 0.0
        %3038 = vmatpush.msra.mxu0 0.0
        %3039 = vmatpush.msra.mxu0 0.0
        %3040 = vmatpush.msra.mxu0 0.0
        %3041 = vmatpush.msra.mxu0 %v2498
        %3042 = vmatmul.f32.gmra.mxu0 %v3024
        %v3043 = vpop.f32.mrf.mxu0
        %v3044 = vadd.f32 0.0, %v3043
        %3045 = vdwg.mxu0
        %v3047 = vsel %vm2516, %v2459, 0
        %3049 = vmatpush.msra.mxu0 0.0
        %3050 = vmatpush.msra.mxu0 0.0
        %3051 = vmatpush.msra.mxu0 0.0
        %3052 = vmatpush.msra.mxu0 0.0
        %3053 = vmatpush.msra.mxu0 0.0
        %3054 = vmatpush.msra.mxu0 0.0
        %3055 = vmatpush.msra.mxu0 0.0
        %3056 = vmatpush.msra.mxu0 0.0
        %3057 = vmatpush.msra.mxu0 0.0
        %3058 = vmatpush.msra.mxu0 0.0
        %3059 = vmatpush.msra.mxu0 0.0
        %3060 = vmatpush.msra.mxu0 0.0
        %3061 = vmatpush.msra.mxu0 0.0
        %3062 = vmatpush.msra.mxu0 0.0
        %3063 = vmatpush.msra.mxu0 0.0
        %3064 = vmatpush.msra.mxu0 %v2499
        %3065 = vmatmul.f32.gmra.mxu0 %v3047
        %v3066 = vpop.f32.mrf.mxu0
        %v3067 = vadd.f32 0.0, %v3066
        %3068 = vdwg.mxu0
        %v3070 = vsel %vm2516, %v2460, 0
        %3072 = vmatpush.msra.mxu0 0.0
        %3073 = vmatpush.msra.mxu0 0.0
        %3074 = vmatpush.msra.mxu0 0.0
        %3075 = vmatpush.msra.mxu0 0.0
        %3076 = vmatpush.msra.mxu0 0.0
        %3077 = vmatpush.msra.mxu0 0.0
        %3078 = vmatpush.msra.mxu0 0.0
        %3079 = vmatpush.msra.mxu0 0.0
        %3080 = vmatpush.msra.mxu0 0.0
        %3081 = vmatpush.msra.mxu0 0.0
        %3082 = vmatpush.msra.mxu0 0.0
        %3083 = vmatpush.msra.mxu0 0.0
        %3084 = vmatpush.msra.mxu0 0.0
        %3085 = vmatpush.msra.mxu0 0.0
        %3086 = vmatpush.msra.mxu0 0.0
        %3087 = vmatpush.msra.mxu0 %v2500
        %3088 = vmatmul.f32.gmra.mxu0 %v3070
        %v3089 = vpop.f32.mrf.mxu0
        %v3090 = vadd.f32 0.0, %v3089
        %3091 = vdwg.mxu0
        %v3093 = vsel %vm2516, %v2461, 0
        %3095 = vmatpush.msra.mxu0 0.0
        %3096 = vmatpush.msra.mxu0 0.0
        %3097 = vmatpush.msra.mxu0 0.0
        %3098 = vmatpush.msra.mxu0 0.0
        %3099 = vmatpush.msra.mxu0 0.0
        %3100 = vmatpush.msra.mxu0 0.0
        %3101 = vmatpush.msra.mxu0 0.0
        %3102 = vmatpush.msra.mxu0 0.0
        %3103 = vmatpush.msra.mxu0 0.0
        %3104 = vmatpush.msra.mxu0 0.0
        %3105 = vmatpush.msra.mxu0 0.0
        %3106 = vmatpush.msra.mxu0 0.0
        %3107 = vmatpush.msra.mxu0 0.0
        %3108 = vmatpush.msra.mxu0 0.0
        %3109 = vmatpush.msra.mxu0 0.0
        %3110 = vmatpush.msra.mxu0 %v2501
        %3111 = vmatmul.f32.gmra.mxu0 %v3093
        %v3112 = vpop.f32.mrf.mxu0
        %v3113 = vadd.f32 0.0, %v3112
        %3114 = vdwg.mxu0
        %v3116 = vsel %vm2516, %v2462, 0
        %3118 = vmatpush.msra.mxu0 0.0
        %3119 = vmatpush.msra.mxu0 0.0
        %3120 = vmatpush.msra.mxu0 0.0
        %3121 = vmatpush.msra.mxu0 0.0
        %3122 = vmatpush.msra.mxu0 0.0
        %3123 = vmatpush.msra.mxu0 0.0
        %3124 = vmatpush.msra.mxu0 0.0
        %3125 = vmatpush.msra.mxu0 0.0
        %3126 = vmatpush.msra.mxu0 0.0
        %3127 = vmatpush.msra.mxu0 0.0
        %3128 = vmatpush.msra.mxu0 0.0
        %3129 = vmatpush.msra.mxu0 0.0
        %3130 = vmatpush.msra.mxu0 0.0
        %3131 = vmatpush.msra.mxu0 0.0
        %3132 = vmatpush.msra.mxu0 0.0
        %3133 = vmatpush.msra.mxu0 %v2502
        %3134 = vmatmul.f32.gmra.mxu0 %v3116
        %v3135 = vpop.f32.mrf.mxu0
        %v3136 = vadd.f32 0.0, %v3135
        %3137 = vdwg.mxu0
        %v3139 = vsel %vm2516, %v2463, 0
        %3141 = vmatpush.msra.mxu0 0.0
        %3142 = vmatpush.msra.mxu0 0.0
        %3143 = vmatpush.msra.mxu0 0.0
        %3144 = vmatpush.msra.mxu0 0.0
        %3145 = vmatpush.msra.mxu0 0.0
        %3146 = vmatpush.msra.mxu0 0.0
        %3147 = vmatpush.msra.mxu0 0.0
        %3148 = vmatpush.msra.mxu0 0.0
        %3149 = vmatpush.msra.mxu0 0.0
        %3150 = vmatpush.msra.mxu0 0.0
        %3151 = vmatpush.msra.mxu0 0.0
        %3152 = vmatpush.msra.mxu0 0.0
        %3153 = vmatpush.msra.mxu0 0.0
        %3154 = vmatpush.msra.mxu0 0.0
        %3155 = vmatpush.msra.mxu0 0.0
        %3156 = vmatpush.msra.mxu0 %v2503
        %3157 = vmatmul.f32.gmra.mxu0 %v3139
        %v3158 = vpop.f32.mrf.mxu0
        %v3159 = vadd.f32 0.0, %v3158
        %3160 = vdwg.mxu0
        %v3162 = vsel %vm2516, %v2464, 0
        %3164 = vmatpush.msra.mxu0 0.0
        %3165 = vmatpush.msra.mxu0 0.0
        %3166 = vmatpush.msra.mxu0 0.0
        %3167 = vmatpush.msra.mxu0 0.0
        %3168 = vmatpush.msra.mxu0 0.0
        %3169 = vmatpush.msra.mxu0 0.0
        %3170 = vmatpush.msra.mxu0 0.0
        %3171 = vmatpush.msra.mxu0 0.0
        %3172 = vmatpush.msra.mxu0 0.0
        %3173 = vmatpush.msra.mxu0 0.0
        %3174 = vmatpush.msra.mxu0 0.0
        %3175 = vmatpush.msra.mxu0 0.0
        %3176 = vmatpush.msra.mxu0 0.0
        %3177 = vmatpush.msra.mxu0 0.0
        %3178 = vmatpush.msra.mxu0 0.0
        %3179 = vmatpush.msra.mxu0 %v2504
        %3180 = vmatmul.f32.gmra.mxu0 %v3162
        %v3181 = vpop.f32.mrf.mxu0
        %v3182 = vadd.f32 0.0, %v3181
        %3183 = vdwg.mxu0
        %v3185 = vsel %vm2516, %v2465, 0
        %3187 = vmatpush.msra.mxu0 0.0
        %3188 = vmatpush.msra.mxu0 0.0
        %3189 = vmatpush.msra.mxu0 0.0
        %3190 = vmatpush.msra.mxu0 0.0
        %3191 = vmatpush.msra.mxu0 0.0
        %3192 = vmatpush.msra.mxu0 0.0
        %3193 = vmatpush.msra.mxu0 0.0
        %3194 = vmatpush.msra.mxu0 0.0
        %3195 = vmatpush.msra.mxu0 0.0
        %3196 = vmatpush.msra.mxu0 0.0
        %3197 = vmatpush.msra.mxu0 0.0
        %3198 = vmatpush.msra.mxu0 0.0
        %3199 = vmatpush.msra.mxu0 0.0
        %3200 = vmatpush.msra.mxu0 0.0
        %3201 = vmatpush.msra.mxu0 0.0
        %3202 = vmatpush.msra.mxu0 %v2505
        %3203 = vmatmul.f32.gmra.mxu0 %v3185
        %v3204 = vpop.f32.mrf.mxu0
        %v3205 = vadd.f32 0.0, %v3204
        %3206 = vdwg.mxu0
        %v3208 = vsel %vm2516, %v2466, 0
        %3210 = vmatpush.msra.mxu0 0.0
        %3211 = vmatpush.msra.mxu0 0.0
        %3212 = vmatpush.msra.mxu0 0.0
        %3213 = vmatpush.msra.mxu0 0.0
        %3214 = vmatpush.msra.mxu0 0.0
        %3215 = vmatpush.msra.mxu0 0.0
        %3216 = vmatpush.msra.mxu0 0.0
        %3217 = vmatpush.msra.mxu0 0.0
        %3218 = vmatpush.msra.mxu0 0.0
        %3219 = vmatpush.msra.mxu0 0.0
        %3220 = vmatpush.msra.mxu0 0.0
        %3221 = vmatpush.msra.mxu0 0.0
        %3222 = vmatpush.msra.mxu0 0.0
        %3223 = vmatpush.msra.mxu0 0.0
        %3224 = vmatpush.msra.mxu0 0.0
        %3225 = vmatpush.msra.mxu0 %v2506
        %3226 = vmatmul.f32.gmra.mxu0 %v3208
        %v3227 = vpop.f32.mrf.mxu0
        %v3228 = vadd.f32 0.0, %v3227
        %3229 = vdwg.mxu0
        %v3231 = vsel %vm2516, %v2467, 0
        %3233 = vmatpush.msra.mxu0 0.0
        %3234 = vmatpush.msra.mxu0 0.0
        %3235 = vmatpush.msra.mxu0 0.0
        %3236 = vmatpush.msra.mxu0 0.0
        %3237 = vmatpush.msra.mxu0 0.0
        %3238 = vmatpush.msra.mxu0 0.0
        %3239 = vmatpush.msra.mxu0 0.0
        %3240 = vmatpush.msra.mxu0 0.0
        %3241 = vmatpush.msra.mxu0 0.0
        %3242 = vmatpush.msra.mxu0 0.0
        %3243 = vmatpush.msra.mxu0 0.0
        %3244 = vmatpush.msra.mxu0 0.0
        %3245 = vmatpush.msra.mxu0 0.0
        %3246 = vmatpush.msra.mxu0 0.0
        %3247 = vmatpush.msra.mxu0 0.0
        %3248 = vmatpush.msra.mxu0 %v2507
        %3249 = vmatmul.f32.gmra.mxu0 %v3231
        %v3250 = vpop.f32.mrf.mxu0
        %v3251 = vadd.f32 0.0, %v3250
        %3252 = vdwg.mxu0
        %v3254 = vsel %vm2516, %v2468, 0
        %3256 = vmatpush.msra.mxu0 0.0
        %3257 = vmatpush.msra.mxu0 0.0
        %3258 = vmatpush.msra.mxu0 0.0
        %3259 = vmatpush.msra.mxu0 0.0
        %3260 = vmatpush.msra.mxu0 0.0
        %3261 = vmatpush.msra.mxu0 0.0
        %3262 = vmatpush.msra.mxu0 0.0
        %3263 = vmatpush.msra.mxu0 0.0
        %3264 = vmatpush.msra.mxu0 0.0
        %3265 = vmatpush.msra.mxu0 0.0
        %3266 = vmatpush.msra.mxu0 0.0
        %3267 = vmatpush.msra.mxu0 0.0
        %3268 = vmatpush.msra.mxu0 0.0
        %3269 = vmatpush.msra.mxu0 0.0
        %3270 = vmatpush.msra.mxu0 0.0
        %3271 = vmatpush.msra.mxu0 %v2508
        %3272 = vmatmul.f32.gmra.mxu0 %v3254
        %v3273 = vpop.f32.mrf.mxu0
        %v3274 = vadd.f32 0.0, %v3273
        %3275 = vdwg.mxu0
        %v3277 = vsel %vm2516, %v2469, 0
        %3279 = vmatpush.msra.mxu0 0.0
        %3280 = vmatpush.msra.mxu0 0.0
        %3281 = vmatpush.msra.mxu0 0.0
        %3282 = vmatpush.msra.mxu0 0.0
        %3283 = vmatpush.msra.mxu0 0.0
        %3284 = vmatpush.msra.mxu0 0.0
        %3285 = vmatpush.msra.mxu0 0.0
        %3286 = vmatpush.msra.mxu0 0.0
        %3287 = vmatpush.msra.mxu0 0.0
        %3288 = vmatpush.msra.mxu0 0.0
        %3289 = vmatpush.msra.mxu0 0.0
        %3290 = vmatpush.msra.mxu0 0.0
        %3291 = vmatpush.msra.mxu0 0.0
        %3292 = vmatpush.msra.mxu0 0.0
        %3293 = vmatpush.msra.mxu0 0.0
        %3294 = vmatpush.msra.mxu0 %v2509
        %3295 = vmatmul.f32.gmra.mxu0 %v3277
        %v3296 = vpop.f32.mrf.mxu0
        %v3297 = vadd.f32 0.0, %v3296
        %3298 = vdwg.mxu0
        %v3300 = vsel %vm2516, %v2470, 0
        %3302 = vmatpush.msra.mxu0 0.0
        %3303 = vmatpush.msra.mxu0 0.0
        %3304 = vmatpush.msra.mxu0 0.0
        %3305 = vmatpush.msra.mxu0 0.0
        %3306 = vmatpush.msra.mxu0 0.0
        %3307 = vmatpush.msra.mxu0 0.0
        %3308 = vmatpush.msra.mxu0 0.0
        %3309 = vmatpush.msra.mxu0 0.0
        %3310 = vmatpush.msra.mxu0 0.0
        %3311 = vmatpush.msra.mxu0 0.0
        %3312 = vmatpush.msra.mxu0 0.0
        %3313 = vmatpush.msra.mxu0 0.0
        %3314 = vmatpush.msra.mxu0 0.0
        %3315 = vmatpush.msra.mxu0 0.0
        %3316 = vmatpush.msra.mxu0 0.0
        %3317 = vmatpush.msra.mxu0 %v2510
        %3318 = vmatmul.f32.gmra.mxu0 %v3300
        %v3319 = vpop.f32.mrf.mxu0
        %v3320 = vadd.f32 0.0, %v3319
        %3321 = vdwg.mxu0
        %v3323 = vsel %vm2516, %v2471, 0
        %3325 = vmatpush.msra.mxu0 0.0
        %3326 = vmatpush.msra.mxu0 0.0
        %3327 = vmatpush.msra.mxu0 0.0
        %3328 = vmatpush.msra.mxu0 0.0
        %3329 = vmatpush.msra.mxu0 0.0
        %3330 = vmatpush.msra.mxu0 0.0
        %3331 = vmatpush.msra.mxu0 0.0
        %3332 = vmatpush.msra.mxu0 0.0
        %3333 = vmatpush.msra.mxu0 0.0
        %3334 = vmatpush.msra.mxu0 0.0
        %3335 = vmatpush.msra.mxu0 0.0
        %3336 = vmatpush.msra.mxu0 0.0
        %3337 = vmatpush.msra.mxu0 0.0
        %3338 = vmatpush.msra.mxu0 0.0
        %3339 = vmatpush.msra.mxu0 0.0
        %3340 = vmatpush.msra.mxu0 %v2511
        %3341 = vmatmul.f32.gmra.mxu0 %v3323
        %v3342 = vpop.f32.mrf.mxu0
        %v3343 = vadd.f32 0.0, %v3342
        %3344 = vdwg.mxu0
        %v3346 = vsel %vm2516, %v2472, 0
        %3348 = vmatpush.msra.mxu0 0.0
        %3349 = vmatpush.msra.mxu0 0.0
        %3350 = vmatpush.msra.mxu0 0.0
        %3351 = vmatpush.msra.mxu0 0.0
        %3352 = vmatpush.msra.mxu0 0.0
        %3353 = vmatpush.msra.mxu0 0.0
        %3354 = vmatpush.msra.mxu0 0.0
        %3355 = vmatpush.msra.mxu0 0.0
        %3356 = vmatpush.msra.mxu0 0.0
        %3357 = vmatpush.msra.mxu0 0.0
        %3358 = vmatpush.msra.mxu0 0.0
        %3359 = vmatpush.msra.mxu0 0.0
        %3360 = vmatpush.msra.mxu0 0.0
        %3361 = vmatpush.msra.mxu0 0.0
        %3362 = vmatpush.msra.mxu0 0.0
        %3363 = vmatpush.msra.mxu0 %v2512
        %3364 = vmatmul.f32.gmra.mxu0 %v3346
        %v3365 = vpop.f32.mrf.mxu0
        %v3366 = vadd.f32 0.0, %v3365
        %3367 = vdwg.mxu0
        %v3369 = vsel %vm2516, %v2473, 0
        %3371 = vmatpush.msra.mxu0 0.0
        %3372 = vmatpush.msra.mxu0 0.0
        %3373 = vmatpush.msra.mxu0 0.0
        %3374 = vmatpush.msra.mxu0 0.0
        %3375 = vmatpush.msra.mxu0 0.0
        %3376 = vmatpush.msra.mxu0 0.0
        %3377 = vmatpush.msra.mxu0 0.0
        %3378 = vmatpush.msra.mxu0 0.0
        %3379 = vmatpush.msra.mxu0 0.0
        %3380 = vmatpush.msra.mxu0 0.0
        %3381 = vmatpush.msra.mxu0 0.0
        %3382 = vmatpush.msra.mxu0 0.0
        %3383 = vmatpush.msra.mxu0 0.0
        %3384 = vmatpush.msra.mxu0 0.0
        %3385 = vmatpush.msra.mxu0 0.0
        %3386 = vmatpush.msra.mxu0 %v2513
        %3387 = vmatmul.f32.gmra.mxu0 %v3369
        %v3388 = vpop.f32.mrf.mxu0
        %v3389 = vadd.f32 0.0, %v3388
        %3390 = vdwg.mxu0
        %v3392 = vsel %vm2516, %v2474, 0
        %3394 = vmatpush.msra.mxu0 0.0
        %3395 = vmatpush.msra.mxu0 0.0
        %3396 = vmatpush.msra.mxu0 0.0
        %3397 = vmatpush.msra.mxu0 0.0
        %3398 = vmatpush.msra.mxu0 0.0
        %3399 = vmatpush.msra.mxu0 0.0
        %3400 = vmatpush.msra.mxu0 0.0
        %3401 = vmatpush.msra.mxu0 0.0
        %3402 = vmatpush.msra.mxu0 0.0
        %3403 = vmatpush.msra.mxu0 0.0
        %3404 = vmatpush.msra.mxu0 0.0
        %3405 = vmatpush.msra.mxu0 0.0
        %3406 = vmatpush.msra.mxu0 0.0
        %3407 = vmatpush.msra.mxu0 0.0
        %3408 = vmatpush.msra.mxu0 0.0
        %3409 = vmatpush.msra.mxu0 %v2514
        %3410 = vmatmul.f32.gmra.mxu0 %v3392
        %v3411 = vpop.f32.mrf.mxu0
        %v3412 = vadd.f32 0.0, %v3411
        %3413 = vdwg.mxu0
        %v3415 = vsel %vm2516, %v2475, 0
        %3417 = vmatpush.msra.mxu0 0.0
        %3418 = vmatpush.msra.mxu0 0.0
        %3419 = vmatpush.msra.mxu0 0.0
        %3420 = vmatpush.msra.mxu0 0.0
        %3421 = vmatpush.msra.mxu0 0.0
        %3422 = vmatpush.msra.mxu0 0.0
        %3423 = vmatpush.msra.mxu0 0.0
        %3424 = vmatpush.msra.mxu0 0.0
        %3425 = vmatpush.msra.mxu0 0.0
        %3426 = vmatpush.msra.mxu0 0.0
        %3427 = vmatpush.msra.mxu0 0.0
        %3428 = vmatpush.msra.mxu0 0.0
        %3429 = vmatpush.msra.mxu0 0.0
        %3430 = vmatpush.msra.mxu0 0.0
        %3431 = vmatpush.msra.mxu0 0.0
        %3432 = vmatpush.msra.mxu0 %v2515
        %3433 = vmatmul.f32.gmra.mxu0 %v3415
        %v3434 = vpop.f32.mrf.mxu0
        %v3435 = vadd.f32 0.0, %v3434
        %3436 = vdwg.mxu0
        %vm3437 = vcmask 1041408
        %v3438 = vsel %vm3437, %v2538, 0.0
        %v3439 = vsel %vm3437, %v2561, 0.0
        %v3440 = vadd.f32 %v3438, %v3439
        %v3441 = vsel %vm3437, %v2584, 0.0
        %v3442 = vadd.f32 %v3440, %v3441
        %v3443 = vsel %vm3437, %v2607, 0.0
        %v3444 = vadd.f32 %v3442, %v3443
        %v3445 = vsel %vm3437, %v2630, 0.0
        %v3446 = vadd.f32 %v3444, %v3445
        %v3447 = vsel %vm3437, %v2653, 0.0
        %v3448 = vadd.f32 %v3446, %v3447
        %v3449 = vsel %vm3437, %v2676, 0.0
        %v3450 = vadd.f32 %v3448, %v3449
        %v3451 = vsel %vm3437, %v2699, 0.0
        %v3452 = vadd.f32 %v3450, %v3451
        %v3453 = vsel %vm3437, %v2722, 0.0
        %v3454 = vadd.f32 %v3452, %v3453
        %v3455 = vsel %vm3437, %v2745, 0.0
        %v3456 = vadd.f32 %v3454, %v3455
        %v3457 = vsel %vm3437, %v2768, 0.0
        %v3458 = vadd.f32 %v3456, %v3457
        %v3459 = vsel %vm3437, %v2791, 0.0
        %v3460 = vadd.f32 %v3458, %v3459
        %v3461 = vsel %vm3437, %v2814, 0.0
        %v3462 = vadd.f32 %v3460, %v3461
        %v3463 = vsel %vm3437, %v2837, 0.0
        %v3464 = vadd.f32 %v3462, %v3463
        %v3465 = vsel %vm3437, %v2860, 0.0
        %v3466 = vadd.f32 %v3464, %v3465
        %v3467 = vsel %vm3437, %v2883, 0.0
        %v3468 = vadd.f32 %v3466, %v3467
        %v3469 = vsel %vm3437, %v2906, 0.0
        %v3470 = vadd.f32 %v3468, %v3469
        %v3471 = vsel %vm3437, %v2929, 0.0
        %v3472 = vadd.f32 %v3470, %v3471
        %v3473 = vsel %vm3437, %v2952, 0.0
        %v3474 = vadd.f32 %v3472, %v3473
        %v3475 = vsel %vm3437, %v2975, 0.0
        %v3476 = vadd.f32 %v3474, %v3475
        %v3477 = vsel %vm3437, %v2998, 0.0
        %v3478 = vadd.f32 %v3476, %v3477
        %v3479 = vsel %vm3437, %v3021, 0.0
        %v3480 = vadd.f32 %v3478, %v3479
        %v3481 = vsel %vm3437, %v3044, 0.0
        %v3482 = vadd.f32 %v3480, %v3481
        %v3483 = vsel %vm3437, %v3067, 0.0
        %v3484 = vadd.f32 %v3482, %v3483
        %v3485 = vsel %vm3437, %v3090, 0.0
        %v3486 = vadd.f32 %v3484, %v3485
        %v3487 = vsel %vm3437, %v3113, 0.0
        %v3488 = vadd.f32 %v3486, %v3487
        %v3489 = vsel %vm3437, %v3136, 0.0
        %v3490 = vadd.f32 %v3488, %v3489
        %v3491 = vsel %vm3437, %v3159, 0.0
        %v3492 = vadd.f32 %v3490, %v3491
        %v3493 = vsel %vm3437, %v3182, 0.0
        %v3494 = vadd.f32 %v3492, %v3493
        %v3495 = vsel %vm3437, %v3205, 0.0
        %v3496 = vadd.f32 %v3494, %v3495
        %v3497 = vsel %vm3437, %v3228, 0.0
        %v3498 = vadd.f32 %v3496, %v3497
        %v3499 = vsel %vm3437, %v3251, 0.0
        %v3500 = vadd.f32 %v3498, %v3499
        %v3501 = vsel %vm3437, %v3274, 0.0
        %v3502 = vadd.f32 %v3500, %v3501
        %v3503 = vsel %vm3437, %v3297, 0.0
        %v3504 = vadd.f32 %v3502, %v3503
        %v3505 = vsel %vm3437, %v3320, 0.0
        %v3506 = vadd.f32 %v3504, %v3505
        %v3507 = vsel %vm3437, %v3343, 0.0
        %v3508 = vadd.f32 %v3506, %v3507
        %v3509 = vsel %vm3437, %v3366, 0.0
        %v3510 = vadd.f32 %v3508, %v3509
        %v3511 = vsel %vm3437, %v3389, 0.0
        %v3512 = vadd.f32 %v3510, %v3511
        %v3513 = vsel %vm3437, %v3412, 0.0
        %v3514 = vadd.f32 %v3512, %v3513
        %v3515 = vsel %vm3437, %v3435, 0.0
        %v3516 = vadd.f32 %v3514, %v3515
        %v3517 = vld [vmem:[%s311] sm:$0x1]
        %v3519 = vperm.slane %v3517, 0
        %v3521 = vadd.f32 %v3516, %v3519
        %3522 = vst [vmem:[%s315] sm:$0x3] %v3521
        %p3523 = scmp.lt.s32.totalorder %s19, 2
        %s3524 = scalar_select %p3523, %s19, 2
        %s3525 = smul.addr %s3524, 2
        %s3526 = scalar_lea.vmem %s5, %s3525
        // Predicated region
        $region45: #{my2dmodel_forward.1} parent=39 // pred_check
          %p3527 = pneg %p167
        $region46: #{my2dmodel_forward.1} parent=39 // pred_check_branch
          %3529 = sbr.rel (%p3527) target = $region48
        $region47: #{my2dmodel_forward.1} parent=39 // pred_region
          _
        $region48: #{my2dmodel_forward.1} parent=39 // pred_fallthru
          _
      $region40: #{my2dmodel_forward.1} parent=5 // pred_fallthru
        _
      %p3530 = scmp.le.s32.totalorder 2, %s14
      // Predicated region
      $region49: #{my2dmodel_forward.1} parent=5 // pred_check
        %p3531 = pneg %p3530
      $region50: #{my2dmodel_forward.1} parent=5 // pred_check_branch
        %3533 = sbr.rel (%p3531) target = $region52
      $region51: #{my2dmodel_forward.1} parent=5 // pred_region
        %s3534 = ssub.s32 %s14, 2
        // Predicated region
        $region53: #{my2dmodel_forward.1} parent=51 // pred_check
          %p3535 = pneg %p173
        $region54: #{my2dmodel_forward.1} parent=51 // pred_check_branch
          %3537 = sbr.rel (%p3535) target = $region56
        $region55: #{my2dmodel_forward.1} parent=51 // pred_region
          %p3538 = scmp.lt.s32.totalorder %s20, 2
          %s3539 = scalar_select %p3538, %s20, 2
          %s3540 = smul.addr %s3539, 2
          %s3541 = scalar_lea.vmem %s5, %s3540
        $region56: #{my2dmodel_forward.1} parent=51 // pred_fallthru
          _
      $region52: #{my2dmodel_forward.1} parent=5 // pred_fallthru
        _
    $region6: #{my2dmodel_forward.1} parent=1 // loop_footer
      %s18 = sadd.s32 1, %s14
    $region7: #{my2dmodel_forward.1} parent=1 // loop_footer_branch
      %13 = sbr.rel target = $region3
    $region8: #{my2dmodel_forward.1} parent=1 // loop_exit
      _
    %3542 = vsyncpa [#allocation3], 1
    %s3543 = scalar_lea.sflag [#allocation3], 1
    %3544 = vsyncpa %s3543, 1

</llo_original>
